<compile_context>
chip_gen: v5e
topology: v5e:2x2
jax: 0.10.0
libtpu: 0.0.40
codegen_flags: <defaults>
</compile_context>

<pallas_src>
import functools

import jax
import jax.numpy as jnp
from jax.experimental import pallas as pl
from jax.experimental.pallas import tpu as pltpu

# Static architecture config (3x3 kernels, padding=1): (cin, cout, stride).
_CONV_CFG = ((1, 32, 1), (32, 64, 2), (64, 128, 2), (128, 128, 2))
_KSIZE = 3
_PAD = 1
_VMEM_LIMIT = 32 * 1024 * 1024  # fits every chip's scoped-VMEM budget


# ----------------------------------------------------------------------------
# Pallas kernel: one M-tile of  out = act(x @ w + b)   (bf16 MXU, f32 accum)
# ----------------------------------------------------------------------------
def _gemm_bias_act_kernel(x_ref, w_ref, b_ref, o_ref, *, relu):
    acc = jnp.dot(x_ref[...], w_ref[...], preferred_element_type=jnp.float32)
    acc = acc + b_ref[...]                      # (1, N) broadcasts over rows
    if relu:
        acc = jnp.maximum(acc, 0.0)
    o_ref[...] = acc.astype(o_ref.dtype)


def gemm_bias_act(x, w, b, *, relu, out_dtype, tm=1024):
    """x: (M, K) bf16, w: (K, N) bf16, b: (1, N) f32 -> act(x @ w + b)."""
    M, K = x.shape
    Kw, N = w.shape
    assert K == Kw and b.shape == (1, N)
    tm = min(tm, M)                             # M is a multiple of 8 for all conv layers
    grid_m = pl.cdiv(M, tm)

    bytes_accessed = (M * K * x.dtype.itemsize
                      + K * N * w.dtype.itemsize
                      + N * 4
                      + M * N * jnp.dtype(out_dtype).itemsize)

    return pl.pallas_call(
        functools.partial(_gemm_bias_act_kernel, relu=relu),
        out_shape=jax.ShapeDtypeStruct((M, N), out_dtype),
        grid=(grid_m,),
        in_specs=[
            pl.BlockSpec((tm, K), lambda i: (i, 0)),   # row tile of activations
            pl.BlockSpec((K, N), lambda i: (0, 0)),    # resident weights
            pl.BlockSpec((1, N), lambda i: (0, 0)),    # resident bias
        ],
        out_specs=pl.BlockSpec((tm, N), lambda i: (i, 0)),
        compiler_params=pltpu.CompilerParams(
            dimension_semantics=("parallel",),
            vmem_limit_bytes=_VMEM_LIMIT,
        ),
        cost_estimate=pl.CostEstimate(
            flops=2 * M * K * N,
            transcendentals=0,
            bytes_accessed=int(bytes_accessed),
        ),
    )(x, w, b)


# ----------------------------------------------------------------------------
# Pallas kernel: fused 3-layer MLP head (all weights resident in VMEM)
# ----------------------------------------------------------------------------
def _mlp_head_kernel(x_ref, w1_ref, b1_ref, w2_ref, b2_ref, w3_ref, b3_ref, o_ref):
    h1 = jnp.dot(x_ref[...], w1_ref[...], preferred_element_type=jnp.float32)
    h1 = jnp.maximum(h1 + b1_ref[...], 0.0)
    h2 = jnp.dot(h1.astype(jnp.bfloat16), w2_ref[...],
                 preferred_element_type=jnp.float32)
    h2 = jnp.maximum(h2 + b2_ref[...], 0.0)
    h3 = jnp.dot(h2.astype(jnp.bfloat16), w3_ref[...],
                 preferred_element_type=jnp.float32)
    o_ref[...] = (h3 + b3_ref[...]).astype(o_ref.dtype)


def mlp_head(x, linears):
    """x: (B, 2048) bf16 -> logits (B, 4) f32; single fused pallas_call."""
    (w1, b1), (w2, b2), (w3, b3) = linears
    B = x.shape[0]
    n_out = w3.shape[1]

    flops = 2 * B * (w1.shape[0] * w1.shape[1]
                     + w2.shape[0] * w2.shape[1]
                     + w3.shape[0] * w3.shape[1])
    bytes_accessed = (x.size * x.dtype.itemsize
                      + sum(w.size * w.dtype.itemsize + b.size * 4
                            for (w, b) in linears)
                      + B * n_out * 4)

    vmem = pl.BlockSpec(memory_space=pltpu.MemorySpace.VMEM)
    return pl.pallas_call(
        _mlp_head_kernel,
        out_shape=jax.ShapeDtypeStruct((B, n_out), jnp.float32),
        in_specs=[vmem] * 7,
        out_specs=vmem,
        compiler_params=pltpu.CompilerParams(vmem_limit_bytes=_VMEM_LIMIT),
        cost_estimate=pl.CostEstimate(
            flops=int(flops), transcendentals=0, bytes_accessed=int(bytes_accessed)),
    )(x, w1, b1, w2, b2, w3, b3)


# ----------------------------------------------------------------------------
# im2col (plain-JAX glue; all slice parameters are static Python ints)
# ----------------------------------------------------------------------------
def im2col(x, *, k, stride, pad):
    """x: (B, H, W, C) -> patches (B*Ho*Wo, k*k*C) in (ky, kx, c) column order."""
    B, H, W, C = x.shape
    xp = jnp.pad(x, ((0, 0), (pad, pad), (pad, pad), (0, 0)))
    Ho = (H + 2 * pad - k) // stride + 1
    Wo = (W + 2 * pad - k) // stride + 1
    cols = []
    for ky in range(k):
        for kx in range(k):
            patch = xp[:, ky:ky + stride * Ho:stride, kx:kx + stride * Wo:stride, :]
            cols.append(patch)                          # (B, Ho, Wo, C)
    patches = jnp.stack(cols, axis=3)                   # (B, Ho, Wo, k*k, C)
    return patches.reshape(B * Ho * Wo, k * k * C), Ho, Wo


# ----------------------------------------------------------------------------
# Parameter init: synthetic weights, pre-reshaped / pre-cast for the kernels.
# ----------------------------------------------------------------------------
def init_params(hidden_dim=128, seed=0):
    key = jax.random.PRNGKey(seed)
    params = {}

    # Conv stack: store GEMM-ready (k*k*cin, cout) bf16 matrices + (1,cout) f32 bias.
    convs = []
    for (cin, cout, _stride) in _CONV_CFG:
        key, kw, kb = jax.random.split(key, 3)
        fan_in = _KSIZE * _KSIZE * cin
        bound = 1.0 / (fan_in ** 0.5)
        w = jax.random.uniform(kw, (_KSIZE, _KSIZE, cin, cout), jnp.float32, -bound, bound)
        b = jax.random.uniform(kb, (cout,), jnp.float32, -bound, bound)
        wmat = w.reshape(_KSIZE * _KSIZE * cin, cout).astype(jnp.bfloat16)
        convs.append((wmat, b.reshape(1, cout)))
    params["convs"] = convs

    # Final feature map is (B, 4, 4, 128) NHWC for a 32x32 input.
    Cf, Hf, Wf = 128, 4, 4
    lin_cfg = [(Cf * Hf * Wf, hidden_dim), (hidden_dim, hidden_dim), (hidden_dim, 4)]
    linears = []
    for li, (fin, fout) in enumerate(lin_cfg):
        key, kw, kb = jax.random.split(key, 3)
        bound = 1.0 / (fin ** 0.5)
        w = jax.random.uniform(kw, (fin, fout), jnp.float32, -bound, bound)
        b = jax.random.uniform(kb, (fout,), jnp.float32, -bound, bound)
        if li == 0:
            # PyTorch flattens (C,H,W); we flatten NHWC.  Permute w1's rows ONCE
            # at init so the NHWC flatten feeds the equivalent linear layer
            # (avoids a per-call activation transpose).
            j = jnp.arange(Hf * Wf * Cf)
            h_idx = j // (Wf * Cf)
            w_idx = (j // Cf) % Wf
            c_idx = j % Cf
            chw_rows = c_idx * (Hf * Wf) + h_idx * Wf + w_idx
            w = w[chw_rows, :]
        linears.append((w.astype(jnp.bfloat16), b.reshape(1, fout)))
    params["linears"] = linears
    return params


# ----------------------------------------------------------------------------
# RNet forward pass
# ----------------------------------------------------------------------------
def rnet_forward(params, x_nchw):
    """x_nchw: (B, 1, 32, 32) float32 -> logits (B, 4) float32."""
    B = x_nchw.shape[0]
    h = jnp.transpose(x_nchw, (0, 2, 3, 1)).astype(jnp.bfloat16)     # NHWC, bf16

    # Conv + ReLU stack: im2col (glue) + fused M-tiled GEMM+bias+ReLU kernel.
    for (wmat, b), (_cin, cout, stride) in zip(params["convs"], _CONV_CFG):
        patches, Ho, Wo = im2col(h, k=_KSIZE, stride=stride, pad=_PAD)
        out = gemm_bias_act(patches, wmat, b, relu=True, out_dtype=jnp.bfloat16)
        h = out.reshape(B, Ho, Wo, cout)

    # NHWC flatten (w1 rows were pre-permuted to match PyTorch's CHW flatten).
    feat = h.reshape(B, -1)                                          # (B, 2048) bf16

    # Fused 3-layer MLP head.
    return mlp_head(feat, params["linears"])                         # (B, 4) f32


if __name__ == "__main__":
    # Spatial size is forced to 32x32x1 by Linear(4*4*128, hidden_dim).
    B = 2
    key = jax.random.PRNGKey(0)
    x = jax.random.normal(key, (B, 1, 32, 32), jnp.float32)

    params = init_params(hidden_dim=128, seed=0)

    logits = jax.jit(rnet_forward)(params, x)
    logits = jax.block_until_ready(logits)

    assert logits.shape == (B, 4), logits.shape
    assert logits.dtype == jnp.float32
    assert bool(jnp.all(jnp.isfinite(logits)))
    print("KERNEL_OK")
</pallas_src>

<mosaic_0001>
module attributes {stable_mosaic.version = 11 : i64} {
  func.func @_gemm_bias_act_kernel(%arg0: i32, %arg1: memref<1024x9xbf16, #tpu.memory_space<vmem>>, %arg2: memref<9x32xbf16, #tpu.memory_space<vmem>>, %arg3: memref<1x32xf32, #tpu.memory_space<vmem>>, %arg4: memref<1024x32xbf16, #tpu.memory_space<vmem>>) attributes {dimension_semantics = [#tpu.dimension_semantics<parallel>], iteration_bounds = array<i64: 2>, scalar_prefetch = 0 : i64, scratch_operands = 0 : i64, tpu.core_type = #tpu.core_type<tc>, window_params = [{transform_indices = @transform_0, window_bounds = array<i64: 1024, 9>}, {pipeline_mode = #tpu.pipeline_mode<synchronous>, transform_indices = @transform_1, window_bounds = array<i64: 9, 32>}, {pipeline_mode = #tpu.pipeline_mode<synchronous>, transform_indices = @transform_2, window_bounds = array<i64: 1, 32>}, {transform_indices = @transform_3, window_bounds = array<i64: 1024, 32>}]} {
    %c0 = arith.constant 0 : index
    %c0_0 = arith.constant 0 : index
    %0 = vector.load %arg1[%c0, %c0_0] : memref<1024x9xbf16, #tpu.memory_space<vmem>>, vector<1024x9xbf16>
    %c0_1 = arith.constant 0 : index
    %c0_2 = arith.constant 0 : index
    %1 = vector.load %arg2[%c0_1, %c0_2] : memref<9x32xbf16, #tpu.memory_space<vmem>>, vector<9x32xbf16>
    %cst = arith.constant dense<0.000000e+00> : vector<1024x32xf32>
    %2 = tpu.matmul %0, %1, %cst {dimension_numbers = #tpu.dot_dimension_numbers<[1], [0], [0], [1], [0, 0, 1, 1], [], []>} : vector<1024x9xbf16>, vector<9x32xbf16>, vector<1024x32xf32> -> vector<1024x32xf32>
    %c0_3 = arith.constant 0 : index
    %c0_4 = arith.constant 0 : index
    %3 = vector.load %arg3[%c0_3, %c0_4] : memref<1x32xf32, #tpu.memory_space<vmem>>, vector<1x32xf32>
    %4 = vector.broadcast %3 : vector<1x32xf32> to vector<1024x32xf32>
    %5 = arith.addf %2, %4 : vector<1024x32xf32>
    %cst_5 = arith.constant 0.000000e+00 : f32
    %6 = vector.broadcast %cst_5 : f32 to vector<1024x32xf32>
    %7 = arith.maximumf %5, %6 : vector<1024x32xf32>
    %8 = arith.truncf %7 : vector<1024x32xf32> to vector<1024x32xbf16>
    %c0_6 = arith.constant 0 : index
    %c0_7 = arith.constant 0 : index
    %9 = vector.load %arg4[%c0_6, %c0_7] : memref<1024x32xbf16, #tpu.memory_space<vmem>>, vector<1024x32xbf16>
    tpu.vector_store %arg4[%c0_6, %c0_7], %8 {strides = array<i32>} : memref<1024x32xbf16, #tpu.memory_space<vmem>>, vector<1024x32xbf16>,
    return
  }
  func.func @transform_0(%arg0: i32) -> (i32, i32) {
    %c0_i32 = arith.constant 0 : i32
    %c0_i32_0 = arith.constant 0 : i32
    return %arg0, %c0_i32 : i32, i32
  }
  func.func @transform_1(%arg0: i32) -> (i32, i32) {
    %c0_i32 = arith.constant 0 : i32
    %c0_i32_0 = arith.constant 0 : i32
    %c0_i32_1 = arith.constant 0 : i32
    return %c0_i32, %c0_i32_0 : i32, i32
  }
  func.func @transform_2(%arg0: i32) -> (i32, i32) {
    %c0_i32 = arith.constant 0 : i32
    %c0_i32_0 = arith.constant 0 : i32
    %c0_i32_1 = arith.constant 0 : i32
    return %c0_i32, %c0_i32_0 : i32, i32
  }
  func.func @transform_3(%arg0: i32) -> (i32, i32) {
    %c0_i32 = arith.constant 0 : i32
    %c0_i32_0 = arith.constant 0 : i32
    return %arg0, %c0_i32 : i32, i32
  }
}

module attributes {stable_mosaic.version = 11 : i64} {
  func.func @_gemm_bias_act_kernel(%arg0: i32, %arg1: memref<512x288xbf16, #tpu.memory_space<vmem>>, %arg2: memref<288x64xbf16, #tpu.memory_space<vmem>>, %arg3: memref<1x64xf32, #tpu.memory_space<vmem>>, %arg4: memref<512x64xbf16, #tpu.memory_space<vmem>>) attributes {dimension_semantics = [#tpu.dimension_semantics<parallel>], iteration_bounds = array<i64: 1>, scalar_prefetch = 0 : i64, scratch_operands = 0 : i64, tpu.core_type = #tpu.core_type<tc>, window_params = [{transform_indices = @transform_0, window_bounds = array<i64: 512, 288>}, {pipeline_mode = #tpu.pipeline_mode<synchronous>, transform_indices = @transform_1, window_bounds = array<i64: 288, 64>}, {pipeline_mode = #tpu.pipeline_mode<synchronous>, transform_indices = @transform_2, window_bounds = array<i64: 1, 64>}, {transform_indices = @transform_3, window_bounds = array<i64: 512, 64>}]} {
    %c0 = arith.constant 0 : index
    %c0_0 = arith.constant 0 : index
    %0 = vector.load %arg1[%c0, %c0_0] : memref<512x288xbf16, #tpu.memory_space<vmem>>, vector<512x288xbf16>
    %c0_1 = arith.constant 0 : index
    %c0_2 = arith.constant 0 : index
    %1 = vector.load %arg2[%c0_1, %c0_2] : memref<288x64xbf16, #tpu.memory_space<vmem>>, vector<288x64xbf16>
    %cst = arith.constant dense<0.000000e+00> : vector<512x64xf32>
    %2 = tpu.matmul %0, %1, %cst {dimension_numbers = #tpu.dot_dimension_numbers<[1], [0], [0], [1], [0, 0, 1, 1], [], []>} : vector<512x288xbf16>, vector<288x64xbf16>, vector<512x64xf32> -> vector<512x64xf32>
    %c0_3 = arith.constant 0 : index
    %c0_4 = arith.constant 0 : index
    %3 = vector.load %arg3[%c0_3, %c0_4] : memref<1x64xf32, #tpu.memory_space<vmem>>, vector<1x64xf32>
    %4 = vector.broadcast %3 : vector<1x64xf32> to vector<512x64xf32>
    %5 = arith.addf %2, %4 : vector<512x64xf32>
    %cst_5 = arith.constant 0.000000e+00 : f32
    %6 = vector.broadcast %cst_5 : f32 to vector<512x64xf32>
    %7 = arith.maximumf %5, %6 : vector<512x64xf32>
    %8 = arith.truncf %7 : vector<512x64xf32> to vector<512x64xbf16>
    %c0_6 = arith.constant 0 : index
    %c0_7 = arith.constant 0 : index
    %9 = vector.load %arg4[%c0_6, %c0_7] : memref<512x64xbf16, #tpu.memory_space<vmem>>, vector<512x64xbf16>
    tpu.vector_store %arg4[%c0_6, %c0_7], %8 {strides = array<i32>} : memref<512x64xbf16, #tpu.memory_space<vmem>>, vector<512x64xbf16>,
    return
  }
  func.func @transform_0(%arg0: i32) -> (i32, i32) {
    %c0_i32 = arith.constant 0 : i32
    %c0_i32_0 = arith.constant 0 : i32
    return %arg0, %c0_i32 : i32, i32
  }
  func.func @transform_1(%arg0: i32) -> (i32, i32) {
    %c0_i32 = arith.constant 0 : i32
    %c0_i32_0 = arith.constant 0 : i32
    %c0_i32_1 = arith.constant 0 : i32
    return %c0_i32, %c0_i32_0 : i32, i32
  }
  func.func @transform_2(%arg0: i32) -> (i32, i32) {
    %c0_i32 = arith.constant 0 : i32
    %c0_i32_0 = arith.constant 0 : i32
    %c0_i32_1 = arith.constant 0 : i32
    return %c0_i32, %c0_i32_0 : i32, i32
  }
  func.func @transform_3(%arg0: i32) -> (i32, i32) {
    %c0_i32 = arith.constant 0 : i32
    %c0_i32_0 = arith.constant 0 : i32
    return %arg0, %c0_i32 : i32, i32
  }
}

module attributes {stable_mosaic.version = 11 : i64} {
  func.func @_gemm_bias_act_kernel(%arg0: i32, %arg1: memref<128x576xbf16, #tpu.memory_space<vmem>>, %arg2: memref<576x128xbf16, #tpu.memory_space<vmem>>, %arg3: memref<1x128xf32, #tpu.memory_space<vmem>>, %arg4: memref<128x128xbf16, #tpu.memory_space<vmem>>) attributes {dimension_semantics = [#tpu.dimension_semantics<parallel>], iteration_bounds = array<i64: 1>, scalar_prefetch = 0 : i64, scratch_operands = 0 : i64, tpu.core_type = #tpu.core_type<tc>, window_params = [{transform_indices = @transform_0, window_bounds = array<i64: 128, 576>}, {pipeline_mode = #tpu.pipeline_mode<synchronous>, transform_indices = @transform_1, window_bounds = array<i64: 576, 128>}, {pipeline_mode = #tpu.pipeline_mode<synchronous>, transform_indices = @transform_2, window_bounds = array<i64: 1, 128>}, {transform_indices = @transform_3, window_bounds = array<i64: 128, 128>}]} {
    %c0 = arith.constant 0 : index
    %c0_0 = arith.constant 0 : index
    %0 = vector.load %arg1[%c0, %c0_0] : memref<128x576xbf16, #tpu.memory_space<vmem>>, vector<128x576xbf16>
    %c0_1 = arith.constant 0 : index
    %c0_2 = arith.constant 0 : index
    %1 = vector.load %arg2[%c0_1, %c0_2] : memref<576x128xbf16, #tpu.memory_space<vmem>>, vector<576x128xbf16>
    %cst = arith.constant dense<0.000000e+00> : vector<128x128xf32>
    %2 = tpu.matmul %0, %1, %cst {dimension_numbers = #tpu.dot_dimension_numbers<[1], [0], [0], [1], [0, 0, 1, 1], [], []>} : vector<128x576xbf16>, vector<576x128xbf16>, vector<128x128xf32> -> vector<128x128xf32>
    %c0_3 = arith.constant 0 : index
    %c0_4 = arith.constant 0 : index
    %3 = vector.load %arg3[%c0_3, %c0_4] : memref<1x128xf32, #tpu.memory_space<vmem>>, vector<1x128xf32>
    %4 = vector.broadcast %3 : vector<1x128xf32> to vector<128x128xf32>
    %5 = arith.addf %2, %4 : vector<128x128xf32>
    %cst_5 = arith.constant 0.000000e+00 : f32
    %6 = vector.broadcast %cst_5 : f32 to vector<128x128xf32>
    %7 = arith.maximumf %5, %6 : vector<128x128xf32>
    %8 = arith.truncf %7 : vector<128x128xf32> to vector<128x128xbf16>
    %c0_6 = arith.constant 0 : index
    %c0_7 = arith.constant 0 : index
    %9 = vector.load %arg4[%c0_6, %c0_7] : memref<128x128xbf16, #tpu.memory_space<vmem>>, vector<128x128xbf16>
    tpu.vector_store %arg4[%c0_6, %c0_7], %8 {strides = array<i32>} : memref<128x128xbf16, #tpu.memory_space<vmem>>, vector<128x128xbf16>,
    return
  }
  func.func @transform_0(%arg0: i32) -> (i32, i32) {
    %c0_i32 = arith.constant 0 : i32
    %c0_i32_0 = arith.constant 0 : i32
    return %arg0, %c0_i32 : i32, i32
  }
  func.func @transform_1(%arg0: i32) -> (i32, i32) {
    %c0_i32 = arith.constant 0 : i32
    %c0_i32_0 = arith.constant 0 : i32
    %c0_i32_1 = arith.constant 0 : i32
    return %c0_i32, %c0_i32_0 : i32, i32
  }
  func.func @transform_2(%arg0: i32) -> (i32, i32) {
    %c0_i32 = arith.constant 0 : i32
    %c0_i32_0 = arith.constant 0 : i32
    %c0_i32_1 = arith.constant 0 : i32
    return %c0_i32, %c0_i32_0 : i32, i32
  }
  func.func @transform_3(%arg0: i32) -> (i32, i32) {
    %c0_i32 = arith.constant 0 : i32
    %c0_i32_0 = arith.constant 0 : i32
    return %arg0, %c0_i32 : i32, i32
  }
}

module attributes {stable_mosaic.version = 11 : i64} {
  func.func @_gemm_bias_act_kernel(%arg0: i32, %arg1: memref<32x1152xbf16, #tpu.memory_space<vmem>>, %arg2: memref<1152x128xbf16, #tpu.memory_space<vmem>>, %arg3: memref<1x128xf32, #tpu.memory_space<vmem>>, %arg4: memref<32x128xbf16, #tpu.memory_space<vmem>>) attributes {dimension_semantics = [#tpu.dimension_semantics<parallel>], iteration_bounds = array<i64: 1>, scalar_prefetch = 0 : i64, scratch_operands = 0 : i64, tpu.core_type = #tpu.core_type<tc>, window_params = [{transform_indices = @transform_0, window_bounds = array<i64: 32, 1152>}, {pipeline_mode = #tpu.pipeline_mode<synchronous>, transform_indices = @transform_1, window_bounds = array<i64: 1152, 128>}, {pipeline_mode = #tpu.pipeline_mode<synchronous>, transform_indices = @transform_2, window_bounds = array<i64: 1, 128>}, {transform_indices = @transform_3, window_bounds = array<i64: 32, 128>}]} {
    %c0 = arith.constant 0 : index
    %c0_0 = arith.constant 0 : index
    %0 = vector.load %arg1[%c0, %c0_0] : memref<32x1152xbf16, #tpu.memory_space<vmem>>, vector<32x1152xbf16>
    %c0_1 = arith.constant 0 : index
    %c0_2 = arith.constant 0 : index
    %1 = vector.load %arg2[%c0_1, %c0_2] : memref<1152x128xbf16, #tpu.memory_space<vmem>>, vector<1152x128xbf16>
    %cst = arith.constant dense<0.000000e+00> : vector<32x128xf32>
    %2 = tpu.matmul %0, %1, %cst {dimension_numbers = #tpu.dot_dimension_numbers<[1], [0], [0], [1], [0, 0, 1, 1], [], []>} : vector<32x1152xbf16>, vector<1152x128xbf16>, vector<32x128xf32> -> vector<32x128xf32>
    %c0_3 = arith.constant 0 : index
    %c0_4 = arith.constant 0 : index
    %3 = vector.load %arg3[%c0_3, %c0_4] : memref<1x128xf32, #tpu.memory_space<vmem>>, vector<1x128xf32>
    %4 = vector.broadcast %3 : vector<1x128xf32> to vector<32x128xf32>
    %5 = arith.addf %2, %4 : vector<32x128xf32>
    %cst_5 = arith.constant 0.000000e+00 : f32
    %6 = vector.broadcast %cst_5 : f32 to vector<32x128xf32>
    %7 = arith.maximumf %5, %6 : vector<32x128xf32>
    %8 = arith.truncf %7 : vector<32x128xf32> to vector<32x128xbf16>
    %c0_6 = arith.constant 0 : index
    %c0_7 = arith.constant 0 : index
    %9 = vector.load %arg4[%c0_6, %c0_7] : memref<32x128xbf16, #tpu.memory_space<vmem>>, vector<32x128xbf16>
    tpu.vector_store %arg4[%c0_6, %c0_7], %8 {strides = array<i32>} : memref<32x128xbf16, #tpu.memory_space<vmem>>, vector<32x128xbf16>,
    return
  }
  func.func @transform_0(%arg0: i32) -> (i32, i32) {
    %c0_i32 = arith.constant 0 : i32
    %c0_i32_0 = arith.constant 0 : i32
    return %arg0, %c0_i32 : i32, i32
  }
  func.func @transform_1(%arg0: i32) -> (i32, i32) {
    %c0_i32 = arith.constant 0 : i32
    %c0_i32_0 = arith.constant 0 : i32
    %c0_i32_1 = arith.constant 0 : i32
    return %c0_i32, %c0_i32_0 : i32, i32
  }
  func.func @transform_2(%arg0: i32) -> (i32, i32) {
    %c0_i32 = arith.constant 0 : i32
    %c0_i32_0 = arith.constant 0 : i32
    %c0_i32_1 = arith.constant 0 : i32
    return %c0_i32, %c0_i32_0 : i32, i32
  }
  func.func @transform_3(%arg0: i32) -> (i32, i32) {
    %c0_i32 = arith.constant 0 : i32
    %c0_i32_0 = arith.constant 0 : i32
    return %arg0, %c0_i32 : i32, i32
  }
}

module attributes {stable_mosaic.version = 11 : i64} {
  func.func @_mlp_head_kernel(%arg0: memref<2x2048xbf16, #tpu.memory_space<vmem>>, %arg1: memref<2048x128xbf16, #tpu.memory_space<vmem>>, %arg2: memref<1x128xf32, #tpu.memory_space<vmem>>, %arg3: memref<128x128xbf16, #tpu.memory_space<vmem>>, %arg4: memref<1x128xf32, #tpu.memory_space<vmem>>, %arg5: memref<128x4xbf16, #tpu.memory_space<vmem>>, %arg6: memref<1x4xf32, #tpu.memory_space<vmem>>, %arg7: memref<2x4xf32, #tpu.memory_space<vmem>>) attributes {dimension_semantics = [], scalar_prefetch = 0 : i64, scratch_operands = 0 : i64, tpu.core_type = #tpu.core_type<tc>} {
    %c0 = arith.constant 0 : index
    %c0_0 = arith.constant 0 : index
    %0 = vector.load %arg0[%c0, %c0_0] : memref<2x2048xbf16, #tpu.memory_space<vmem>>, vector<2x2048xbf16>
    %c0_1 = arith.constant 0 : index
    %c0_2 = arith.constant 0 : index
    %1 = vector.load %arg1[%c0_1, %c0_2] : memref<2048x128xbf16, #tpu.memory_space<vmem>>, vector<2048x128xbf16>
    %cst = arith.constant dense<0.000000e+00> : vector<2x128xf32>
    %2 = tpu.matmul %0, %1, %cst {dimension_numbers = #tpu.dot_dimension_numbers<[1], [0], [0], [1], [0, 0, 1, 1], [], []>} : vector<2x2048xbf16>, vector<2048x128xbf16>, vector<2x128xf32> -> vector<2x128xf32>
    %c0_3 = arith.constant 0 : index
    %c0_4 = arith.constant 0 : index
    %3 = vector.load %arg2[%c0_3, %c0_4] : memref<1x128xf32, #tpu.memory_space<vmem>>, vector<1x128xf32>
    %4 = vector.broadcast %3 : vector<1x128xf32> to vector<2x128xf32>
    %5 = arith.addf %2, %4 : vector<2x128xf32>
    %cst_5 = arith.constant 0.000000e+00 : f32
    %6 = vector.broadcast %cst_5 : f32 to vector<2x128xf32>
    %7 = arith.maximumf %5, %6 : vector<2x128xf32>
    %8 = arith.truncf %7 : vector<2x128xf32> to vector<2x128xbf16>
    %c0_6 = arith.constant 0 : index
    %c0_7 = arith.constant 0 : index
    %9 = vector.load %arg3[%c0_6, %c0_7] : memref<128x128xbf16, #tpu.memory_space<vmem>>, vector<128x128xbf16>
    %cst_8 = arith.constant dense<0.000000e+00> : vector<2x128xf32>
    %10 = tpu.matmul %8, %9, %cst_8 {dimension_numbers = #tpu.dot_dimension_numbers<[1], [0], [0], [1], [0, 0, 1, 1], [], []>} : vector<2x128xbf16>, vector<128x128xbf16>, vector<2x128xf32> -> vector<2x128xf32>
    %c0_9 = arith.constant 0 : index
    %c0_10 = arith.constant 0 : index
    %11 = vector.load %arg4[%c0_9, %c0_10] : memref<1x128xf32, #tpu.memory_space<vmem>>, vector<1x128xf32>
    %12 = vector.broadcast %11 : vector<1x128xf32> to vector<2x128xf32>
    %13 = arith.addf %10, %12 : vector<2x128xf32>
    %cst_11 = arith.constant 0.000000e+00 : f32
    %14 = vector.broadcast %cst_11 : f32 to vector<2x128xf32>
    %15 = arith.maximumf %13, %14 : vector<2x128xf32>
    %16 = arith.truncf %15 : vector<2x128xf32> to vector<2x128xbf16>
    %c0_12 = arith.constant 0 : index
    %c0_13 = arith.constant 0 : index
    %17 = vector.load %arg5[%c0_12, %c0_13] : memref<128x4xbf16, #tpu.memory_space<vmem>>, vector<128x4xbf16>
    %cst_14 = arith.constant dense<0.000000e+00> : vector<2x4xf32>
    %18 = tpu.matmul %16, %17, %cst_14 {dimension_numbers = #tpu.dot_dimension_numbers<[1], [0], [0], [1], [0, 0, 1, 1], [], []>} : vector<2x128xbf16>, vector<128x4xbf16>, vector<2x4xf32> -> vector<2x4xf32>
    %c0_15 = arith.constant 0 : index
    %c0_16 = arith.constant 0 : index
    %19 = vector.load %arg6[%c0_15, %c0_16] : memref<1x4xf32, #tpu.memory_space<vmem>>, vector<1x4xf32>
    %20 = vector.broadcast %19 : vector<1x4xf32> to vector<2x4xf32>
    %21 = arith.addf %18, %20 : vector<2x4xf32>
    %c0_17 = arith.constant 0 : index
    %c0_18 = arith.constant 0 : index
    %22 = vector.load %arg7[%c0_17, %c0_18] : memref<2x4xf32, #tpu.memory_space<vmem>>, vector<2x4xf32>
    tpu.vector_store %arg7[%c0_17, %c0_18], %21 {strides = array<i32>} : memref<2x4xf32, #tpu.memory_space<vmem>>, vector<2x4xf32>,
    return
  }
}

</mosaic_0001>

<llo_original>
// kernel: rnet_forward.5
$region0: #{rnet_forward.5}
  #allocation0 [shape = 'u32[]', space=smem, size = 0x4, offset = 0x4, fixed_abs, tag = 'smem constant byte address 0x4 - core index']
  #allocation1 [shape = 'u32[72,128]{1,0:T(1,128)}', space=vmem, size = 0x9000, scoped, tag = 'internal scratch']
  %s0 = inlined_call_operand.vmem [shape: bf16[2048,9], index: 0, kind: input, shape index: {}]
  %s1 = inlined_call_operand.vmem [shape: bf16[9,32], index: 1, kind: input, shape index: {}]
  %s2 = inlined_call_operand.vmem [shape: f32[1,32], index: 2, kind: input, shape index: {}]
  %s3 = inlined_call_operand.vmem [shape: bf16[2048,32], index: 3, kind: output, shape index: {}]
  %s4 = sld [smem:[#allocation0]]
  $region45: #{rnet_forward.5} parent=0
    _
  %s6 = ssub.s32 1, %s4
  %s7 = scalar_select 0, %s6, %s4
  loop: start=0, step=1, limit=4
  $region2: #{rnet_forward.5} parent=0 // loop_pre_header
    _
  $region3: #{rnet_forward.5} parent=0 // loop_header
    %s9 = sphi 0, %s13
    %p10 = scmp.ge.s32.totalorder %s9, 4
    %s19 = sphi 0, %s21
    %s22 = sphi 0, %s19
    %s23 = sphi 0, %s22
    %s39 = sphi 0, %s23
    %s43 = sphi 0, %s43
    %s45 = sphi 0, %s43
    %s46 = sphi 0, %s45
    %s60 = sphi 0, %s46
    %s64 = sphi 0, %s64
    %s66 = sphi 0, %s64
    %s67 = sphi 0, %s66
    %s81 = sphi 0, %s67
    %s87 = sphi 0, %s89
    %s90 = sphi 0, %s87
    %s91 = sphi 0, %s90
    %s107 = sphi 0, %s91
  $region4: #{rnet_forward.5} parent=0 // loop_header_branch
    %12 = sbr.rel (%p10) target = $region8
  $region5: #{rnet_forward.5} parent=0 // loop_body
    %s14 = ssub.s32 %s9, 1
    %s15 = ssub.s32 %s9, 2
    %s16 = sadd.s32 %s9, 1
    %s17 = ssub.s32 %s9, %s16
    %p18 = scmp.eq.s32.totalorder %s17, 0
    %s20 = sadd.s32 %s19, 1
    %s21 = scalar_select %p18, %s19, %s20
    %p24 = pneg %p18
    %p25 = scmp.eq.s32.totalorder %s9, 1
    %p26 = por %p24, %p25
    %p27 = scmp.ne.s32.totalorder %s19, %s22
    %p28 = scmp.eq.s32.totalorder %s9, 0
    %p29 = por %p27, %p28
    %p30 = scmp.ne.s32.totalorder %s19, %s22
    %p31 = scmp.eq.s32.totalorder %s14, 1
    %p32 = por %p30, %p31
    %p33 = scmp.ne.s32.totalorder %s22, %s23
    %p34 = scmp.eq.s32.totalorder %s14, 0
    %p35 = por %p33, %p34
    %p36 = scmp.ne.s32.totalorder %s22, %s23
    %p37 = scmp.eq.s32.totalorder %s15, 1
    %p38 = por %p36, %p37
    %p40 = scmp.ne.s32.totalorder %s23, %s39
    %p41 = scmp.eq.s32.totalorder %s15, 0
    %p42 = por %p40, %p41
    %s44 = sadd.s32 %s43, 1
    %p47 = scmp.eq.s32.totalorder %s9, 1
    %p48 = scmp.ne.s32.totalorder %s43, %s45
    %p49 = scmp.eq.s32.totalorder %s9, 0
    %p50 = por %p48, %p49
    %p51 = scmp.ne.s32.totalorder %s43, %s45
    %p52 = scmp.eq.s32.totalorder %s14, 1
    %p53 = por %p51, %p52
    %p54 = scmp.ne.s32.totalorder %s45, %s46
    %p55 = scmp.eq.s32.totalorder %s14, 0
    %p56 = por %p54, %p55
    %p57 = scmp.ne.s32.totalorder %s45, %s46
    %p58 = scmp.eq.s32.totalorder %s15, 1
    %p59 = por %p57, %p58
    %p61 = scmp.ne.s32.totalorder %s46, %s60
    %p62 = scmp.eq.s32.totalorder %s15, 0
    %p63 = por %p61, %p62
    %s65 = sadd.s32 %s64, 1
    %p68 = scmp.eq.s32.totalorder %s9, 1
    %p69 = scmp.ne.s32.totalorder %s64, %s66
    %p70 = scmp.eq.s32.totalorder %s9, 0
    %p71 = por %p69, %p70
    %p72 = scmp.ne.s32.totalorder %s64, %s66
    %p73 = scmp.eq.s32.totalorder %s14, 1
    %p74 = por %p72, %p73
    %p75 = scmp.ne.s32.totalorder %s66, %s67
    %p76 = scmp.eq.s32.totalorder %s14, 0
    %p77 = por %p75, %p76
    %p78 = scmp.ne.s32.totalorder %s66, %s67
    %p79 = scmp.eq.s32.totalorder %s15, 1
    %p80 = por %p78, %p79
    %p82 = scmp.ne.s32.totalorder %s67, %s81
    %p83 = scmp.eq.s32.totalorder %s15, 0
    %p84 = por %p82, %p83
    %s85 = ssub.s32 %s9, %s16
    %p86 = scmp.eq.s32.totalorder %s85, 0
    %s88 = sadd.s32 %s87, 1
    %s89 = scalar_select %p86, %s87, %s88
    %p92 = pneg %p86
    %p93 = scmp.eq.s32.totalorder %s9, 1
    %p94 = por %p92, %p93
    %p95 = scmp.ne.s32.totalorder %s87, %s90
    %p96 = scmp.eq.s32.totalorder %s9, 0
    %p97 = por %p95, %p96
    %p98 = scmp.ne.s32.totalorder %s87, %s90
    %p99 = scmp.eq.s32.totalorder %s14, 1
    %p100 = por %p98, %p99
    %p101 = scmp.ne.s32.totalorder %s90, %s91
    %p102 = scmp.eq.s32.totalorder %s14, 0
    %p103 = por %p101, %p102
    %p104 = scmp.ne.s32.totalorder %s90, %s91
    %p105 = scmp.eq.s32.totalorder %s15, 1
    %p106 = por %p104, %p105
    %p108 = scmp.ne.s32.totalorder %s91, %s107
    %p109 = scmp.eq.s32.totalorder %s15, 0
    %p110 = por %p108, %p109
    %p111 = scmp.le.s32.totalorder 1, %s9
    %p112 = scmp.lt.s32.totalorder %s9, 3
    %p113 = pnand %p111, %p112
    %p114 = pneg %p113
    // Predicated region
    $region9: #{rnet_forward.5} parent=5 // pred_check
      _
    $region10: #{rnet_forward.5} parent=5 // pred_check_branch
      %116 = sbr.rel (%p113) target = $region12
    $region11: #{rnet_forward.5} parent=5 // pred_region
      %s117 = ssub.s32 %s9, 1
      // Predicated region
      $region13: #{rnet_forward.5} parent=11 // pred_check
        %p118 = pneg %p56
      $region14: #{rnet_forward.5} parent=11 // pred_check_branch
        %120 = sbr.rel (%p118) target = $region16
      $region15: #{rnet_forward.5} parent=11 // pred_region
        _
      $region16: #{rnet_forward.5} parent=11 // pred_fallthru
        _
      // Predicated region
      $region17: #{rnet_forward.5} parent=11 // pred_check
        %p121 = pneg %p77
      $region18: #{rnet_forward.5} parent=11 // pred_check_branch
        %123 = sbr.rel (%p121) target = $region20
      $region19: #{rnet_forward.5} parent=11 // pred_region
        _
      $region20: #{rnet_forward.5} parent=11 // pred_fallthru
        _
    $region12: #{rnet_forward.5} parent=5 // pred_fallthru
      _
    %p124 = scmp.lt.s32.totalorder %s9, 2
    // Predicated region
    $region21: #{rnet_forward.5} parent=5 // pred_check
      %p125 = pneg %p124
    $region22: #{rnet_forward.5} parent=5 // pred_check_branch
      %127 = sbr.rel (%p125) target = $region24
    $region23: #{rnet_forward.5} parent=5 // pred_region
      // Predicated region
      $region25: #{rnet_forward.5} parent=23 // pred_check
        %p128 = pneg %p29
      $region26: #{rnet_forward.5} parent=23 // pred_check_branch
        %130 = sbr.rel (%p128) target = $region28
      $region27: #{rnet_forward.5} parent=23 // pred_region
        %s131 = smul.u32 128, %s9
        %p132 = scmp.lt.s32.totalorder %s131, 255
        %s133 = scalar_select %p132, %s131, 255
        %s134 = smul.addr %s133, 4
        %s135 = scalar_lea.vmem %s0, %s134
        %s136 = smul.u32 128, %s9
      $region28: #{rnet_forward.5} parent=23 // pred_fallthru
        _
    $region24: #{rnet_forward.5} parent=5 // pred_fallthru
      _
    %p137 = scmp.le.s32.totalorder 1, %s9
    %p138 = scmp.lt.s32.totalorder %s9, 3
    %p139 = pnand %p137, %p138
    %p140 = pneg %p139
    // Predicated region
    $region29: #{rnet_forward.5} parent=5 // pred_check
      _
    $region30: #{rnet_forward.5} parent=5 // pred_check_branch
      %142 = sbr.rel (%p139) target = $region32
    $region31: #{rnet_forward.5} parent=5 // pred_region
      %s143 = ssub.s32 %s9, 1
      %s144 = smul.u32 128, %s14
      %p145 = scmp.lt.s32.totalorder %s144, 255
      %s146 = scalar_select %p145, %s144, 255
      %s147 = smul.addr %s146, 4
      %s148 = scalar_lea.vmem %s0, %s147
      %p149 = pneg %p35
      %p150 = pneg %p32
      %p151 = pneg %p56
      %p152 = pneg %p53
      %p153 = pneg %p77
      %p154 = pneg %p74
      %p155 = pneg %p103
      %p156 = pneg %p100
      %s157 = smul.u32 128, %s14
      %p158 = scmp.lt.s32.totalorder %s157, 255
      %s159 = scalar_select %p158, %s157, 255
      %s160 = smul.addr %s159, 4
      %s161 = scalar_lea.vmem %s3, %s160
      %s162 = smul.u32 128, %s14
      %p163 = scmp.lt.s32.totalorder %s162, 255
      %s164 = scalar_select %p163, %s162, 255
      %s165 = smul.addr %s164, 4
      %s166 = scalar_lea.vmem %s0, %s165
      %s167 = smul.u32 128, %s14
      %s168 = smul.u32 128, %s14
      %p169 = scmp.lt.s32.totalorder %s168, 255
      %s170 = scalar_select %p169, %s168, 255
      %s171 = smul.addr %s170, 4
      %s172 = scalar_lea.vmem %s3, %s171
      %s173 = smul.u32 128, %s14
      %v175 = vld [vmem:[%s166] sm:$0xf]
      %v176 = vld [vmem:[%s166 + $0x4] sm:$0xf]
      %v177 = vld [vmem:[%s166 + $0x8] sm:$0xf]
      %v178 = vld [vmem:[%s166 + $0xc] sm:$0xf]
      %v179 = vld [vmem:[%s166 + $0x10] sm:$0xf]
      %v180 = vld [vmem:[%s166 + $0x14] sm:$0xf]
      %v181 = vld [vmem:[%s166 + $0x18] sm:$0xf]
      %v182 = vld [vmem:[%s166 + $0x1c] sm:$0xf]
      %v183 = vld [vmem:[%s166 + $0x20] sm:$0xf]
      %v184 = vld [vmem:[%s166 + $0x24] sm:$0xf]
      %v185 = vld [vmem:[%s166 + $0x28] sm:$0xf]
      %v186 = vld [vmem:[%s166 + $0x2c] sm:$0xf]
      %v187 = vld [vmem:[%s166 + $0x30] sm:$0xf]
      %v188 = vld [vmem:[%s166 + $0x34] sm:$0xf]
      %v189 = vld [vmem:[%s166 + $0x38] sm:$0xf]
      %v190 = vld [vmem:[%s166 + $0x3c] sm:$0xf]
      %v191 = vld [vmem:[%s166 + $0x40] sm:$0xf]
      %v192 = vld [vmem:[%s166 + $0x44] sm:$0xf]
      %v193 = vld [vmem:[%s166 + $0x48] sm:$0xf]
      %v194 = vld [vmem:[%s166 + $0x4c] sm:$0xf]
      %v195 = vld [vmem:[%s166 + $0x50] sm:$0xf]
      %v196 = vld [vmem:[%s166 + $0x54] sm:$0xf]
      %v197 = vld [vmem:[%s166 + $0x58] sm:$0xf]
      %v198 = vld [vmem:[%s166 + $0x5c] sm:$0xf]
      %v199 = vld [vmem:[%s166 + $0x60] sm:$0xf]
      %v200 = vld [vmem:[%s166 + $0x64] sm:$0xf]
      %v201 = vld [vmem:[%s166 + $0x68] sm:$0xf]
      %v202 = vld [vmem:[%s166 + $0x6c] sm:$0xf]
      %v203 = vld [vmem:[%s166 + $0x70] sm:$0xf]
      %v204 = vld [vmem:[%s166 + $0x74] sm:$0xf]
      %v205 = vld [vmem:[%s166 + $0x78] sm:$0xf]
      %v206 = vld [vmem:[%s166 + $0x7c] sm:$0xf]
      %v207 = vld [vmem:[%s166 + $0x80] sm:$0xf]
      %v208 = vld [vmem:[%s166 + $0x84] sm:$0xf]
      %v209 = vld [vmem:[%s166 + $0x88] sm:$0xf]
      %v210 = vld [vmem:[%s166 + $0x8c] sm:$0xf]
      %v211 = vld [vmem:[%s166 + $0x90] sm:$0xf]
      %v212 = vld [vmem:[%s166 + $0x94] sm:$0xf]
      %v213 = vld [vmem:[%s166 + $0x98] sm:$0xf]
      %v214 = vld [vmem:[%s166 + $0x9c] sm:$0xf]
      %v215 = vld [vmem:[%s166 + $0xa0] sm:$0xf]
      %v216 = vld [vmem:[%s166 + $0xa4] sm:$0xf]
      %v217 = vld [vmem:[%s166 + $0xa8] sm:$0xf]
      %v218 = vld [vmem:[%s166 + $0xac] sm:$0xf]
      %v219 = vld [vmem:[%s166 + $0xb0] sm:$0xf]
      %v220 = vld [vmem:[%s166 + $0xb4] sm:$0xf]
      %v221 = vld [vmem:[%s166 + $0xb8] sm:$0xf]
      %v222 = vld [vmem:[%s166 + $0xbc] sm:$0xf]
      %v223 = vld [vmem:[%s166 + $0xc0] sm:$0xf]
      %v224 = vld [vmem:[%s166 + $0xc4] sm:$0xf]
      %v225 = vld [vmem:[%s166 + $0xc8] sm:$0xf]
      %v226 = vld [vmem:[%s166 + $0xcc] sm:$0xf]
      %v227 = vld [vmem:[%s166 + $0xd0] sm:$0xf]
      %v228 = vld [vmem:[%s166 + $0xd4] sm:$0xf]
      %v229 = vld [vmem:[%s166 + $0xd8] sm:$0xf]
      %v230 = vld [vmem:[%s166 + $0xdc] sm:$0xf]
      %v231 = vld [vmem:[%s166 + $0xe0] sm:$0xf]
      %v232 = vld [vmem:[%s166 + $0xe4] sm:$0xf]
      %v233 = vld [vmem:[%s166 + $0xe8] sm:$0xf]
      %v234 = vld [vmem:[%s166 + $0xec] sm:$0xf]
      %v235 = vld [vmem:[%s166 + $0xf0] sm:$0xf]
      %v236 = vld [vmem:[%s166 + $0xf4] sm:$0xf]
      %v237 = vld [vmem:[%s166 + $0xf8] sm:$0xf]
      %v238 = vld [vmem:[%s166 + $0xfc] sm:$0xf]
      %v239 = vld [vmem:[%s166 + $0x100] sm:$0xf]
      %v240 = vld [vmem:[%s166 + $0x104] sm:$0xf]
      %v241 = vld [vmem:[%s166 + $0x108] sm:$0xf]
      %v242 = vld [vmem:[%s166 + $0x10c] sm:$0xf]
      %v243 = vld [vmem:[%s166 + $0x110] sm:$0xf]
      %v244 = vld [vmem:[%s166 + $0x114] sm:$0xf]
      %v245 = vld [vmem:[%s166 + $0x118] sm:$0xf]
      %v246 = vld [vmem:[%s166 + $0x11c] sm:$0xf]
      %v247 = vld [vmem:[%s166 + $0x120] sm:$0xf]
      %v248 = vld [vmem:[%s166 + $0x124] sm:$0xf]
      %v249 = vld [vmem:[%s166 + $0x128] sm:$0xf]
      %v250 = vld [vmem:[%s166 + $0x12c] sm:$0xf]
      %v251 = vld [vmem:[%s166 + $0x130] sm:$0xf]
      %v252 = vld [vmem:[%s166 + $0x134] sm:$0xf]
      %v253 = vld [vmem:[%s166 + $0x138] sm:$0xf]
      %v254 = vld [vmem:[%s166 + $0x13c] sm:$0xf]
      %v255 = vld [vmem:[%s166 + $0x140] sm:$0xf]
      %v256 = vld [vmem:[%s166 + $0x144] sm:$0xf]
      %v257 = vld [vmem:[%s166 + $0x148] sm:$0xf]
      %v258 = vld [vmem:[%s166 + $0x14c] sm:$0xf]
      %v259 = vld [vmem:[%s166 + $0x150] sm:$0xf]
      %v260 = vld [vmem:[%s166 + $0x154] sm:$0xf]
      %v261 = vld [vmem:[%s166 + $0x158] sm:$0xf]
      %v262 = vld [vmem:[%s166 + $0x15c] sm:$0xf]
      %v263 = vld [vmem:[%s166 + $0x160] sm:$0xf]
      %v264 = vld [vmem:[%s166 + $0x164] sm:$0xf]
      %v265 = vld [vmem:[%s166 + $0x168] sm:$0xf]
      %v266 = vld [vmem:[%s166 + $0x16c] sm:$0xf]
      %v267 = vld [vmem:[%s166 + $0x170] sm:$0xf]
      %v268 = vld [vmem:[%s166 + $0x174] sm:$0xf]
      %v269 = vld [vmem:[%s166 + $0x178] sm:$0xf]
      %v270 = vld [vmem:[%s166 + $0x17c] sm:$0xf]
      %v271 = vld [vmem:[%s166 + $0x180] sm:$0xf]
      %v272 = vld [vmem:[%s166 + $0x184] sm:$0xf]
      %v273 = vld [vmem:[%s166 + $0x188] sm:$0xf]
      %v274 = vld [vmem:[%s166 + $0x18c] sm:$0xf]
      %v275 = vld [vmem:[%s166 + $0x190] sm:$0xf]
      %v276 = vld [vmem:[%s166 + $0x194] sm:$0xf]
      %v277 = vld [vmem:[%s166 + $0x198] sm:$0xf]
      %v278 = vld [vmem:[%s166 + $0x19c] sm:$0xf]
      %v279 = vld [vmem:[%s166 + $0x1a0] sm:$0xf]
      %v280 = vld [vmem:[%s166 + $0x1a4] sm:$0xf]
      %v281 = vld [vmem:[%s166 + $0x1a8] sm:$0xf]
      %v282 = vld [vmem:[%s166 + $0x1ac] sm:$0xf]
      %v283 = vld [vmem:[%s166 + $0x1b0] sm:$0xf]
      %v284 = vld [vmem:[%s166 + $0x1b4] sm:$0xf]
      %v285 = vld [vmem:[%s166 + $0x1b8] sm:$0xf]
      %v286 = vld [vmem:[%s166 + $0x1bc] sm:$0xf]
      %v287 = vld [vmem:[%s166 + $0x1c0] sm:$0xf]
      %v288 = vld [vmem:[%s166 + $0x1c4] sm:$0xf]
      %v289 = vld [vmem:[%s166 + $0x1c8] sm:$0xf]
      %v290 = vld [vmem:[%s166 + $0x1cc] sm:$0xf]
      %v291 = vld [vmem:[%s166 + $0x1d0] sm:$0xf]
      %v292 = vld [vmem:[%s166 + $0x1d4] sm:$0xf]
      %v293 = vld [vmem:[%s166 + $0x1d8] sm:$0xf]
      %v294 = vld [vmem:[%s166 + $0x1dc] sm:$0xf]
      %v295 = vld [vmem:[%s166 + $0x1e0] sm:$0xf]
      %v296 = vld [vmem:[%s166 + $0x1e4] sm:$0xf]
      %v297 = vld [vmem:[%s166 + $0x1e8] sm:$0xf]
      %v298 = vld [vmem:[%s166 + $0x1ec] sm:$0xf]
      %v299 = vld [vmem:[%s166 + $0x1f0] sm:$0xf]
      %v300 = vld [vmem:[%s166 + $0x1f4] sm:$0xf]
      %v301 = vld [vmem:[%s166 + $0x1f8] sm:$0xf]
      %v302 = vld [vmem:[%s166 + $0x1fc] sm:$0xf]
      %v303 = vld [vmem:[%s1] sm:$0xf]
      %v304 = vld [vmem:[%s1 + $0x4] sm:$0x1]
      %v305 = vld [vmem:[%s2] sm:$0x1]
      %v307 = vperm.slane %v305, 0
      %v437 = vunpack.c.l.b16 %v175
      %v438 = vunpack.c.l.b16 %v176
      %v439 = vunpack.c.l.b16 %v177
      %v440 = vunpack.c.l.b16 %v178
      %v441 = vunpack.c.l.b16 %v179
      %v442 = vunpack.c.l.b16 %v180
      %v443 = vunpack.c.l.b16 %v181
      %v444 = vunpack.c.l.b16 %v182
      %v445 = vunpack.c.l.b16 %v183
      %v446 = vunpack.c.l.b16 %v184
      %v447 = vunpack.c.l.b16 %v185
      %v448 = vunpack.c.l.b16 %v186
      %v449 = vunpack.c.l.b16 %v187
      %v450 = vunpack.c.l.b16 %v188
      %v451 = vunpack.c.l.b16 %v189
      %v452 = vunpack.c.l.b16 %v190
      %v453 = vunpack.c.l.b16 %v191
      %v454 = vunpack.c.l.b16 %v192
      %v455 = vunpack.c.l.b16 %v193
      %v456 = vunpack.c.l.b16 %v194
      %v457 = vunpack.c.l.b16 %v195
      %v458 = vunpack.c.l.b16 %v196
      %v459 = vunpack.c.l.b16 %v197
      %v460 = vunpack.c.l.b16 %v198
      %v461 = vunpack.c.l.b16 %v199
      %v462 = vunpack.c.l.b16 %v200
      %v463 = vunpack.c.l.b16 %v201
      %v464 = vunpack.c.l.b16 %v202
      %v465 = vunpack.c.l.b16 %v203
      %v466 = vunpack.c.l.b16 %v204
      %v467 = vunpack.c.l.b16 %v205
      %v468 = vunpack.c.l.b16 %v206
      %v469 = vunpack.c.l.b16 %v207
      %v470 = vunpack.c.l.b16 %v208
      %v471 = vunpack.c.l.b16 %v209
      %v472 = vunpack.c.l.b16 %v210
      %v473 = vunpack.c.l.b16 %v211
      %v474 = vunpack.c.l.b16 %v212
      %v475 = vunpack.c.l.b16 %v213
      %v476 = vunpack.c.l.b16 %v214
      %v477 = vunpack.c.l.b16 %v215
      %v478 = vunpack.c.l.b16 %v216
      %v479 = vunpack.c.l.b16 %v217
      %v480 = vunpack.c.l.b16 %v218
      %v481 = vunpack.c.l.b16 %v219
      %v482 = vunpack.c.l.b16 %v220
      %v483 = vunpack.c.l.b16 %v221
      %v484 = vunpack.c.l.b16 %v222
      %v485 = vunpack.c.l.b16 %v223
      %v486 = vunpack.c.l.b16 %v224
      %v487 = vunpack.c.l.b16 %v225
      %v488 = vunpack.c.l.b16 %v226
      %v489 = vunpack.c.l.b16 %v227
      %v490 = vunpack.c.l.b16 %v228
      %v491 = vunpack.c.l.b16 %v229
      %v492 = vunpack.c.l.b16 %v230
      %v493 = vunpack.c.l.b16 %v231
      %v494 = vunpack.c.l.b16 %v232
      %v495 = vunpack.c.l.b16 %v233
      %v496 = vunpack.c.l.b16 %v234
      %v497 = vunpack.c.l.b16 %v235
      %v498 = vunpack.c.l.b16 %v236
      %v499 = vunpack.c.l.b16 %v237
      %v500 = vunpack.c.l.b16 %v238
      %v501 = vunpack.c.l.b16 %v239
      %v502 = vunpack.c.l.b16 %v240
      %v503 = vunpack.c.l.b16 %v241
      %v504 = vunpack.c.l.b16 %v242
      %v505 = vunpack.c.l.b16 %v243
      %v506 = vunpack.c.l.b16 %v244
      %v507 = vunpack.c.l.b16 %v245
      %v508 = vunpack.c.l.b16 %v246
      %v509 = vunpack.c.l.b16 %v247
      %v510 = vunpack.c.l.b16 %v248
      %v511 = vunpack.c.l.b16 %v249
      %v512 = vunpack.c.l.b16 %v250
      %v513 = vunpack.c.l.b16 %v251
      %v514 = vunpack.c.l.b16 %v252
      %v515 = vunpack.c.l.b16 %v253
      %v516 = vunpack.c.l.b16 %v254
      %v517 = vunpack.c.l.b16 %v255
      %v518 = vunpack.c.l.b16 %v256
      %v519 = vunpack.c.l.b16 %v257
      %v520 = vunpack.c.l.b16 %v258
      %v521 = vunpack.c.l.b16 %v259
      %v522 = vunpack.c.l.b16 %v260
      %v523 = vunpack.c.l.b16 %v261
      %v524 = vunpack.c.l.b16 %v262
      %v525 = vunpack.c.l.b16 %v263
      %v526 = vunpack.c.l.b16 %v264
      %v527 = vunpack.c.l.b16 %v265
      %v528 = vunpack.c.l.b16 %v266
      %v529 = vunpack.c.l.b16 %v267
      %v530 = vunpack.c.l.b16 %v268
      %v531 = vunpack.c.l.b16 %v269
      %v532 = vunpack.c.l.b16 %v270
      %v533 = vunpack.c.l.b16 %v271
      %v534 = vunpack.c.l.b16 %v272
      %v535 = vunpack.c.l.b16 %v273
      %v536 = vunpack.c.l.b16 %v274
      %v537 = vunpack.c.l.b16 %v275
      %v538 = vunpack.c.l.b16 %v276
      %v539 = vunpack.c.l.b16 %v277
      %v540 = vunpack.c.l.b16 %v278
      %v541 = vunpack.c.l.b16 %v279
      %v542 = vunpack.c.l.b16 %v280
      %v543 = vunpack.c.l.b16 %v281
      %v544 = vunpack.c.l.b16 %v282
      %v545 = vunpack.c.l.b16 %v283
      %v546 = vunpack.c.l.b16 %v284
      %v547 = vunpack.c.l.b16 %v285
      %v548 = vunpack.c.l.b16 %v286
      %v549 = vunpack.c.l.b16 %v287
      %v550 = vunpack.c.l.b16 %v288
      %v551 = vunpack.c.l.b16 %v289
      %v552 = vunpack.c.l.b16 %v290
      %v553 = vunpack.c.l.b16 %v291
      %v554 = vunpack.c.l.b16 %v292
      %v555 = vunpack.c.l.b16 %v293
      %v556 = vunpack.c.l.b16 %v294
      %v557 = vunpack.c.l.b16 %v295
      %v558 = vunpack.c.l.b16 %v296
      %v559 = vunpack.c.l.b16 %v297
      %v560 = vunpack.c.l.b16 %v298
      %v561 = vunpack.c.l.b16 %v299
      %v562 = vunpack.c.l.b16 %v300
      %v563 = vunpack.c.l.b16 %v301
      %v564 = vunpack.c.l.b16 %v302
      %v565 = vpack.c.b16 %v438, %v437
      %v566 = vpack.c.b16 %v440, %v439
      %v567 = vpack.c.b16 %v442, %v441
      %v568 = vpack.c.b16 %v444, %v443
      %v569 = vpack.c.b16 %v446, %v445
      %v570 = vpack.c.b16 %v448, %v447
      %v571 = vpack.c.b16 %v450, %v449
      %v572 = vpack.c.b16 %v452, %v451
      %v573 = vpack.c.b16 %v454, %v453
      %v574 = vpack.c.b16 %v456, %v455
      %v575 = vpack.c.b16 %v458, %v457
      %v576 = vpack.c.b16 %v460, %v459
      %v577 = vpack.c.b16 %v462, %v461
      %v578 = vpack.c.b16 %v464, %v463
      %v579 = vpack.c.b16 %v466, %v465
      %v580 = vpack.c.b16 %v468, %v467
      %v581 = vpack.c.b16 %v470, %v469
      %v582 = vpack.c.b16 %v472, %v471
      %v583 = vpack.c.b16 %v474, %v473
      %v584 = vpack.c.b16 %v476, %v475
      %v585 = vpack.c.b16 %v478, %v477
      %v586 = vpack.c.b16 %v480, %v479
      %v587 = vpack.c.b16 %v482, %v481
      %v588 = vpack.c.b16 %v484, %v483
      %v589 = vpack.c.b16 %v486, %v485
      %v590 = vpack.c.b16 %v488, %v487
      %v591 = vpack.c.b16 %v490, %v489
      %v592 = vpack.c.b16 %v492, %v491
      %v593 = vpack.c.b16 %v494, %v493
      %v594 = vpack.c.b16 %v496, %v495
      %v595 = vpack.c.b16 %v498, %v497
      %v596 = vpack.c.b16 %v500, %v499
      %v597 = vpack.c.b16 %v502, %v501
      %v598 = vpack.c.b16 %v504, %v503
      %v599 = vpack.c.b16 %v506, %v505
      %v600 = vpack.c.b16 %v508, %v507
      %v601 = vpack.c.b16 %v510, %v509
      %v602 = vpack.c.b16 %v512, %v511
      %v603 = vpack.c.b16 %v514, %v513
      %v604 = vpack.c.b16 %v516, %v515
      %v605 = vpack.c.b16 %v518, %v517
      %v606 = vpack.c.b16 %v520, %v519
      %v607 = vpack.c.b16 %v522, %v521
      %v608 = vpack.c.b16 %v524, %v523
      %v609 = vpack.c.b16 %v526, %v525
      %v610 = vpack.c.b16 %v528, %v527
      %v611 = vpack.c.b16 %v530, %v529
      %v612 = vpack.c.b16 %v532, %v531
      %v613 = vpack.c.b16 %v534, %v533
      %v614 = vpack.c.b16 %v536, %v535
      %v615 = vpack.c.b16 %v538, %v537
      %v616 = vpack.c.b16 %v540, %v539
      %v617 = vpack.c.b16 %v542, %v541
      %v618 = vpack.c.b16 %v544, %v543
      %v619 = vpack.c.b16 %v546, %v545
      %v620 = vpack.c.b16 %v548, %v547
      %v621 = vpack.c.b16 %v550, %v549
      %v622 = vpack.c.b16 %v552, %v551
      %v623 = vpack.c.b16 %v554, %v553
      %v624 = vpack.c.b16 %v556, %v555
      %v625 = vpack.c.b16 %v558, %v557
      %v626 = vpack.c.b16 %v560, %v559
      %v627 = vpack.c.b16 %v562, %v561
      %v628 = vpack.c.b16 %v564, %v563
      %v631 = vunpack.c.l.b16 %v303
      %v632 = vunpack.c.l.b16 %v304
      %v633 = vpack.c.b16 %v632, %v631
      %vm634 = vcmask 72704
      %v636 = vsel %vm634, %v565, 0
      %v639 = vsel %vm634, %v566, 0
      %v642 = vsel %vm634, %v567, 0
      %v645 = vsel %vm634, %v568, 0
      %v648 = vsel %vm634, %v569, 0
      %v651 = vsel %vm634, %v570, 0
      %v654 = vsel %vm634, %v571, 0
      %v657 = vsel %vm634, %v572, 0
      %v660 = vsel %vm634, %v573, 0
      %v663 = vsel %vm634, %v574, 0
      %v666 = vsel %vm634, %v575, 0
      %v669 = vsel %vm634, %v576, 0
      %v672 = vsel %vm634, %v577, 0
      %v675 = vsel %vm634, %v578, 0
      %v678 = vsel %vm634, %v579, 0
      %v681 = vsel %vm634, %v580, 0
      %v684 = vsel %vm634, %v581, 0
      %v687 = vsel %vm634, %v582, 0
      %v690 = vsel %vm634, %v583, 0
      %v693 = vsel %vm634, %v584, 0
      %v696 = vsel %vm634, %v585, 0
      %v699 = vsel %vm634, %v586, 0
      %v702 = vsel %vm634, %v587, 0
      %v705 = vsel %vm634, %v588, 0
      %v708 = vsel %vm634, %v589, 0
      %v711 = vsel %vm634, %v590, 0
      %v714 = vsel %vm634, %v591, 0
      %v717 = vsel %vm634, %v592, 0
      %v720 = vsel %vm634, %v593, 0
      %v723 = vsel %vm634, %v594, 0
      %v726 = vsel %vm634, %v595, 0
      %v729 = vsel %vm634, %v596, 0
      %v732 = vsel %vm634, %v597, 0
      %v735 = vsel %vm634, %v598, 0
      %v738 = vsel %vm634, %v599, 0
      %v741 = vsel %vm634, %v600, 0
      %v744 = vsel %vm634, %v601, 0
      %v747 = vsel %vm634, %v602, 0
      %v750 = vsel %vm634, %v603, 0
      %v753 = vsel %vm634, %v604, 0
      %v756 = vsel %vm634, %v605, 0
      %v759 = vsel %vm634, %v606, 0
      %v762 = vsel %vm634, %v607, 0
      %v765 = vsel %vm634, %v608, 0
      %v768 = vsel %vm634, %v609, 0
      %v771 = vsel %vm634, %v610, 0
      %v774 = vsel %vm634, %v611, 0
      %v777 = vsel %vm634, %v612, 0
      %v780 = vsel %vm634, %v613, 0
      %v783 = vsel %vm634, %v614, 0
      %v786 = vsel %vm634, %v615, 0
      %v789 = vsel %vm634, %v616, 0
      %v792 = vsel %vm634, %v617, 0
      %v795 = vsel %vm634, %v618, 0
      %v798 = vsel %vm634, %v619, 0
      %v801 = vsel %vm634, %v620, 0
      %v804 = vsel %vm634, %v621, 0
      %v807 = vsel %vm634, %v622, 0
      %v810 = vsel %vm634, %v623, 0
      %v813 = vsel %vm634, %v624, 0
      %v816 = vsel %vm634, %v625, 0
      %v819 = vsel %vm634, %v626, 0
      %v822 = vsel %vm634, %v627, 0
      %v825 = vsel %vm634, %v628, 0
      %vm827 = vcmask 1043456
      %vm828 = vcmask 1044480
      %v829 = vsel %vm827, 4294967295, 65535
      %v830 = vsel %vm828, %v829, 0
      %v832 = vand.u32 %v633, %v830
      %834 = vmatpush.bf16.msra.mxu0 0
      %835 = vmatpush.bf16.msra.mxu0 0
      %836 = vmatpush.bf16.msra.mxu0 0
      %837 = vmatpush.bf16.msra.mxu0 0
      %838 = vmatpush.bf16.msra.mxu0 0
      %839 = vmatpush.bf16.msra.mxu0 0
      %840 = vmatpush.bf16.msra.mxu0 0
      %841 = vmatpush.bf16.msra.mxu0 %v832
      %842 = vmatmul.bf16.gmra.mxu0 %v636
      %v843 = vpop.f32.mrf.mxu0
      %v844 = vadd.f32 %v307, %v843
      %v845 = vpop.f32.mrf.mxu0
      %v846 = vadd.f32 %v307, %v845
      %847 = vmatmul.bf16.gmra.mxu0 %v639
      %v848 = vpop.f32.mrf.mxu0
      %v849 = vadd.f32 %v307, %v848
      %v850 = vpop.f32.mrf.mxu0
      %v851 = vadd.f32 %v307, %v850
      %852 = vmatmul.bf16.gmra.mxu0 %v642
      %v853 = vpop.f32.mrf.mxu0
      %v854 = vadd.f32 %v307, %v853
      %v855 = vpop.f32.mrf.mxu0
      %v856 = vadd.f32 %v307, %v855
      %857 = vmatmul.bf16.gmra.mxu0 %v645
      %v858 = vpop.f32.mrf.mxu0
      %v859 = vadd.f32 %v307, %v858
      %v860 = vpop.f32.mrf.mxu0
      %v861 = vadd.f32 %v307, %v860
      %862 = vmatmul.bf16.gmra.mxu0 %v648
      %v863 = vpop.f32.mrf.mxu0
      %v864 = vadd.f32 %v307, %v863
      %v865 = vpop.f32.mrf.mxu0
      %v866 = vadd.f32 %v307, %v865
      %867 = vmatmul.bf16.gmra.mxu0 %v651
      %v868 = vpop.f32.mrf.mxu0
      %v869 = vadd.f32 %v307, %v868
      %v870 = vpop.f32.mrf.mxu0
      %v871 = vadd.f32 %v307, %v870
      %872 = vmatmul.bf16.gmra.mxu0 %v654
      %v873 = vpop.f32.mrf.mxu0
      %v874 = vadd.f32 %v307, %v873
      %v875 = vpop.f32.mrf.mxu0
      %v876 = vadd.f32 %v307, %v875
      %877 = vmatmul.bf16.gmra.mxu0 %v657
      %v878 = vpop.f32.mrf.mxu0
      %v879 = vadd.f32 %v307, %v878
      %v880 = vpop.f32.mrf.mxu0
      %v881 = vadd.f32 %v307, %v880
      %882 = vmatmul.bf16.gmra.mxu0 %v660
      %v883 = vpop.f32.mrf.mxu0
      %v884 = vadd.f32 %v307, %v883
      %v885 = vpop.f32.mrf.mxu0
      %v886 = vadd.f32 %v307, %v885
      %887 = vmatmul.bf16.gmra.mxu0 %v663
      %v888 = vpop.f32.mrf.mxu0
      %v889 = vadd.f32 %v307, %v888
      %v890 = vpop.f32.mrf.mxu0
      %v891 = vadd.f32 %v307, %v890
      %892 = vmatmul.bf16.gmra.mxu0 %v666
      %v893 = vpop.f32.mrf.mxu0
      %v894 = vadd.f32 %v307, %v893
      %v895 = vpop.f32.mrf.mxu0
      %v896 = vadd.f32 %v307, %v895
      %897 = vmatmul.bf16.gmra.mxu0 %v669
      %v898 = vpop.f32.mrf.mxu0
      %v899 = vadd.f32 %v307, %v898
      %v900 = vpop.f32.mrf.mxu0
      %v901 = vadd.f32 %v307, %v900
      %902 = vmatmul.bf16.gmra.mxu0 %v672
      %v903 = vpop.f32.mrf.mxu0
      %v904 = vadd.f32 %v307, %v903
      %v905 = vpop.f32.mrf.mxu0
      %v906 = vadd.f32 %v307, %v905
      %907 = vmatmul.bf16.gmra.mxu0 %v675
      %v908 = vpop.f32.mrf.mxu0
      %v909 = vadd.f32 %v307, %v908
      %v910 = vpop.f32.mrf.mxu0
      %v911 = vadd.f32 %v307, %v910
      %912 = vmatmul.bf16.gmra.mxu0 %v678
      %v913 = vpop.f32.mrf.mxu0
      %v914 = vadd.f32 %v307, %v913
      %v915 = vpop.f32.mrf.mxu0
      %v916 = vadd.f32 %v307, %v915
      %917 = vmatmul.bf16.gmra.mxu0 %v681
      %v918 = vpop.f32.mrf.mxu0
      %v919 = vadd.f32 %v307, %v918
      %v920 = vpop.f32.mrf.mxu0
      %v921 = vadd.f32 %v307, %v920
      %922 = vmatmul.bf16.gmra.mxu0 %v684
      %v923 = vpop.f32.mrf.mxu0
      %v924 = vadd.f32 %v307, %v923
      %v925 = vpop.f32.mrf.mxu0
      %v926 = vadd.f32 %v307, %v925
      %927 = vmatmul.bf16.gmra.mxu0 %v687
      %v928 = vpop.f32.mrf.mxu0
      %v929 = vadd.f32 %v307, %v928
      %v930 = vpop.f32.mrf.mxu0
      %v931 = vadd.f32 %v307, %v930
      %932 = vmatmul.bf16.gmra.mxu0 %v690
      %v933 = vpop.f32.mrf.mxu0
      %v934 = vadd.f32 %v307, %v933
      %v935 = vpop.f32.mrf.mxu0
      %v936 = vadd.f32 %v307, %v935
      %937 = vmatmul.bf16.gmra.mxu0 %v693
      %v938 = vpop.f32.mrf.mxu0
      %v939 = vadd.f32 %v307, %v938
      %v940 = vpop.f32.mrf.mxu0
      %v941 = vadd.f32 %v307, %v940
      %942 = vmatmul.bf16.gmra.mxu0 %v696
      %v943 = vpop.f32.mrf.mxu0
      %v944 = vadd.f32 %v307, %v943
      %v945 = vpop.f32.mrf.mxu0
      %v946 = vadd.f32 %v307, %v945
      %947 = vmatmul.bf16.gmra.mxu0 %v699
      %v948 = vpop.f32.mrf.mxu0
      %v949 = vadd.f32 %v307, %v948
      %v950 = vpop.f32.mrf.mxu0
      %v951 = vadd.f32 %v307, %v950
      %952 = vmatmul.bf16.gmra.mxu0 %v702
      %v953 = vpop.f32.mrf.mxu0
      %v954 = vadd.f32 %v307, %v953
      %v955 = vpop.f32.mrf.mxu0
      %v956 = vadd.f32 %v307, %v955
      %957 = vmatmul.bf16.gmra.mxu0 %v705
      %v958 = vpop.f32.mrf.mxu0
      %v959 = vadd.f32 %v307, %v958
      %v960 = vpop.f32.mrf.mxu0
      %v961 = vadd.f32 %v307, %v960
      %962 = vmatmul.bf16.gmra.mxu0 %v708
      %v963 = vpop.f32.mrf.mxu0
      %v964 = vadd.f32 %v307, %v963
      %v965 = vpop.f32.mrf.mxu0
      %v966 = vadd.f32 %v307, %v965
      %967 = vmatmul.bf16.gmra.mxu0 %v711
      %v968 = vpop.f32.mrf.mxu0
      %v969 = vadd.f32 %v307, %v968
      %v970 = vpop.f32.mrf.mxu0
      %v971 = vadd.f32 %v307, %v970
      %972 = vmatmul.bf16.gmra.mxu0 %v714
      %v973 = vpop.f32.mrf.mxu0
      %v974 = vadd.f32 %v307, %v973
      %v975 = vpop.f32.mrf.mxu0
      %v976 = vadd.f32 %v307, %v975
      %977 = vmatmul.bf16.gmra.mxu0 %v717
      %v978 = vpop.f32.mrf.mxu0
      %v979 = vadd.f32 %v307, %v978
      %v980 = vpop.f32.mrf.mxu0
      %v981 = vadd.f32 %v307, %v980
      %982 = vmatmul.bf16.gmra.mxu0 %v720
      %v983 = vpop.f32.mrf.mxu0
      %v984 = vadd.f32 %v307, %v983
      %v985 = vpop.f32.mrf.mxu0
      %v986 = vadd.f32 %v307, %v985
      %987 = vmatmul.bf16.gmra.mxu0 %v723
      %v988 = vpop.f32.mrf.mxu0
      %v989 = vadd.f32 %v307, %v988
      %v990 = vpop.f32.mrf.mxu0
      %v991 = vadd.f32 %v307, %v990
      %992 = vmatmul.bf16.gmra.mxu0 %v726
      %v993 = vpop.f32.mrf.mxu0
      %v994 = vadd.f32 %v307, %v993
      %v995 = vpop.f32.mrf.mxu0
      %v996 = vadd.f32 %v307, %v995
      %997 = vmatmul.bf16.gmra.mxu0 %v729
      %v998 = vpop.f32.mrf.mxu0
      %v999 = vadd.f32 %v307, %v998
      %v1000 = vpop.f32.mrf.mxu0
      %v1001 = vadd.f32 %v307, %v1000
      %1002 = vmatmul.bf16.gmra.mxu0 %v732
      %v1003 = vpop.f32.mrf.mxu0
      %v1004 = vadd.f32 %v307, %v1003
      %v1005 = vpop.f32.mrf.mxu0
      %v1006 = vadd.f32 %v307, %v1005
      %1007 = vmatmul.bf16.gmra.mxu0 %v735
      %v1008 = vpop.f32.mrf.mxu0
      %v1009 = vadd.f32 %v307, %v1008
      %v1010 = vpop.f32.mrf.mxu0
      %v1011 = vadd.f32 %v307, %v1010
      %1012 = vmatmul.bf16.gmra.mxu0 %v738
      %v1013 = vpop.f32.mrf.mxu0
      %v1014 = vadd.f32 %v307, %v1013
      %v1015 = vpop.f32.mrf.mxu0
      %v1016 = vadd.f32 %v307, %v1015
      %1017 = vmatmul.bf16.gmra.mxu0 %v741
      %v1018 = vpop.f32.mrf.mxu0
      %v1019 = vadd.f32 %v307, %v1018
      %v1020 = vpop.f32.mrf.mxu0
      %v1021 = vadd.f32 %v307, %v1020
      %1022 = vmatmul.bf16.gmra.mxu0 %v744
      %v1023 = vpop.f32.mrf.mxu0
      %v1024 = vadd.f32 %v307, %v1023
      %v1025 = vpop.f32.mrf.mxu0
      %v1026 = vadd.f32 %v307, %v1025
      %1027 = vmatmul.bf16.gmra.mxu0 %v747
      %v1028 = vpop.f32.mrf.mxu0
      %v1029 = vadd.f32 %v307, %v1028
      %v1030 = vpop.f32.mrf.mxu0
      %v1031 = vadd.f32 %v307, %v1030
      %1032 = vmatmul.bf16.gmra.mxu0 %v750
      %v1033 = vpop.f32.mrf.mxu0
      %v1034 = vadd.f32 %v307, %v1033
      %v1035 = vpop.f32.mrf.mxu0
      %v1036 = vadd.f32 %v307, %v1035
      %1037 = vmatmul.bf16.gmra.mxu0 %v753
      %v1038 = vpop.f32.mrf.mxu0
      %v1039 = vadd.f32 %v307, %v1038
      %v1040 = vpop.f32.mrf.mxu0
      %v1041 = vadd.f32 %v307, %v1040
      %1042 = vmatmul.bf16.gmra.mxu0 %v756
      %v1043 = vpop.f32.mrf.mxu0
      %v1044 = vadd.f32 %v307, %v1043
      %v1045 = vpop.f32.mrf.mxu0
      %v1046 = vadd.f32 %v307, %v1045
      %1047 = vmatmul.bf16.gmra.mxu0 %v759
      %v1048 = vpop.f32.mrf.mxu0
      %v1049 = vadd.f32 %v307, %v1048
      %v1050 = vpop.f32.mrf.mxu0
      %v1051 = vadd.f32 %v307, %v1050
      %1052 = vmatmul.bf16.gmra.mxu0 %v762
      %v1053 = vpop.f32.mrf.mxu0
      %v1054 = vadd.f32 %v307, %v1053
      %v1055 = vpop.f32.mrf.mxu0
      %v1056 = vadd.f32 %v307, %v1055
      %1057 = vmatmul.bf16.gmra.mxu0 %v765
      %v1058 = vpop.f32.mrf.mxu0
      %v1059 = vadd.f32 %v307, %v1058
      %v1060 = vpop.f32.mrf.mxu0
      %v1061 = vadd.f32 %v307, %v1060
      %1062 = vmatmul.bf16.gmra.mxu0 %v768
      %v1063 = vpop.f32.mrf.mxu0
      %v1064 = vadd.f32 %v307, %v1063
      %v1065 = vpop.f32.mrf.mxu0
      %v1066 = vadd.f32 %v307, %v1065
      %1067 = vmatmul.bf16.gmra.mxu0 %v771
      %v1068 = vpop.f32.mrf.mxu0
      %v1069 = vadd.f32 %v307, %v1068
      %v1070 = vpop.f32.mrf.mxu0
      %v1071 = vadd.f32 %v307, %v1070
      %1072 = vmatmul.bf16.gmra.mxu0 %v774
      %v1073 = vpop.f32.mrf.mxu0
      %v1074 = vadd.f32 %v307, %v1073
      %v1075 = vpop.f32.mrf.mxu0
      %v1076 = vadd.f32 %v307, %v1075
      %1077 = vmatmul.bf16.gmra.mxu0 %v777
      %v1078 = vpop.f32.mrf.mxu0
      %v1079 = vadd.f32 %v307, %v1078
      %v1080 = vpop.f32.mrf.mxu0
      %v1081 = vadd.f32 %v307, %v1080
      %1082 = vmatmul.bf16.gmra.mxu0 %v780
      %v1083 = vpop.f32.mrf.mxu0
      %v1084 = vadd.f32 %v307, %v1083
      %v1085 = vpop.f32.mrf.mxu0
      %v1086 = vadd.f32 %v307, %v1085
      %1087 = vmatmul.bf16.gmra.mxu0 %v783
      %v1088 = vpop.f32.mrf.mxu0
      %v1089 = vadd.f32 %v307, %v1088
      %v1090 = vpop.f32.mrf.mxu0
      %v1091 = vadd.f32 %v307, %v1090
      %1092 = vmatmul.bf16.gmra.mxu0 %v786
      %v1093 = vpop.f32.mrf.mxu0
      %v1094 = vadd.f32 %v307, %v1093
      %v1095 = vpop.f32.mrf.mxu0
      %v1096 = vadd.f32 %v307, %v1095
      %1097 = vmatmul.bf16.gmra.mxu0 %v789
      %v1098 = vpop.f32.mrf.mxu0
      %v1099 = vadd.f32 %v307, %v1098
      %v1100 = vpop.f32.mrf.mxu0
      %v1101 = vadd.f32 %v307, %v1100
      %1102 = vmatmul.bf16.gmra.mxu0 %v792
      %v1103 = vpop.f32.mrf.mxu0
      %v1104 = vadd.f32 %v307, %v1103
      %v1105 = vpop.f32.mrf.mxu0
      %v1106 = vadd.f32 %v307, %v1105
      %1107 = vmatmul.bf16.gmra.mxu0 %v795
      %v1108 = vpop.f32.mrf.mxu0
      %v1109 = vadd.f32 %v307, %v1108
      %v1110 = vpop.f32.mrf.mxu0
      %v1111 = vadd.f32 %v307, %v1110
      %1112 = vmatmul.bf16.gmra.mxu0 %v798
      %v1113 = vpop.f32.mrf.mxu0
      %v1114 = vadd.f32 %v307, %v1113
      %v1115 = vpop.f32.mrf.mxu0
      %v1116 = vadd.f32 %v307, %v1115
      %1117 = vmatmul.bf16.gmra.mxu0 %v801
      %v1118 = vpop.f32.mrf.mxu0
      %v1119 = vadd.f32 %v307, %v1118
      %v1120 = vpop.f32.mrf.mxu0
      %v1121 = vadd.f32 %v307, %v1120
      %1122 = vmatmul.bf16.gmra.mxu0 %v804
      %v1123 = vpop.f32.mrf.mxu0
      %v1124 = vadd.f32 %v307, %v1123
      %v1125 = vpop.f32.mrf.mxu0
      %v1126 = vadd.f32 %v307, %v1125
      %1127 = vmatmul.bf16.gmra.mxu0 %v807
      %v1128 = vpop.f32.mrf.mxu0
      %v1129 = vadd.f32 %v307, %v1128
      %v1130 = vpop.f32.mrf.mxu0
      %v1131 = vadd.f32 %v307, %v1130
      %1132 = vmatmul.bf16.gmra.mxu0 %v810
      %v1133 = vpop.f32.mrf.mxu0
      %v1134 = vadd.f32 %v307, %v1133
      %v1135 = vpop.f32.mrf.mxu0
      %v1136 = vadd.f32 %v307, %v1135
      %1137 = vmatmul.bf16.gmra.mxu0 %v813
      %v1138 = vpop.f32.mrf.mxu0
      %v1139 = vadd.f32 %v307, %v1138
      %v1140 = vpop.f32.mrf.mxu0
      %v1141 = vadd.f32 %v307, %v1140
      %1142 = vmatmul.bf16.gmra.mxu0 %v816
      %v1143 = vpop.f32.mrf.mxu0
      %v1144 = vadd.f32 %v307, %v1143
      %v1145 = vpop.f32.mrf.mxu0
      %v1146 = vadd.f32 %v307, %v1145
      %1147 = vmatmul.bf16.gmra.mxu0 %v819
      %v1148 = vpop.f32.mrf.mxu0
      %v1149 = vadd.f32 %v307, %v1148
      %v1150 = vpop.f32.mrf.mxu0
      %v1151 = vadd.f32 %v307, %v1150
      %1152 = vmatmul.bf16.gmra.mxu0 %v822
      %v1153 = vpop.f32.mrf.mxu0
      %v1154 = vadd.f32 %v307, %v1153
      %v1155 = vpop.f32.mrf.mxu0
      %v1156 = vadd.f32 %v307, %v1155
      %1157 = vmatmul.bf16.gmra.mxu0 %v825
      %v1158 = vpop.f32.mrf.mxu0
      %v1159 = vadd.f32 %v307, %v1158
      %v1160 = vpop.f32.mrf.mxu0
      %v1161 = vadd.f32 %v307, %v1160
      %1162 = vdwg.mxu0
      %v1163 = vmax.f32 %v844, 0.0
      %v1164 = vmax.f32 %v846, 0.0
      %v1165 = vmax.f32 %v849, 0.0
      %v1166 = vmax.f32 %v851, 0.0
      %v1167 = vmax.f32 %v854, 0.0
      %v1168 = vmax.f32 %v856, 0.0
      %v1169 = vmax.f32 %v859, 0.0
      %v1170 = vmax.f32 %v861, 0.0
      %v1171 = vmax.f32 %v864, 0.0
      %v1172 = vmax.f32 %v866, 0.0
      %v1173 = vmax.f32 %v869, 0.0
      %v1174 = vmax.f32 %v871, 0.0
      %v1175 = vmax.f32 %v874, 0.0
      %v1176 = vmax.f32 %v876, 0.0
      %v1177 = vmax.f32 %v879, 0.0
      %v1178 = vmax.f32 %v881, 0.0
      %v1179 = vmax.f32 %v884, 0.0
      %v1180 = vmax.f32 %v886, 0.0
      %v1181 = vmax.f32 %v889, 0.0
      %v1182 = vmax.f32 %v891, 0.0
      %v1183 = vmax.f32 %v894, 0.0
      %v1184 = vmax.f32 %v896, 0.0
      %v1185 = vmax.f32 %v899, 0.0
      %v1186 = vmax.f32 %v901, 0.0
      %v1187 = vmax.f32 %v904, 0.0
      %v1188 = vmax.f32 %v906, 0.0
      %v1189 = vmax.f32 %v909, 0.0
      %v1190 = vmax.f32 %v911, 0.0
      %v1191 = vmax.f32 %v914, 0.0
      %v1192 = vmax.f32 %v916, 0.0
      %v1193 = vmax.f32 %v919, 0.0
      %v1194 = vmax.f32 %v921, 0.0
      %v1195 = vmax.f32 %v924, 0.0
      %v1196 = vmax.f32 %v926, 0.0
      %v1197 = vmax.f32 %v929, 0.0
      %v1198 = vmax.f32 %v931, 0.0
      %v1199 = vmax.f32 %v934, 0.0
      %v1200 = vmax.f32 %v936, 0.0
      %v1201 = vmax.f32 %v939, 0.0
      %v1202 = vmax.f32 %v941, 0.0
      %v1203 = vmax.f32 %v944, 0.0
      %v1204 = vmax.f32 %v946, 0.0
      %v1205 = vmax.f32 %v949, 0.0
      %v1206 = vmax.f32 %v951, 0.0
      %v1207 = vmax.f32 %v954, 0.0
      %v1208 = vmax.f32 %v956, 0.0
      %v1209 = vmax.f32 %v959, 0.0
      %v1210 = vmax.f32 %v961, 0.0
      %v1211 = vmax.f32 %v964, 0.0
      %v1212 = vmax.f32 %v966, 0.0
      %v1213 = vmax.f32 %v969, 0.0
      %v1214 = vmax.f32 %v971, 0.0
      %v1215 = vmax.f32 %v974, 0.0
      %v1216 = vmax.f32 %v976, 0.0
      %v1217 = vmax.f32 %v979, 0.0
      %v1218 = vmax.f32 %v981, 0.0
      %v1219 = vmax.f32 %v984, 0.0
      %v1220 = vmax.f32 %v986, 0.0
      %v1221 = vmax.f32 %v989, 0.0
      %v1222 = vmax.f32 %v991, 0.0
      %v1223 = vmax.f32 %v994, 0.0
      %v1224 = vmax.f32 %v996, 0.0
      %v1225 = vmax.f32 %v999, 0.0
      %v1226 = vmax.f32 %v1001, 0.0
      %v1227 = vmax.f32 %v1004, 0.0
      %v1228 = vmax.f32 %v1006, 0.0
      %v1229 = vmax.f32 %v1009, 0.0
      %v1230 = vmax.f32 %v1011, 0.0
      %v1231 = vmax.f32 %v1014, 0.0
      %v1232 = vmax.f32 %v1016, 0.0
      %v1233 = vmax.f32 %v1019, 0.0
      %v1234 = vmax.f32 %v1021, 0.0
      %v1235 = vmax.f32 %v1024, 0.0
      %v1236 = vmax.f32 %v1026, 0.0
      %v1237 = vmax.f32 %v1029, 0.0
      %v1238 = vmax.f32 %v1031, 0.0
      %v1239 = vmax.f32 %v1034, 0.0
      %v1240 = vmax.f32 %v1036, 0.0
      %v1241 = vmax.f32 %v1039, 0.0
      %v1242 = vmax.f32 %v1041, 0.0
      %v1243 = vmax.f32 %v1044, 0.0
      %v1244 = vmax.f32 %v1046, 0.0
      %v1245 = vmax.f32 %v1049, 0.0
      %v1246 = vmax.f32 %v1051, 0.0
      %v1247 = vmax.f32 %v1054, 0.0
      %v1248 = vmax.f32 %v1056, 0.0
      %v1249 = vmax.f32 %v1059, 0.0
      %v1250 = vmax.f32 %v1061, 0.0
      %v1251 = vmax.f32 %v1064, 0.0
      %v1252 = vmax.f32 %v1066, 0.0
      %v1253 = vmax.f32 %v1069, 0.0
      %v1254 = vmax.f32 %v1071, 0.0
      %v1255 = vmax.f32 %v1074, 0.0
      %v1256 = vmax.f32 %v1076, 0.0
      %v1257 = vmax.f32 %v1079, 0.0
      %v1258 = vmax.f32 %v1081, 0.0
      %v1259 = vmax.f32 %v1084, 0.0
      %v1260 = vmax.f32 %v1086, 0.0
      %v1261 = vmax.f32 %v1089, 0.0
      %v1262 = vmax.f32 %v1091, 0.0
      %v1263 = vmax.f32 %v1094, 0.0
      %v1264 = vmax.f32 %v1096, 0.0
      %v1265 = vmax.f32 %v1099, 0.0
      %v1266 = vmax.f32 %v1101, 0.0
      %v1267 = vmax.f32 %v1104, 0.0
      %v1268 = vmax.f32 %v1106, 0.0
      %v1269 = vmax.f32 %v1109, 0.0
      %v1270 = vmax.f32 %v1111, 0.0
      %v1271 = vmax.f32 %v1114, 0.0
      %v1272 = vmax.f32 %v1116, 0.0
      %v1273 = vmax.f32 %v1119, 0.0
      %v1274 = vmax.f32 %v1121, 0.0
      %v1275 = vmax.f32 %v1124, 0.0
      %v1276 = vmax.f32 %v1126, 0.0
      %v1277 = vmax.f32 %v1129, 0.0
      %v1278 = vmax.f32 %v1131, 0.0
      %v1279 = vmax.f32 %v1134, 0.0
      %v1280 = vmax.f32 %v1136, 0.0
      %v1281 = vmax.f32 %v1139, 0.0
      %v1282 = vmax.f32 %v1141, 0.0
      %v1283 = vmax.f32 %v1144, 0.0
      %v1284 = vmax.f32 %v1146, 0.0
      %v1285 = vmax.f32 %v1149, 0.0
      %v1286 = vmax.f32 %v1151, 0.0
      %v1287 = vmax.f32 %v1154, 0.0
      %v1288 = vmax.f32 %v1156, 0.0
      %v1289 = vmax.f32 %v1159, 0.0
      %v1290 = vmax.f32 %v1161, 0.0
      %v1291 = vpack.c.bf16 %v1163, %v1163
      %v1292 = vpack.c.bf16 %v1164, %v1164
      %v1293 = vpack.c.bf16 %v1165, %v1165
      %v1294 = vpack.c.bf16 %v1166, %v1166
      %v1295 = vpack.c.bf16 %v1167, %v1167
      %v1296 = vpack.c.bf16 %v1168, %v1168
      %v1297 = vpack.c.bf16 %v1169, %v1169
      %v1298 = vpack.c.bf16 %v1170, %v1170
      %v1299 = vpack.c.bf16 %v1171, %v1171
      %v1300 = vpack.c.bf16 %v1172, %v1172
      %v1301 = vpack.c.bf16 %v1173, %v1173
      %v1302 = vpack.c.bf16 %v1174, %v1174
      %v1303 = vpack.c.bf16 %v1175, %v1175
      %v1304 = vpack.c.bf16 %v1176, %v1176
      %v1305 = vpack.c.bf16 %v1177, %v1177
      %v1306 = vpack.c.bf16 %v1178, %v1178
      %v1307 = vpack.c.bf16 %v1179, %v1179
      %v1308 = vpack.c.bf16 %v1180, %v1180
      %v1309 = vpack.c.bf16 %v1181, %v1181
      %v1310 = vpack.c.bf16 %v1182, %v1182
      %v1311 = vpack.c.bf16 %v1183, %v1183
      %v1312 = vpack.c.bf16 %v1184, %v1184
      %v1313 = vpack.c.bf16 %v1185, %v1185
      %v1314 = vpack.c.bf16 %v1186, %v1186
      %v1315 = vpack.c.bf16 %v1187, %v1187
      %v1316 = vpack.c.bf16 %v1188, %v1188
      %v1317 = vpack.c.bf16 %v1189, %v1189
      %v1318 = vpack.c.bf16 %v1190, %v1190
      %v1319 = vpack.c.bf16 %v1191, %v1191
      %v1320 = vpack.c.bf16 %v1192, %v1192
      %v1321 = vpack.c.bf16 %v1193, %v1193
      %v1322 = vpack.c.bf16 %v1194, %v1194
      %v1323 = vpack.c.bf16 %v1195, %v1195
      %v1324 = vpack.c.bf16 %v1196, %v1196
      %v1325 = vpack.c.bf16 %v1197, %v1197
      %v1326 = vpack.c.bf16 %v1198, %v1198
      %v1327 = vpack.c.bf16 %v1199, %v1199
      %v1328 = vpack.c.bf16 %v1200, %v1200
      %v1329 = vpack.c.bf16 %v1201, %v1201
      %v1330 = vpack.c.bf16 %v1202, %v1202
      %v1331 = vpack.c.bf16 %v1203, %v1203
      %v1332 = vpack.c.bf16 %v1204, %v1204
      %v1333 = vpack.c.bf16 %v1205, %v1205
      %v1334 = vpack.c.bf16 %v1206, %v1206
      %v1335 = vpack.c.bf16 %v1207, %v1207
      %v1336 = vpack.c.bf16 %v1208, %v1208
      %v1337 = vpack.c.bf16 %v1209, %v1209
      %v1338 = vpack.c.bf16 %v1210, %v1210
      %v1339 = vpack.c.bf16 %v1211, %v1211
      %v1340 = vpack.c.bf16 %v1212, %v1212
      %v1341 = vpack.c.bf16 %v1213, %v1213
      %v1342 = vpack.c.bf16 %v1214, %v1214
      %v1343 = vpack.c.bf16 %v1215, %v1215
      %v1344 = vpack.c.bf16 %v1216, %v1216
      %v1345 = vpack.c.bf16 %v1217, %v1217
      %v1346 = vpack.c.bf16 %v1218, %v1218
      %v1347 = vpack.c.bf16 %v1219, %v1219
      %v1348 = vpack.c.bf16 %v1220, %v1220
      %v1349 = vpack.c.bf16 %v1221, %v1221
      %v1350 = vpack.c.bf16 %v1222, %v1222
      %v1351 = vpack.c.bf16 %v1223, %v1223
      %v1352 = vpack.c.bf16 %v1224, %v1224
      %v1353 = vpack.c.bf16 %v1225, %v1225
      %v1354 = vpack.c.bf16 %v1226, %v1226
      %v1355 = vpack.c.bf16 %v1227, %v1227
      %v1356 = vpack.c.bf16 %v1228, %v1228
      %v1357 = vpack.c.bf16 %v1229, %v1229
      %v1358 = vpack.c.bf16 %v1230, %v1230
      %v1359 = vpack.c.bf16 %v1231, %v1231
      %v1360 = vpack.c.bf16 %v1232, %v1232
      %v1361 = vpack.c.bf16 %v1233, %v1233
      %v1362 = vpack.c.bf16 %v1234, %v1234
      %v1363 = vpack.c.bf16 %v1235, %v1235
      %v1364 = vpack.c.bf16 %v1236, %v1236
      %v1365 = vpack.c.bf16 %v1237, %v1237
      %v1366 = vpack.c.bf16 %v1238, %v1238
      %v1367 = vpack.c.bf16 %v1239, %v1239
      %v1368 = vpack.c.bf16 %v1240, %v1240
      %v1369 = vpack.c.bf16 %v1241, %v1241
      %v1370 = vpack.c.bf16 %v1242, %v1242
      %v1371 = vpack.c.bf16 %v1243, %v1243
      %v1372 = vpack.c.bf16 %v1244, %v1244
      %v1373 = vpack.c.bf16 %v1245, %v1245
      %v1374 = vpack.c.bf16 %v1246, %v1246
      %v1375 = vpack.c.bf16 %v1247, %v1247
      %v1376 = vpack.c.bf16 %v1248, %v1248
      %v1377 = vpack.c.bf16 %v1249, %v1249
      %v1378 = vpack.c.bf16 %v1250, %v1250
      %v1379 = vpack.c.bf16 %v1251, %v1251
      %v1380 = vpack.c.bf16 %v1252, %v1252
      %v1381 = vpack.c.bf16 %v1253, %v1253
      %v1382 = vpack.c.bf16 %v1254, %v1254
      %v1383 = vpack.c.bf16 %v1255, %v1255
      %v1384 = vpack.c.bf16 %v1256, %v1256
      %v1385 = vpack.c.bf16 %v1257, %v1257
      %v1386 = vpack.c.bf16 %v1258, %v1258
      %v1387 = vpack.c.bf16 %v1259, %v1259
      %v1388 = vpack.c.bf16 %v1260, %v1260
      %v1389 = vpack.c.bf16 %v1261, %v1261
      %v1390 = vpack.c.bf16 %v1262, %v1262
      %v1391 = vpack.c.bf16 %v1263, %v1263
      %v1392 = vpack.c.bf16 %v1264, %v1264
      %v1393 = vpack.c.bf16 %v1265, %v1265
      %v1394 = vpack.c.bf16 %v1266, %v1266
      %v1395 = vpack.c.bf16 %v1267, %v1267
      %v1396 = vpack.c.bf16 %v1268, %v1268
      %v1397 = vpack.c.bf16 %v1269, %v1269
      %v1398 = vpack.c.bf16 %v1270, %v1270
      %v1399 = vpack.c.bf16 %v1271, %v1271
      %v1400 = vpack.c.bf16 %v1272, %v1272
      %v1401 = vpack.c.bf16 %v1273, %v1273
      %v1402 = vpack.c.bf16 %v1274, %v1274
      %v1403 = vpack.c.bf16 %v1275, %v1275
      %v1404 = vpack.c.bf16 %v1276, %v1276
      %v1405 = vpack.c.bf16 %v1277, %v1277
      %v1406 = vpack.c.bf16 %v1278, %v1278
      %v1407 = vpack.c.bf16 %v1279, %v1279
      %v1408 = vpack.c.bf16 %v1280, %v1280
      %v1409 = vpack.c.bf16 %v1281, %v1281
      %v1410 = vpack.c.bf16 %v1282, %v1282
      %v1411 = vpack.c.bf16 %v1283, %v1283
      %v1412 = vpack.c.bf16 %v1284, %v1284
      %v1413 = vpack.c.bf16 %v1285, %v1285
      %v1414 = vpack.c.bf16 %v1286, %v1286
      %v1415 = vpack.c.bf16 %v1287, %v1287
      %v1416 = vpack.c.bf16 %v1288, %v1288
      %v1417 = vpack.c.bf16 %v1289, %v1289
      %v1418 = vpack.c.bf16 %v1290, %v1290
      %vm1419 = vcmask 257024
      %1420 = vst.msk [vmem:[%s172] sm:$0xf] %vm1419, %v1291
      %1421 = vst.msk [vmem:[%s172 + $0x4] sm:$0xf] %vm1419, %v1292
      %1422 = vst.msk [vmem:[%s172 + $0x8] sm:$0xf] %vm1419, %v1293
      %1423 = vst.msk [vmem:[%s172 + $0xc] sm:$0xf] %vm1419, %v1294
      %1424 = vst.msk [vmem:[%s172 + $0x10] sm:$0xf] %vm1419, %v1295
      %1425 = vst.msk [vmem:[%s172 + $0x14] sm:$0xf] %vm1419, %v1296
      %1426 = vst.msk [vmem:[%s172 + $0x18] sm:$0xf] %vm1419, %v1297
      %1427 = vst.msk [vmem:[%s172 + $0x1c] sm:$0xf] %vm1419, %v1298
      %1428 = vst.msk [vmem:[%s172 + $0x20] sm:$0xf] %vm1419, %v1299
      %1429 = vst.msk [vmem:[%s172 + $0x24] sm:$0xf] %vm1419, %v1300
      %1430 = vst.msk [vmem:[%s172 + $0x28] sm:$0xf] %vm1419, %v1301
      %1431 = vst.msk [vmem:[%s172 + $0x2c] sm:$0xf] %vm1419, %v1302
      %1432 = vst.msk [vmem:[%s172 + $0x30] sm:$0xf] %vm1419, %v1303
      %1433 = vst.msk [vmem:[%s172 + $0x34] sm:$0xf] %vm1419, %v1304
      %1434 = vst.msk [vmem:[%s172 + $0x38] sm:$0xf] %vm1419, %v1305
      %1435 = vst.msk [vmem:[%s172 + $0x3c] sm:$0xf] %vm1419, %v1306
      %1436 = vst.msk [vmem:[%s172 + $0x40] sm:$0xf] %vm1419, %v1307
      %1437 = vst.msk [vmem:[%s172 + $0x44] sm:$0xf] %vm1419, %v1308
      %1438 = vst.msk [vmem:[%s172 + $0x48] sm:$0xf] %vm1419, %v1309
      %1439 = vst.msk [vmem:[%s172 + $0x4c] sm:$0xf] %vm1419, %v1310
      %1440 = vst.msk [vmem:[%s172 + $0x50] sm:$0xf] %vm1419, %v1311
      %1441 = vst.msk [vmem:[%s172 + $0x54] sm:$0xf] %vm1419, %v1312
      %1442 = vst.msk [vmem:[%s172 + $0x58] sm:$0xf] %vm1419, %v1313
      %1443 = vst.msk [vmem:[%s172 + $0x5c] sm:$0xf] %vm1419, %v1314
      %1444 = vst.msk [vmem:[%s172 + $0x60] sm:$0xf] %vm1419, %v1315
      %1445 = vst.msk [vmem:[%s172 + $0x64] sm:$0xf] %vm1419, %v1316
      %1446 = vst.msk [vmem:[%s172 + $0x68] sm:$0xf] %vm1419, %v1317
      %1447 = vst.msk [vmem:[%s172 + $0x6c] sm:$0xf] %vm1419, %v1318
      %1448 = vst.msk [vmem:[%s172 + $0x70] sm:$0xf] %vm1419, %v1319
      %1449 = vst.msk [vmem:[%s172 + $0x74] sm:$0xf] %vm1419, %v1320
      %1450 = vst.msk [vmem:[%s172 + $0x78] sm:$0xf] %vm1419, %v1321
      %1451 = vst.msk [vmem:[%s172 + $0x7c] sm:$0xf] %vm1419, %v1322
      %1452 = vst.msk [vmem:[%s172 + $0x80] sm:$0xf] %vm1419, %v1323
      %1453 = vst.msk [vmem:[%s172 + $0x84] sm:$0xf] %vm1419, %v1324
      %1454 = vst.msk [vmem:[%s172 + $0x88] sm:$0xf] %vm1419, %v1325
      %1455 = vst.msk [vmem:[%s172 + $0x8c] sm:$0xf] %vm1419, %v1326
      %1456 = vst.msk [vmem:[%s172 + $0x90] sm:$0xf] %vm1419, %v1327
      %1457 = vst.msk [vmem:[%s172 + $0x94] sm:$0xf] %vm1419, %v1328
      %1458 = vst.msk [vmem:[%s172 + $0x98] sm:$0xf] %vm1419, %v1329
      %1459 = vst.msk [vmem:[%s172 + $0x9c] sm:$0xf] %vm1419, %v1330
      %1460 = vst.msk [vmem:[%s172 + $0xa0] sm:$0xf] %vm1419, %v1331
      %1461 = vst.msk [vmem:[%s172 + $0xa4] sm:$0xf] %vm1419, %v1332
      %1462 = vst.msk [vmem:[%s172 + $0xa8] sm:$0xf] %vm1419, %v1333
      %1463 = vst.msk [vmem:[%s172 + $0xac] sm:$0xf] %vm1419, %v1334
      %1464 = vst.msk [vmem:[%s172 + $0xb0] sm:$0xf] %vm1419, %v1335
      %1465 = vst.msk [vmem:[%s172 + $0xb4] sm:$0xf] %vm1419, %v1336
      %1466 = vst.msk [vmem:[%s172 + $0xb8] sm:$0xf] %vm1419, %v1337
      %1467 = vst.msk [vmem:[%s172 + $0xbc] sm:$0xf] %vm1419, %v1338
      %1468 = vst.msk [vmem:[%s172 + $0xc0] sm:$0xf] %vm1419, %v1339
      %1469 = vst.msk [vmem:[%s172 + $0xc4] sm:$0xf] %vm1419, %v1340
      %1470 = vst.msk [vmem:[%s172 + $0xc8] sm:$0xf] %vm1419, %v1341
      %1471 = vst.msk [vmem:[%s172 + $0xcc] sm:$0xf] %vm1419, %v1342
      %1472 = vst.msk [vmem:[%s172 + $0xd0] sm:$0xf] %vm1419, %v1343
      %1473 = vst.msk [vmem:[%s172 + $0xd4] sm:$0xf] %vm1419, %v1344
      %1474 = vst.msk [vmem:[%s172 + $0xd8] sm:$0xf] %vm1419, %v1345
      %1475 = vst.msk [vmem:[%s172 + $0xdc] sm:$0xf] %vm1419, %v1346
      %1476 = vst.msk [vmem:[%s172 + $0xe0] sm:$0xf] %vm1419, %v1347
      %1477 = vst.msk [vmem:[%s172 + $0xe4] sm:$0xf] %vm1419, %v1348
      %1478 = vst.msk [vmem:[%s172 + $0xe8] sm:$0xf] %vm1419, %v1349
      %1479 = vst.msk [vmem:[%s172 + $0xec] sm:$0xf] %vm1419, %v1350
      %1480 = vst.msk [vmem:[%s172 + $0xf0] sm:$0xf] %vm1419, %v1351
      %1481 = vst.msk [vmem:[%s172 + $0xf4] sm:$0xf] %vm1419, %v1352
      %1482 = vst.msk [vmem:[%s172 + $0xf8] sm:$0xf] %vm1419, %v1353
      %1483 = vst.msk [vmem:[%s172 + $0xfc] sm:$0xf] %vm1419, %v1354
      %1484 = vst.msk [vmem:[%s172 + $0x100] sm:$0xf] %vm1419, %v1355
      %1485 = vst.msk [vmem:[%s172 + $0x104] sm:$0xf] %vm1419, %v1356
      %1486 = vst.msk [vmem:[%s172 + $0x108] sm:$0xf] %vm1419, %v1357
      %1487 = vst.msk [vmem:[%s172 + $0x10c] sm:$0xf] %vm1419, %v1358
      %1488 = vst.msk [vmem:[%s172 + $0x110] sm:$0xf] %vm1419, %v1359
      %1489 = vst.msk [vmem:[%s172 + $0x114] sm:$0xf] %vm1419, %v1360
      %1490 = vst.msk [vmem:[%s172 + $0x118] sm:$0xf] %vm1419, %v1361
      %1491 = vst.msk [vmem:[%s172 + $0x11c] sm:$0xf] %vm1419, %v1362
      %1492 = vst.msk [vmem:[%s172 + $0x120] sm:$0xf] %vm1419, %v1363
      %1493 = vst.msk [vmem:[%s172 + $0x124] sm:$0xf] %vm1419, %v1364
      %1494 = vst.msk [vmem:[%s172 + $0x128] sm:$0xf] %vm1419, %v1365
      %1495 = vst.msk [vmem:[%s172 + $0x12c] sm:$0xf] %vm1419, %v1366
      %1496 = vst.msk [vmem:[%s172 + $0x130] sm:$0xf] %vm1419, %v1367
      %1497 = vst.msk [vmem:[%s172 + $0x134] sm:$0xf] %vm1419, %v1368
      %1498 = vst.msk [vmem:[%s172 + $0x138] sm:$0xf] %vm1419, %v1369
      %1499 = vst.msk [vmem:[%s172 + $0x13c] sm:$0xf] %vm1419, %v1370
      %1500 = vst.msk [vmem:[%s172 + $0x140] sm:$0xf] %vm1419, %v1371
      %1501 = vst.msk [vmem:[%s172 + $0x144] sm:$0xf] %vm1419, %v1372
      %1502 = vst.msk [vmem:[%s172 + $0x148] sm:$0xf] %vm1419, %v1373
      %1503 = vst.msk [vmem:[%s172 + $0x14c] sm:$0xf] %vm1419, %v1374
      %1504 = vst.msk [vmem:[%s172 + $0x150] sm:$0xf] %vm1419, %v1375
      %1505 = vst.msk [vmem:[%s172 + $0x154] sm:$0xf] %vm1419, %v1376
      %1506 = vst.msk [vmem:[%s172 + $0x158] sm:$0xf] %vm1419, %v1377
      %1507 = vst.msk [vmem:[%s172 + $0x15c] sm:$0xf] %vm1419, %v1378
      %1508 = vst.msk [vmem:[%s172 + $0x160] sm:$0xf] %vm1419, %v1379
      %1509 = vst.msk [vmem:[%s172 + $0x164] sm:$0xf] %vm1419, %v1380
      %1510 = vst.msk [vmem:[%s172 + $0x168] sm:$0xf] %vm1419, %v1381
      %1511 = vst.msk [vmem:[%s172 + $0x16c] sm:$0xf] %vm1419, %v1382
      %1512 = vst.msk [vmem:[%s172 + $0x170] sm:$0xf] %vm1419, %v1383
      %1513 = vst.msk [vmem:[%s172 + $0x174] sm:$0xf] %vm1419, %v1384
      %1514 = vst.msk [vmem:[%s172 + $0x178] sm:$0xf] %vm1419, %v1385
      %1515 = vst.msk [vmem:[%s172 + $0x17c] sm:$0xf] %vm1419, %v1386
      %1516 = vst.msk [vmem:[%s172 + $0x180] sm:$0xf] %vm1419, %v1387
      %1517 = vst.msk [vmem:[%s172 + $0x184] sm:$0xf] %vm1419, %v1388
      %1518 = vst.msk [vmem:[%s172 + $0x188] sm:$0xf] %vm1419, %v1389
      %1519 = vst.msk [vmem:[%s172 + $0x18c] sm:$0xf] %vm1419, %v1390
      %1520 = vst.msk [vmem:[%s172 + $0x190] sm:$0xf] %vm1419, %v1391
      %1521 = vst.msk [vmem:[%s172 + $0x194] sm:$0xf] %vm1419, %v1392
      %1522 = vst.msk [vmem:[%s172 + $0x198] sm:$0xf] %vm1419, %v1393
      %1523 = vst.msk [vmem:[%s172 + $0x19c] sm:$0xf] %vm1419, %v1394
      %1524 = vst.msk [vmem:[%s172 + $0x1a0] sm:$0xf] %vm1419, %v1395
      %1525 = vst.msk [vmem:[%s172 + $0x1a4] sm:$0xf] %vm1419, %v1396
      %1526 = vst.msk [vmem:[%s172 + $0x1a8] sm:$0xf] %vm1419, %v1397
      %1527 = vst.msk [vmem:[%s172 + $0x1ac] sm:$0xf] %vm1419, %v1398
      %1528 = vst.msk [vmem:[%s172 + $0x1b0] sm:$0xf] %vm1419, %v1399
      %1529 = vst.msk [vmem:[%s172 + $0x1b4] sm:$0xf] %vm1419, %v1400
      %1530 = vst.msk [vmem:[%s172 + $0x1b8] sm:$0xf] %vm1419, %v1401
      %1531 = vst.msk [vmem:[%s172 + $0x1bc] sm:$0xf] %vm1419, %v1402
      %1532 = vst.msk [vmem:[%s172 + $0x1c0] sm:$0xf] %vm1419, %v1403
      %1533 = vst.msk [vmem:[%s172 + $0x1c4] sm:$0xf] %vm1419, %v1404
      %1534 = vst.msk [vmem:[%s172 + $0x1c8] sm:$0xf] %vm1419, %v1405
      %1535 = vst.msk [vmem:[%s172 + $0x1cc] sm:$0xf] %vm1419, %v1406
      %1536 = vst.msk [vmem:[%s172 + $0x1d0] sm:$0xf] %vm1419, %v1407
      %1537 = vst.msk [vmem:[%s172 + $0x1d4] sm:$0xf] %vm1419, %v1408
      %1538 = vst.msk [vmem:[%s172 + $0x1d8] sm:$0xf] %vm1419, %v1409
      %1539 = vst.msk [vmem:[%s172 + $0x1dc] sm:$0xf] %vm1419, %v1410
      %1540 = vst.msk [vmem:[%s172 + $0x1e0] sm:$0xf] %vm1419, %v1411
      %1541 = vst.msk [vmem:[%s172 + $0x1e4] sm:$0xf] %vm1419, %v1412
      %1542 = vst.msk [vmem:[%s172 + $0x1e8] sm:$0xf] %vm1419, %v1413
      %1543 = vst.msk [vmem:[%s172 + $0x1ec] sm:$0xf] %vm1419, %v1414
      %1544 = vst.msk [vmem:[%s172 + $0x1f0] sm:$0xf] %vm1419, %v1415
      %1545 = vst.msk [vmem:[%s172 + $0x1f4] sm:$0xf] %vm1419, %v1416
      %1546 = vst.msk [vmem:[%s172 + $0x1f8] sm:$0xf] %vm1419, %v1417
      %1547 = vst.msk [vmem:[%s172 + $0x1fc] sm:$0xf] %vm1419, %v1418
      %s1548 = smul.u32 128, %s14
      %p1549 = scmp.lt.s32.totalorder %s1548, 255
      %s1550 = scalar_select %p1549, %s1548, 255
      %s1551 = smul.addr %s1550, 4
      %s1552 = scalar_lea.vmem %s3, %s1551
      // Predicated region
      $region33: #{rnet_forward.5} parent=31 // pred_check
        %p1553 = pneg %p100
      $region34: #{rnet_forward.5} parent=31 // pred_check_branch
        %1555 = sbr.rel (%p1553) target = $region36
      $region35: #{rnet_forward.5} parent=31 // pred_region
        %s1556 = smul.u32 128, %s14
      $region36: #{rnet_forward.5} parent=31 // pred_fallthru
        _
    $region32: #{rnet_forward.5} parent=5 // pred_fallthru
      _
    %p1557 = scmp.le.s32.totalorder 2, %s9
    // Predicated region
    $region37: #{rnet_forward.5} parent=5 // pred_check
      %p1558 = pneg %p1557
    $region38: #{rnet_forward.5} parent=5 // pred_check_branch
      %1560 = sbr.rel (%p1558) target = $region40
    $region39: #{rnet_forward.5} parent=5 // pred_region
      %s1561 = ssub.s32 %s9, 2
      // Predicated region
      $region41: #{rnet_forward.5} parent=39 // pred_check
        %p1562 = pneg %p106
      $region42: #{rnet_forward.5} parent=39 // pred_check_branch
        %1564 = sbr.rel (%p1562) target = $region44
      $region43: #{rnet_forward.5} parent=39 // pred_region
        %s1565 = smul.u32 128, %s15
        %p1566 = scmp.lt.s32.totalorder %s1565, 255
        %s1567 = scalar_select %p1566, %s1565, 255
        %s1568 = smul.addr %s1567, 4
        %s1569 = scalar_lea.vmem %s3, %s1568
      $region44: #{rnet_forward.5} parent=39 // pred_fallthru
        _
    $region40: #{rnet_forward.5} parent=5 // pred_fallthru
      _
  $region6: #{rnet_forward.5} parent=0 // loop_footer
    %s13 = sadd.s32 1, %s9
  $region7: #{rnet_forward.5} parent=0 // loop_footer_branch
    %8 = sbr.rel target = $region3
  $region8: #{rnet_forward.5} parent=0 // loop_exit
    _

// kernel: rnet_forward.6
$region0: #{rnet_forward.6}
  #allocation0 [shape = 'u32[]', space=smem, size = 0x4, offset = 0x4, fixed_abs, tag = 'smem constant byte address 0x4 - core index']
  #allocation1 [shape = 'u32[72,128]{1,0:T(1,128)}', space=vmem, size = 0x9000, scoped, tag = 'internal scratch']
  %s0 = inlined_call_operand.vmem [shape: bf16[512,288], index: 0, kind: input, shape index: {}]
  %s1 = inlined_call_operand.vmem [shape: bf16[288,64], index: 1, kind: input, shape index: {}]
  %s2 = inlined_call_operand.vmem [shape: f32[1,64], index: 2, kind: input, shape index: {}]
  %s3 = inlined_call_operand.vmem [shape: bf16[512,64], index: 3, kind: output, shape index: {}]
  %s4 = sld [smem:[#allocation0]]
  $region22: #{rnet_forward.6} parent=0
    _
  %s6 = ssub.s32 1, %s4
  %s7 = scalar_select 0, %s6, %s4
  // Predicated region
  $region2: #{rnet_forward.6} parent=0 // pred_check
    _
  $region3: #{rnet_forward.6} parent=0 // pred_check_branch
    %9 = sbr.rel (0) target = $region5
  $region4: #{rnet_forward.6} parent=0 // pred_region
    _
  $region5: #{rnet_forward.6} parent=0 // pred_fallthru
    _
  // Predicated region
  $region6: #{rnet_forward.6} parent=0 // pred_check
    _
  $region7: #{rnet_forward.6} parent=0 // pred_check_branch
    %11 = sbr.rel (0) target = $region9
  $region8: #{rnet_forward.6} parent=0 // pred_region
    _
  $region9: #{rnet_forward.6} parent=0 // pred_fallthru
    _
  // Predicated region
  $region10: #{rnet_forward.6} parent=0 // pred_check
    _
  $region11: #{rnet_forward.6} parent=0 // pred_check_branch
    %13 = sbr.rel (0) target = $region13
  $region12: #{rnet_forward.6} parent=0 // pred_region
    _
  $region13: #{rnet_forward.6} parent=0 // pred_fallthru
    _
  %v15 = vld [vmem:[%s0] sm:$0xff]
  %v16 = vld [vmem:[%s0 + $0x8] sm:$0xf]
  %v17 = vld [vmem:[%s0 + $0xc] sm:$0xff]
  %v18 = vld [vmem:[%s0 + $0x14] sm:$0xf]
  %v19 = vld [vmem:[%s0 + $0x18] sm:$0xff]
  %v20 = vld [vmem:[%s0 + $0x20] sm:$0xf]
  %v21 = vld [vmem:[%s0 + $0x24] sm:$0xff]
  %v22 = vld [vmem:[%s0 + $0x2c] sm:$0xf]
  %v23 = vld [vmem:[%s0 + $0x30] sm:$0xff]
  %v24 = vld [vmem:[%s0 + $0x38] sm:$0xf]
  %v25 = vld [vmem:[%s0 + $0x3c] sm:$0xff]
  %v26 = vld [vmem:[%s0 + $0x44] sm:$0xf]
  %v27 = vld [vmem:[%s0 + $0x48] sm:$0xff]
  %v28 = vld [vmem:[%s0 + $0x50] sm:$0xf]
  %v29 = vld [vmem:[%s0 + $0x54] sm:$0xff]
  %v30 = vld [vmem:[%s0 + $0x5c] sm:$0xf]
  %v31 = vld [vmem:[%s0 + $0x60] sm:$0xff]
  %v32 = vld [vmem:[%s0 + $0x68] sm:$0xf]
  %v33 = vld [vmem:[%s0 + $0x6c] sm:$0xff]
  %v34 = vld [vmem:[%s0 + $0x74] sm:$0xf]
  %v35 = vld [vmem:[%s0 + $0x78] sm:$0xff]
  %v36 = vld [vmem:[%s0 + $0x80] sm:$0xf]
  %v37 = vld [vmem:[%s0 + $0x84] sm:$0xff]
  %v38 = vld [vmem:[%s0 + $0x8c] sm:$0xf]
  %v39 = vld [vmem:[%s0 + $0x90] sm:$0xff]
  %v40 = vld [vmem:[%s0 + $0x98] sm:$0xf]
  %v41 = vld [vmem:[%s0 + $0x9c] sm:$0xff]
  %v42 = vld [vmem:[%s0 + $0xa4] sm:$0xf]
  %v43 = vld [vmem:[%s0 + $0xa8] sm:$0xff]
  %v44 = vld [vmem:[%s0 + $0xb0] sm:$0xf]
  %v45 = vld [vmem:[%s0 + $0xb4] sm:$0xff]
  %v46 = vld [vmem:[%s0 + $0xbc] sm:$0xf]
  %v47 = vld [vmem:[%s0 + $0xc0] sm:$0xff]
  %v48 = vld [vmem:[%s0 + $0xc8] sm:$0xf]
  %v49 = vld [vmem:[%s0 + $0xcc] sm:$0xff]
  %v50 = vld [vmem:[%s0 + $0xd4] sm:$0xf]
  %v51 = vld [vmem:[%s0 + $0xd8] sm:$0xff]
  %v52 = vld [vmem:[%s0 + $0xe0] sm:$0xf]
  %v53 = vld [vmem:[%s0 + $0xe4] sm:$0xff]
  %v54 = vld [vmem:[%s0 + $0xec] sm:$0xf]
  %v55 = vld [vmem:[%s0 + $0xf0] sm:$0xff]
  %v56 = vld [vmem:[%s0 + $0xf8] sm:$0xf]
  %v57 = vld [vmem:[%s0 + $0xfc] sm:$0xff]
  %v58 = vld [vmem:[%s0 + $0x104] sm:$0xf]
  %v59 = vld [vmem:[%s0 + $0x108] sm:$0xff]
  %v60 = vld [vmem:[%s0 + $0x110] sm:$0xf]
  %v61 = vld [vmem:[%s0 + $0x114] sm:$0xff]
  %v62 = vld [vmem:[%s0 + $0x11c] sm:$0xf]
  %v63 = vld [vmem:[%s0 + $0x120] sm:$0xff]
  %v64 = vld [vmem:[%s0 + $0x128] sm:$0xf]
  %v65 = vld [vmem:[%s0 + $0x12c] sm:$0xff]
  %v66 = vld [vmem:[%s0 + $0x134] sm:$0xf]
  %v67 = vld [vmem:[%s0 + $0x138] sm:$0xff]
  %v68 = vld [vmem:[%s0 + $0x140] sm:$0xf]
  %v69 = vld [vmem:[%s0 + $0x144] sm:$0xff]
  %v70 = vld [vmem:[%s0 + $0x14c] sm:$0xf]
  %v71 = vld [vmem:[%s0 + $0x150] sm:$0xff]
  %v72 = vld [vmem:[%s0 + $0x158] sm:$0xf]
  %v73 = vld [vmem:[%s0 + $0x15c] sm:$0xff]
  %v74 = vld [vmem:[%s0 + $0x164] sm:$0xf]
  %v75 = vld [vmem:[%s0 + $0x168] sm:$0xff]
  %v76 = vld [vmem:[%s0 + $0x170] sm:$0xf]
  %v77 = vld [vmem:[%s0 + $0x174] sm:$0xff]
  %v78 = vld [vmem:[%s0 + $0x17c] sm:$0xf]
  %v79 = vld [vmem:[%s0 + $0x180] sm:$0xff]
  %v80 = vld [vmem:[%s0 + $0x188] sm:$0xf]
  %v81 = vld [vmem:[%s0 + $0x18c] sm:$0xff]
  %v82 = vld [vmem:[%s0 + $0x194] sm:$0xf]
  %v83 = vld [vmem:[%s0 + $0x198] sm:$0xff]
  %v84 = vld [vmem:[%s0 + $0x1a0] sm:$0xf]
  %v85 = vld [vmem:[%s0 + $0x1a4] sm:$0xff]
  %v86 = vld [vmem:[%s0 + $0x1ac] sm:$0xf]
  %v87 = vld [vmem:[%s0 + $0x1b0] sm:$0xff]
  %v88 = vld [vmem:[%s0 + $0x1b8] sm:$0xf]
  %v89 = vld [vmem:[%s0 + $0x1bc] sm:$0xff]
  %v90 = vld [vmem:[%s0 + $0x1c4] sm:$0xf]
  %v91 = vld [vmem:[%s0 + $0x1c8] sm:$0xff]
  %v92 = vld [vmem:[%s0 + $0x1d0] sm:$0xf]
  %v93 = vld [vmem:[%s0 + $0x1d4] sm:$0xff]
  %v94 = vld [vmem:[%s0 + $0x1dc] sm:$0xf]
  %v95 = vld [vmem:[%s0 + $0x1e0] sm:$0xff]
  %v96 = vld [vmem:[%s0 + $0x1e8] sm:$0xf]
  %v97 = vld [vmem:[%s0 + $0x1ec] sm:$0xff]
  %v98 = vld [vmem:[%s0 + $0x1f4] sm:$0xf]
  %v99 = vld [vmem:[%s0 + $0x1f8] sm:$0xff]
  %v100 = vld [vmem:[%s0 + $0x200] sm:$0xf]
  %v101 = vld [vmem:[%s0 + $0x204] sm:$0xff]
  %v102 = vld [vmem:[%s0 + $0x20c] sm:$0xf]
  %v103 = vld [vmem:[%s0 + $0x210] sm:$0xff]
  %v104 = vld [vmem:[%s0 + $0x218] sm:$0xf]
  %v105 = vld [vmem:[%s0 + $0x21c] sm:$0xff]
  %v106 = vld [vmem:[%s0 + $0x224] sm:$0xf]
  %v107 = vld [vmem:[%s0 + $0x228] sm:$0xff]
  %v108 = vld [vmem:[%s0 + $0x230] sm:$0xf]
  %v109 = vld [vmem:[%s0 + $0x234] sm:$0xff]
  %v110 = vld [vmem:[%s0 + $0x23c] sm:$0xf]
  %v111 = vld [vmem:[%s0 + $0x240] sm:$0xff]
  %v112 = vld [vmem:[%s0 + $0x248] sm:$0xf]
  %v113 = vld [vmem:[%s0 + $0x24c] sm:$0xff]
  %v114 = vld [vmem:[%s0 + $0x254] sm:$0xf]
  %v115 = vld [vmem:[%s0 + $0x258] sm:$0xff]
  %v116 = vld [vmem:[%s0 + $0x260] sm:$0xf]
  %v117 = vld [vmem:[%s0 + $0x264] sm:$0xff]
  %v118 = vld [vmem:[%s0 + $0x26c] sm:$0xf]
  %v119 = vld [vmem:[%s0 + $0x270] sm:$0xff]
  %v120 = vld [vmem:[%s0 + $0x278] sm:$0xf]
  %v121 = vld [vmem:[%s0 + $0x27c] sm:$0xff]
  %v122 = vld [vmem:[%s0 + $0x284] sm:$0xf]
  %v123 = vld [vmem:[%s0 + $0x288] sm:$0xff]
  %v124 = vld [vmem:[%s0 + $0x290] sm:$0xf]
  %v125 = vld [vmem:[%s0 + $0x294] sm:$0xff]
  %v126 = vld [vmem:[%s0 + $0x29c] sm:$0xf]
  %v127 = vld [vmem:[%s0 + $0x2a0] sm:$0xff]
  %v128 = vld [vmem:[%s0 + $0x2a8] sm:$0xf]
  %v129 = vld [vmem:[%s0 + $0x2ac] sm:$0xff]
  %v130 = vld [vmem:[%s0 + $0x2b4] sm:$0xf]
  %v131 = vld [vmem:[%s0 + $0x2b8] sm:$0xff]
  %v132 = vld [vmem:[%s0 + $0x2c0] sm:$0xf]
  %v133 = vld [vmem:[%s0 + $0x2c4] sm:$0xff]
  %v134 = vld [vmem:[%s0 + $0x2cc] sm:$0xf]
  %v135 = vld [vmem:[%s0 + $0x2d0] sm:$0xff]
  %v136 = vld [vmem:[%s0 + $0x2d8] sm:$0xf]
  %v137 = vld [vmem:[%s0 + $0x2dc] sm:$0xff]
  %v138 = vld [vmem:[%s0 + $0x2e4] sm:$0xf]
  %v139 = vld [vmem:[%s0 + $0x2e8] sm:$0xff]
  %v140 = vld [vmem:[%s0 + $0x2f0] sm:$0xf]
  %v141 = vld [vmem:[%s0 + $0x2f4] sm:$0xff]
  %v142 = vld [vmem:[%s0 + $0x2fc] sm:$0xf]
  %v143 = vld [vmem:[%s1] sm:$0xf]
  %v144 = vld [vmem:[%s1 + $0x4] sm:$0xf]
  %v145 = vld [vmem:[%s1 + $0x8] sm:$0xf]
  %v146 = vld [vmem:[%s1 + $0xc] sm:$0xf]
  %v147 = vld [vmem:[%s1 + $0x10] sm:$0xf]
  %v148 = vld [vmem:[%s1 + $0x14] sm:$0xf]
  %v149 = vld [vmem:[%s1 + $0x18] sm:$0xf]
  %v150 = vld [vmem:[%s1 + $0x1c] sm:$0xf]
  %v151 = vld [vmem:[%s1 + $0x20] sm:$0xf]
  %v152 = vld [vmem:[%s1 + $0x24] sm:$0xf]
  %v153 = vld [vmem:[%s1 + $0x28] sm:$0xf]
  %v154 = vld [vmem:[%s1 + $0x2c] sm:$0xf]
  %v155 = vld [vmem:[%s1 + $0x30] sm:$0xf]
  %v156 = vld [vmem:[%s1 + $0x34] sm:$0xf]
  %v157 = vld [vmem:[%s1 + $0x38] sm:$0xf]
  %v158 = vld [vmem:[%s1 + $0x3c] sm:$0xf]
  %v159 = vld [vmem:[%s1 + $0x40] sm:$0xf]
  %v160 = vld [vmem:[%s1 + $0x44] sm:$0xf]
  %v161 = vld [vmem:[%s1 + $0x48] sm:$0xf]
  %v162 = vld [vmem:[%s1 + $0x4c] sm:$0xf]
  %v163 = vld [vmem:[%s1 + $0x50] sm:$0xf]
  %v164 = vld [vmem:[%s1 + $0x54] sm:$0xf]
  %v165 = vld [vmem:[%s1 + $0x58] sm:$0xf]
  %v166 = vld [vmem:[%s1 + $0x5c] sm:$0xf]
  %v167 = vld [vmem:[%s1 + $0x60] sm:$0xf]
  %v168 = vld [vmem:[%s1 + $0x64] sm:$0xf]
  %v169 = vld [vmem:[%s1 + $0x68] sm:$0xf]
  %v170 = vld [vmem:[%s1 + $0x6c] sm:$0xf]
  %v171 = vld [vmem:[%s1 + $0x70] sm:$0xf]
  %v172 = vld [vmem:[%s1 + $0x74] sm:$0xf]
  %v173 = vld [vmem:[%s1 + $0x78] sm:$0xf]
  %v174 = vld [vmem:[%s1 + $0x7c] sm:$0xf]
  %v175 = vld [vmem:[%s1 + $0x80] sm:$0xf]
  %v176 = vld [vmem:[%s1 + $0x84] sm:$0xf]
  %v177 = vld [vmem:[%s1 + $0x88] sm:$0xf]
  %v178 = vld [vmem:[%s1 + $0x8c] sm:$0xf]
  %v179 = vld [vmem:[%s2] sm:$0x1]
  %v181 = vperm.slane %v179, 0
  %v311 = vunpack.c.l.b16 %v15
  %v312 = vunpack.c.h.b16 %v15
  %v313 = vunpack.c.l.b16 %v16
  %v314 = vunpack.c.l.b16 %v17
  %v315 = vunpack.c.h.b16 %v17
  %v316 = vunpack.c.l.b16 %v18
  %v317 = vunpack.c.l.b16 %v19
  %v318 = vunpack.c.h.b16 %v19
  %v319 = vunpack.c.l.b16 %v20
  %v320 = vunpack.c.l.b16 %v21
  %v321 = vunpack.c.h.b16 %v21
  %v322 = vunpack.c.l.b16 %v22
  %v323 = vunpack.c.l.b16 %v23
  %v324 = vunpack.c.h.b16 %v23
  %v325 = vunpack.c.l.b16 %v24
  %v326 = vunpack.c.l.b16 %v25
  %v327 = vunpack.c.h.b16 %v25
  %v328 = vunpack.c.l.b16 %v26
  %v329 = vunpack.c.l.b16 %v27
  %v330 = vunpack.c.h.b16 %v27
  %v331 = vunpack.c.l.b16 %v28
  %v332 = vunpack.c.l.b16 %v29
  %v333 = vunpack.c.h.b16 %v29
  %v334 = vunpack.c.l.b16 %v30
  %v335 = vunpack.c.l.b16 %v31
  %v336 = vunpack.c.h.b16 %v31
  %v337 = vunpack.c.l.b16 %v32
  %v338 = vunpack.c.l.b16 %v33
  %v339 = vunpack.c.h.b16 %v33
  %v340 = vunpack.c.l.b16 %v34
  %v341 = vunpack.c.l.b16 %v35
  %v342 = vunpack.c.h.b16 %v35
  %v343 = vunpack.c.l.b16 %v36
  %v344 = vunpack.c.l.b16 %v37
  %v345 = vunpack.c.h.b16 %v37
  %v346 = vunpack.c.l.b16 %v38
  %v347 = vunpack.c.l.b16 %v39
  %v348 = vunpack.c.h.b16 %v39
  %v349 = vunpack.c.l.b16 %v40
  %v350 = vunpack.c.l.b16 %v41
  %v351 = vunpack.c.h.b16 %v41
  %v352 = vunpack.c.l.b16 %v42
  %v353 = vunpack.c.l.b16 %v43
  %v354 = vunpack.c.h.b16 %v43
  %v355 = vunpack.c.l.b16 %v44
  %v356 = vunpack.c.l.b16 %v45
  %v357 = vunpack.c.h.b16 %v45
  %v358 = vunpack.c.l.b16 %v46
  %v359 = vunpack.c.l.b16 %v47
  %v360 = vunpack.c.h.b16 %v47
  %v361 = vunpack.c.l.b16 %v48
  %v362 = vunpack.c.l.b16 %v49
  %v363 = vunpack.c.h.b16 %v49
  %v364 = vunpack.c.l.b16 %v50
  %v365 = vunpack.c.l.b16 %v51
  %v366 = vunpack.c.h.b16 %v51
  %v367 = vunpack.c.l.b16 %v52
  %v368 = vunpack.c.l.b16 %v53
  %v369 = vunpack.c.h.b16 %v53
  %v370 = vunpack.c.l.b16 %v54
  %v371 = vunpack.c.l.b16 %v55
  %v372 = vunpack.c.h.b16 %v55
  %v373 = vunpack.c.l.b16 %v56
  %v374 = vunpack.c.l.b16 %v57
  %v375 = vunpack.c.h.b16 %v57
  %v376 = vunpack.c.l.b16 %v58
  %v377 = vunpack.c.l.b16 %v59
  %v378 = vunpack.c.h.b16 %v59
  %v379 = vunpack.c.l.b16 %v60
  %v380 = vunpack.c.l.b16 %v61
  %v381 = vunpack.c.h.b16 %v61
  %v382 = vunpack.c.l.b16 %v62
  %v383 = vunpack.c.l.b16 %v63
  %v384 = vunpack.c.h.b16 %v63
  %v385 = vunpack.c.l.b16 %v64
  %v386 = vunpack.c.l.b16 %v65
  %v387 = vunpack.c.h.b16 %v65
  %v388 = vunpack.c.l.b16 %v66
  %v389 = vunpack.c.l.b16 %v67
  %v390 = vunpack.c.h.b16 %v67
  %v391 = vunpack.c.l.b16 %v68
  %v392 = vunpack.c.l.b16 %v69
  %v393 = vunpack.c.h.b16 %v69
  %v394 = vunpack.c.l.b16 %v70
  %v395 = vunpack.c.l.b16 %v71
  %v396 = vunpack.c.h.b16 %v71
  %v397 = vunpack.c.l.b16 %v72
  %v398 = vunpack.c.l.b16 %v73
  %v399 = vunpack.c.h.b16 %v73
  %v400 = vunpack.c.l.b16 %v74
  %v401 = vunpack.c.l.b16 %v75
  %v402 = vunpack.c.h.b16 %v75
  %v403 = vunpack.c.l.b16 %v76
  %v404 = vunpack.c.l.b16 %v77
  %v405 = vunpack.c.h.b16 %v77
  %v406 = vunpack.c.l.b16 %v78
  %v407 = vunpack.c.l.b16 %v79
  %v408 = vunpack.c.h.b16 %v79
  %v409 = vunpack.c.l.b16 %v80
  %v410 = vunpack.c.l.b16 %v81
  %v411 = vunpack.c.h.b16 %v81
  %v412 = vunpack.c.l.b16 %v82
  %v413 = vunpack.c.l.b16 %v83
  %v414 = vunpack.c.h.b16 %v83
  %v415 = vunpack.c.l.b16 %v84
  %v416 = vunpack.c.l.b16 %v85
  %v417 = vunpack.c.h.b16 %v85
  %v418 = vunpack.c.l.b16 %v86
  %v419 = vunpack.c.l.b16 %v87
  %v420 = vunpack.c.h.b16 %v87
  %v421 = vunpack.c.l.b16 %v88
  %v422 = vunpack.c.l.b16 %v89
  %v423 = vunpack.c.h.b16 %v89
  %v424 = vunpack.c.l.b16 %v90
  %v425 = vunpack.c.l.b16 %v91
  %v426 = vunpack.c.h.b16 %v91
  %v427 = vunpack.c.l.b16 %v92
  %v428 = vunpack.c.l.b16 %v93
  %v429 = vunpack.c.h.b16 %v93
  %v430 = vunpack.c.l.b16 %v94
  %v431 = vunpack.c.l.b16 %v95
  %v432 = vunpack.c.h.b16 %v95
  %v433 = vunpack.c.l.b16 %v96
  %v434 = vunpack.c.l.b16 %v97
  %v435 = vunpack.c.h.b16 %v97
  %v436 = vunpack.c.l.b16 %v98
  %v437 = vunpack.c.l.b16 %v99
  %v438 = vunpack.c.h.b16 %v99
  %v439 = vunpack.c.l.b16 %v100
  %v440 = vunpack.c.l.b16 %v101
  %v441 = vunpack.c.h.b16 %v101
  %v442 = vunpack.c.l.b16 %v102
  %v443 = vunpack.c.l.b16 %v103
  %v444 = vunpack.c.h.b16 %v103
  %v445 = vunpack.c.l.b16 %v104
  %v446 = vunpack.c.l.b16 %v105
  %v447 = vunpack.c.h.b16 %v105
  %v448 = vunpack.c.l.b16 %v106
  %v449 = vunpack.c.l.b16 %v107
  %v450 = vunpack.c.h.b16 %v107
  %v451 = vunpack.c.l.b16 %v108
  %v452 = vunpack.c.l.b16 %v109
  %v453 = vunpack.c.h.b16 %v109
  %v454 = vunpack.c.l.b16 %v110
  %v455 = vunpack.c.l.b16 %v111
  %v456 = vunpack.c.h.b16 %v111
  %v457 = vunpack.c.l.b16 %v112
  %v458 = vunpack.c.l.b16 %v113
  %v459 = vunpack.c.h.b16 %v113
  %v460 = vunpack.c.l.b16 %v114
  %v461 = vunpack.c.l.b16 %v115
  %v462 = vunpack.c.h.b16 %v115
  %v463 = vunpack.c.l.b16 %v116
  %v464 = vunpack.c.l.b16 %v117
  %v465 = vunpack.c.h.b16 %v117
  %v466 = vunpack.c.l.b16 %v118
  %v467 = vunpack.c.l.b16 %v119
  %v468 = vunpack.c.h.b16 %v119
  %v469 = vunpack.c.l.b16 %v120
  %v470 = vunpack.c.l.b16 %v121
  %v471 = vunpack.c.h.b16 %v121
  %v472 = vunpack.c.l.b16 %v122
  %v473 = vunpack.c.l.b16 %v123
  %v474 = vunpack.c.h.b16 %v123
  %v475 = vunpack.c.l.b16 %v124
  %v476 = vunpack.c.l.b16 %v125
  %v477 = vunpack.c.h.b16 %v125
  %v478 = vunpack.c.l.b16 %v126
  %v479 = vunpack.c.l.b16 %v127
  %v480 = vunpack.c.h.b16 %v127
  %v481 = vunpack.c.l.b16 %v128
  %v482 = vunpack.c.l.b16 %v129
  %v483 = vunpack.c.h.b16 %v129
  %v484 = vunpack.c.l.b16 %v130
  %v485 = vunpack.c.l.b16 %v131
  %v486 = vunpack.c.h.b16 %v131
  %v487 = vunpack.c.l.b16 %v132
  %v488 = vunpack.c.l.b16 %v133
  %v489 = vunpack.c.h.b16 %v133
  %v490 = vunpack.c.l.b16 %v134
  %v491 = vunpack.c.l.b16 %v135
  %v492 = vunpack.c.h.b16 %v135
  %v493 = vunpack.c.l.b16 %v136
  %v494 = vunpack.c.l.b16 %v137
  %v495 = vunpack.c.h.b16 %v137
  %v496 = vunpack.c.l.b16 %v138
  %v497 = vunpack.c.l.b16 %v139
  %v498 = vunpack.c.h.b16 %v139
  %v499 = vunpack.c.l.b16 %v140
  %v500 = vunpack.c.l.b16 %v141
  %v501 = vunpack.c.h.b16 %v141
  %v502 = vunpack.c.l.b16 %v142
  %v503 = vpack.c.b16 %v314, %v311
  %v504 = vpack.c.b16 %v315, %v312
  %v505 = vpack.c.b16 %v316, %v313
  %v506 = vpack.c.b16 %v320, %v317
  %v507 = vpack.c.b16 %v321, %v318
  %v508 = vpack.c.b16 %v322, %v319
  %v509 = vpack.c.b16 %v326, %v323
  %v510 = vpack.c.b16 %v327, %v324
  %v511 = vpack.c.b16 %v328, %v325
  %v512 = vpack.c.b16 %v332, %v329
  %v513 = vpack.c.b16 %v333, %v330
  %v514 = vpack.c.b16 %v334, %v331
  %v515 = vpack.c.b16 %v338, %v335
  %v516 = vpack.c.b16 %v339, %v336
  %v517 = vpack.c.b16 %v340, %v337
  %v518 = vpack.c.b16 %v344, %v341
  %v519 = vpack.c.b16 %v345, %v342
  %v520 = vpack.c.b16 %v346, %v343
  %v521 = vpack.c.b16 %v350, %v347
  %v522 = vpack.c.b16 %v351, %v348
  %v523 = vpack.c.b16 %v352, %v349
  %v524 = vpack.c.b16 %v356, %v353
  %v525 = vpack.c.b16 %v357, %v354
  %v526 = vpack.c.b16 %v358, %v355
  %v527 = vpack.c.b16 %v362, %v359
  %v528 = vpack.c.b16 %v363, %v360
  %v529 = vpack.c.b16 %v364, %v361
  %v530 = vpack.c.b16 %v368, %v365
  %v531 = vpack.c.b16 %v369, %v366
  %v532 = vpack.c.b16 %v370, %v367
  %v533 = vpack.c.b16 %v374, %v371
  %v534 = vpack.c.b16 %v375, %v372
  %v535 = vpack.c.b16 %v376, %v373
  %v536 = vpack.c.b16 %v380, %v377
  %v537 = vpack.c.b16 %v381, %v378
  %v538 = vpack.c.b16 %v382, %v379
  %v539 = vpack.c.b16 %v386, %v383
  %v540 = vpack.c.b16 %v387, %v384
  %v541 = vpack.c.b16 %v388, %v385
  %v542 = vpack.c.b16 %v392, %v389
  %v543 = vpack.c.b16 %v393, %v390
  %v544 = vpack.c.b16 %v394, %v391
  %v545 = vpack.c.b16 %v398, %v395
  %v546 = vpack.c.b16 %v399, %v396
  %v547 = vpack.c.b16 %v400, %v397
  %v548 = vpack.c.b16 %v404, %v401
  %v549 = vpack.c.b16 %v405, %v402
  %v550 = vpack.c.b16 %v406, %v403
  %v551 = vpack.c.b16 %v410, %v407
  %v552 = vpack.c.b16 %v411, %v408
  %v553 = vpack.c.b16 %v412, %v409
  %v554 = vpack.c.b16 %v416, %v413
  %v555 = vpack.c.b16 %v417, %v414
  %v556 = vpack.c.b16 %v418, %v415
  %v557 = vpack.c.b16 %v422, %v419
  %v558 = vpack.c.b16 %v423, %v420
  %v559 = vpack.c.b16 %v424, %v421
  %v560 = vpack.c.b16 %v428, %v425
  %v561 = vpack.c.b16 %v429, %v426
  %v562 = vpack.c.b16 %v430, %v427
  %v563 = vpack.c.b16 %v434, %v431
  %v564 = vpack.c.b16 %v435, %v432
  %v565 = vpack.c.b16 %v436, %v433
  %v566 = vpack.c.b16 %v440, %v437
  %v567 = vpack.c.b16 %v441, %v438
  %v568 = vpack.c.b16 %v442, %v439
  %v569 = vpack.c.b16 %v446, %v443
  %v570 = vpack.c.b16 %v447, %v444
  %v571 = vpack.c.b16 %v448, %v445
  %v572 = vpack.c.b16 %v452, %v449
  %v573 = vpack.c.b16 %v453, %v450
  %v574 = vpack.c.b16 %v454, %v451
  %v575 = vpack.c.b16 %v458, %v455
  %v576 = vpack.c.b16 %v459, %v456
  %v577 = vpack.c.b16 %v460, %v457
  %v578 = vpack.c.b16 %v464, %v461
  %v579 = vpack.c.b16 %v465, %v462
  %v580 = vpack.c.b16 %v466, %v463
  %v581 = vpack.c.b16 %v470, %v467
  %v582 = vpack.c.b16 %v471, %v468
  %v583 = vpack.c.b16 %v472, %v469
  %v584 = vpack.c.b16 %v476, %v473
  %v585 = vpack.c.b16 %v477, %v474
  %v586 = vpack.c.b16 %v478, %v475
  %v587 = vpack.c.b16 %v482, %v479
  %v588 = vpack.c.b16 %v483, %v480
  %v589 = vpack.c.b16 %v484, %v481
  %v590 = vpack.c.b16 %v488, %v485
  %v591 = vpack.c.b16 %v489, %v486
  %v592 = vpack.c.b16 %v490, %v487
  %v593 = vpack.c.b16 %v494, %v491
  %v594 = vpack.c.b16 %v495, %v492
  %v595 = vpack.c.b16 %v496, %v493
  %v596 = vpack.c.b16 %v500, %v497
  %v597 = vpack.c.b16 %v501, %v498
  %v598 = vpack.c.b16 %v502, %v499
  %v699 = vunpack.c.l.b16 %v143
  %v700 = vunpack.c.l.b16 %v144
  %v701 = vunpack.c.l.b16 %v145
  %v702 = vunpack.c.l.b16 %v146
  %v703 = vunpack.c.l.b16 %v147
  %v704 = vunpack.c.l.b16 %v148
  %v705 = vunpack.c.l.b16 %v149
  %v706 = vunpack.c.l.b16 %v150
  %v707 = vunpack.c.l.b16 %v151
  %v708 = vunpack.c.l.b16 %v152
  %v709 = vunpack.c.l.b16 %v153
  %v710 = vunpack.c.l.b16 %v154
  %v711 = vunpack.c.l.b16 %v155
  %v712 = vunpack.c.l.b16 %v156
  %v713 = vunpack.c.l.b16 %v157
  %v714 = vunpack.c.l.b16 %v158
  %v715 = vunpack.c.l.b16 %v159
  %v716 = vunpack.c.l.b16 %v160
  %v717 = vunpack.c.l.b16 %v161
  %v718 = vunpack.c.l.b16 %v162
  %v719 = vunpack.c.l.b16 %v163
  %v720 = vunpack.c.l.b16 %v164
  %v721 = vunpack.c.l.b16 %v165
  %v722 = vunpack.c.l.b16 %v166
  %v723 = vunpack.c.l.b16 %v167
  %v724 = vunpack.c.l.b16 %v168
  %v725 = vunpack.c.l.b16 %v169
  %v726 = vunpack.c.l.b16 %v170
  %v727 = vunpack.c.l.b16 %v171
  %v728 = vunpack.c.l.b16 %v172
  %v729 = vunpack.c.l.b16 %v173
  %v730 = vunpack.c.l.b16 %v174
  %v731 = vunpack.c.l.b16 %v175
  %v732 = vunpack.c.l.b16 %v176
  %v733 = vunpack.c.l.b16 %v177
  %v734 = vunpack.c.l.b16 %v178
  %v735 = vpack.c.b16 %v700, %v699
  %v736 = vpack.c.b16 %v702, %v701
  %v737 = vpack.c.b16 %v704, %v703
  %v738 = vpack.c.b16 %v706, %v705
  %v739 = vpack.c.b16 %v708, %v707
  %v740 = vpack.c.b16 %v710, %v709
  %v741 = vpack.c.b16 %v712, %v711
  %v742 = vpack.c.b16 %v714, %v713
  %v743 = vpack.c.b16 %v716, %v715
  %v744 = vpack.c.b16 %v718, %v717
  %v745 = vpack.c.b16 %v720, %v719
  %v746 = vpack.c.b16 %v722, %v721
  %v747 = vpack.c.b16 %v724, %v723
  %v748 = vpack.c.b16 %v726, %v725
  %v749 = vpack.c.b16 %v728, %v727
  %v750 = vpack.c.b16 %v730, %v729
  %v751 = vpack.c.b16 %v732, %v731
  %v752 = vpack.c.b16 %v734, %v733
  %vm771 = vcmask 261120
  %v773 = vsel %vm771, %v505, 0
  %v776 = vsel %vm771, %v508, 0
  %v779 = vsel %vm771, %v511, 0
  %v782 = vsel %vm771, %v514, 0
  %v785 = vsel %vm771, %v517, 0
  %v788 = vsel %vm771, %v520, 0
  %v791 = vsel %vm771, %v523, 0
  %v794 = vsel %vm771, %v526, 0
  %v797 = vsel %vm771, %v529, 0
  %v800 = vsel %vm771, %v532, 0
  %v803 = vsel %vm771, %v535, 0
  %v806 = vsel %vm771, %v538, 0
  %v809 = vsel %vm771, %v541, 0
  %v812 = vsel %vm771, %v544, 0
  %v815 = vsel %vm771, %v547, 0
  %v818 = vsel %vm771, %v550, 0
  %v821 = vsel %vm771, %v553, 0
  %v824 = vsel %vm771, %v556, 0
  %v827 = vsel %vm771, %v559, 0
  %v830 = vsel %vm771, %v562, 0
  %v833 = vsel %vm771, %v565, 0
  %v836 = vsel %vm771, %v568, 0
  %v839 = vsel %vm771, %v571, 0
  %v842 = vsel %vm771, %v574, 0
  %v845 = vsel %vm771, %v577, 0
  %v848 = vsel %vm771, %v580, 0
  %v851 = vsel %vm771, %v583, 0
  %v854 = vsel %vm771, %v586, 0
  %v857 = vsel %vm771, %v589, 0
  %v860 = vsel %vm771, %v592, 0
  %v863 = vsel %vm771, %v595, 0
  %v866 = vsel %vm771, %v598, 0
  %868 = vmatpush.bf16.msra.mxu0 %v742
  %869 = vmatpush.bf16.msra.mxu0 %v741
  %870 = vmatpush.bf16.msra.mxu0 %v740
  %871 = vmatpush.bf16.msra.mxu0 %v739
  %872 = vmatpush.bf16.msra.mxu0 %v738
  %873 = vmatpush.bf16.msra.mxu0 %v737
  %874 = vmatpush.bf16.msra.mxu0 %v736
  %875 = vmatpush.bf16.msra.mxu0 %v735
  %876 = vmatmul.bf16.gmra.mxu0 %v503
  %v877 = vpop.f32.mrf.mxu0
  %v878 = vadd.f32 %v181, %v877
  %v879 = vpop.f32.mrf.mxu0
  %v880 = vadd.f32 %v181, %v879
  %881 = vmatmul.bf16.gmra.mxu0 %v506
  %v882 = vpop.f32.mrf.mxu0
  %v883 = vadd.f32 %v181, %v882
  %v884 = vpop.f32.mrf.mxu0
  %v885 = vadd.f32 %v181, %v884
  %886 = vmatmul.bf16.gmra.mxu0 %v509
  %v887 = vpop.f32.mrf.mxu0
  %v888 = vadd.f32 %v181, %v887
  %v889 = vpop.f32.mrf.mxu0
  %v890 = vadd.f32 %v181, %v889
  %891 = vmatmul.bf16.gmra.mxu0 %v512
  %v892 = vpop.f32.mrf.mxu0
  %v893 = vadd.f32 %v181, %v892
  %v894 = vpop.f32.mrf.mxu0
  %v895 = vadd.f32 %v181, %v894
  %896 = vmatmul.bf16.gmra.mxu0 %v515
  %v897 = vpop.f32.mrf.mxu0
  %v898 = vadd.f32 %v181, %v897
  %v899 = vpop.f32.mrf.mxu0
  %v900 = vadd.f32 %v181, %v899
  %901 = vmatmul.bf16.gmra.mxu0 %v518
  %v902 = vpop.f32.mrf.mxu0
  %v903 = vadd.f32 %v181, %v902
  %v904 = vpop.f32.mrf.mxu0
  %v905 = vadd.f32 %v181, %v904
  %906 = vmatmul.bf16.gmra.mxu0 %v521
  %v907 = vpop.f32.mrf.mxu0
  %v908 = vadd.f32 %v181, %v907
  %v909 = vpop.f32.mrf.mxu0
  %v910 = vadd.f32 %v181, %v909
  %911 = vmatmul.bf16.gmra.mxu0 %v524
  %v912 = vpop.f32.mrf.mxu0
  %v913 = vadd.f32 %v181, %v912
  %v914 = vpop.f32.mrf.mxu0
  %v915 = vadd.f32 %v181, %v914
  %916 = vmatmul.bf16.gmra.mxu0 %v527
  %v917 = vpop.f32.mrf.mxu0
  %v918 = vadd.f32 %v181, %v917
  %v919 = vpop.f32.mrf.mxu0
  %v920 = vadd.f32 %v181, %v919
  %921 = vmatmul.bf16.gmra.mxu0 %v530
  %v922 = vpop.f32.mrf.mxu0
  %v923 = vadd.f32 %v181, %v922
  %v924 = vpop.f32.mrf.mxu0
  %v925 = vadd.f32 %v181, %v924
  %926 = vmatmul.bf16.gmra.mxu0 %v533
  %v927 = vpop.f32.mrf.mxu0
  %v928 = vadd.f32 %v181, %v927
  %v929 = vpop.f32.mrf.mxu0
  %v930 = vadd.f32 %v181, %v929
  %931 = vmatmul.bf16.gmra.mxu0 %v536
  %v932 = vpop.f32.mrf.mxu0
  %v933 = vadd.f32 %v181, %v932
  %v934 = vpop.f32.mrf.mxu0
  %v935 = vadd.f32 %v181, %v934
  %936 = vmatmul.bf16.gmra.mxu0 %v539
  %v937 = vpop.f32.mrf.mxu0
  %v938 = vadd.f32 %v181, %v937
  %v939 = vpop.f32.mrf.mxu0
  %v940 = vadd.f32 %v181, %v939
  %941 = vmatmul.bf16.gmra.mxu0 %v542
  %v942 = vpop.f32.mrf.mxu0
  %v943 = vadd.f32 %v181, %v942
  %v944 = vpop.f32.mrf.mxu0
  %v945 = vadd.f32 %v181, %v944
  %946 = vmatmul.bf16.gmra.mxu0 %v545
  %v947 = vpop.f32.mrf.mxu0
  %v948 = vadd.f32 %v181, %v947
  %v949 = vpop.f32.mrf.mxu0
  %v950 = vadd.f32 %v181, %v949
  %951 = vmatmul.bf16.gmra.mxu0 %v548
  %v952 = vpop.f32.mrf.mxu0
  %v953 = vadd.f32 %v181, %v952
  %v954 = vpop.f32.mrf.mxu0
  %v955 = vadd.f32 %v181, %v954
  %956 = vmatmul.bf16.gmra.mxu0 %v551
  %v957 = vpop.f32.mrf.mxu0
  %v958 = vadd.f32 %v181, %v957
  %v959 = vpop.f32.mrf.mxu0
  %v960 = vadd.f32 %v181, %v959
  %961 = vmatmul.bf16.gmra.mxu0 %v554
  %v962 = vpop.f32.mrf.mxu0
  %v963 = vadd.f32 %v181, %v962
  %v964 = vpop.f32.mrf.mxu0
  %v965 = vadd.f32 %v181, %v964
  %966 = vmatmul.bf16.gmra.mxu0 %v557
  %v967 = vpop.f32.mrf.mxu0
  %v968 = vadd.f32 %v181, %v967
  %v969 = vpop.f32.mrf.mxu0
  %v970 = vadd.f32 %v181, %v969
  %971 = vmatmul.bf16.gmra.mxu0 %v560
  %v972 = vpop.f32.mrf.mxu0
  %v973 = vadd.f32 %v181, %v972
  %v974 = vpop.f32.mrf.mxu0
  %v975 = vadd.f32 %v181, %v974
  %976 = vmatmul.bf16.gmra.mxu0 %v563
  %v977 = vpop.f32.mrf.mxu0
  %v978 = vadd.f32 %v181, %v977
  %v979 = vpop.f32.mrf.mxu0
  %v980 = vadd.f32 %v181, %v979
  %981 = vmatmul.bf16.gmra.mxu0 %v566
  %v982 = vpop.f32.mrf.mxu0
  %v983 = vadd.f32 %v181, %v982
  %v984 = vpop.f32.mrf.mxu0
  %v985 = vadd.f32 %v181, %v984
  %986 = vmatmul.bf16.gmra.mxu0 %v569
  %v987 = vpop.f32.mrf.mxu0
  %v988 = vadd.f32 %v181, %v987
  %v989 = vpop.f32.mrf.mxu0
  %v990 = vadd.f32 %v181, %v989
  %991 = vmatmul.bf16.gmra.mxu0 %v572
  %v992 = vpop.f32.mrf.mxu0
  %v993 = vadd.f32 %v181, %v992
  %v994 = vpop.f32.mrf.mxu0
  %v995 = vadd.f32 %v181, %v994
  %996 = vmatmul.bf16.gmra.mxu0 %v575
  %v997 = vpop.f32.mrf.mxu0
  %v998 = vadd.f32 %v181, %v997
  %v999 = vpop.f32.mrf.mxu0
  %v1000 = vadd.f32 %v181, %v999
  %1001 = vmatmul.bf16.gmra.mxu0 %v578
  %v1002 = vpop.f32.mrf.mxu0
  %v1003 = vadd.f32 %v181, %v1002
  %v1004 = vpop.f32.mrf.mxu0
  %v1005 = vadd.f32 %v181, %v1004
  %1006 = vmatmul.bf16.gmra.mxu0 %v581
  %v1007 = vpop.f32.mrf.mxu0
  %v1008 = vadd.f32 %v181, %v1007
  %v1009 = vpop.f32.mrf.mxu0
  %v1010 = vadd.f32 %v181, %v1009
  %1011 = vmatmul.bf16.gmra.mxu0 %v584
  %v1012 = vpop.f32.mrf.mxu0
  %v1013 = vadd.f32 %v181, %v1012
  %v1014 = vpop.f32.mrf.mxu0
  %v1015 = vadd.f32 %v181, %v1014
  %1016 = vmatmul.bf16.gmra.mxu0 %v587
  %v1017 = vpop.f32.mrf.mxu0
  %v1018 = vadd.f32 %v181, %v1017
  %v1019 = vpop.f32.mrf.mxu0
  %v1020 = vadd.f32 %v181, %v1019
  %1021 = vmatmul.bf16.gmra.mxu0 %v590
  %v1022 = vpop.f32.mrf.mxu0
  %v1023 = vadd.f32 %v181, %v1022
  %v1024 = vpop.f32.mrf.mxu0
  %v1025 = vadd.f32 %v181, %v1024
  %1026 = vmatmul.bf16.gmra.mxu0 %v593
  %v1027 = vpop.f32.mrf.mxu0
  %v1028 = vadd.f32 %v181, %v1027
  %v1029 = vpop.f32.mrf.mxu0
  %v1030 = vadd.f32 %v181, %v1029
  %1031 = vmatmul.bf16.gmra.mxu0 %v596
  %v1032 = vpop.f32.mrf.mxu0
  %v1033 = vadd.f32 %v181, %v1032
  %v1034 = vpop.f32.mrf.mxu0
  %v1035 = vadd.f32 %v181, %v1034
  %1036 = vdwg.mxu0
  %1037 = vmatpush.bf16.msra.mxu0 %v750
  %1038 = vmatpush.bf16.msra.mxu0 %v749
  %1039 = vmatpush.bf16.msra.mxu0 %v748
  %1040 = vmatpush.bf16.msra.mxu0 %v747
  %1041 = vmatpush.bf16.msra.mxu0 %v746
  %1042 = vmatpush.bf16.msra.mxu0 %v745
  %1043 = vmatpush.bf16.msra.mxu0 %v744
  %1044 = vmatpush.bf16.msra.mxu0 %v743
  %1045 = vmatmul.bf16.gmra.mxu0 %v504
  %v1046 = vpop.f32.mrf.mxu0
  %v1047 = vadd.f32 %v878, %v1046
  %v1048 = vpop.f32.mrf.mxu0
  %v1049 = vadd.f32 %v880, %v1048
  %1050 = vmatmul.bf16.gmra.mxu0 %v507
  %v1051 = vpop.f32.mrf.mxu0
  %v1052 = vadd.f32 %v883, %v1051
  %v1053 = vpop.f32.mrf.mxu0
  %v1054 = vadd.f32 %v885, %v1053
  %1055 = vmatmul.bf16.gmra.mxu0 %v510
  %v1056 = vpop.f32.mrf.mxu0
  %v1057 = vadd.f32 %v888, %v1056
  %v1058 = vpop.f32.mrf.mxu0
  %v1059 = vadd.f32 %v890, %v1058
  %1060 = vmatmul.bf16.gmra.mxu0 %v513
  %v1061 = vpop.f32.mrf.mxu0
  %v1062 = vadd.f32 %v893, %v1061
  %v1063 = vpop.f32.mrf.mxu0
  %v1064 = vadd.f32 %v895, %v1063
  %1065 = vmatmul.bf16.gmra.mxu0 %v516
  %v1066 = vpop.f32.mrf.mxu0
  %v1067 = vadd.f32 %v898, %v1066
  %v1068 = vpop.f32.mrf.mxu0
  %v1069 = vadd.f32 %v900, %v1068
  %1070 = vmatmul.bf16.gmra.mxu0 %v519
  %v1071 = vpop.f32.mrf.mxu0
  %v1072 = vadd.f32 %v903, %v1071
  %v1073 = vpop.f32.mrf.mxu0
  %v1074 = vadd.f32 %v905, %v1073
  %1075 = vmatmul.bf16.gmra.mxu0 %v522
  %v1076 = vpop.f32.mrf.mxu0
  %v1077 = vadd.f32 %v908, %v1076
  %v1078 = vpop.f32.mrf.mxu0
  %v1079 = vadd.f32 %v910, %v1078
  %1080 = vmatmul.bf16.gmra.mxu0 %v525
  %v1081 = vpop.f32.mrf.mxu0
  %v1082 = vadd.f32 %v913, %v1081
  %v1083 = vpop.f32.mrf.mxu0
  %v1084 = vadd.f32 %v915, %v1083
  %1085 = vmatmul.bf16.gmra.mxu0 %v528
  %v1086 = vpop.f32.mrf.mxu0
  %v1087 = vadd.f32 %v918, %v1086
  %v1088 = vpop.f32.mrf.mxu0
  %v1089 = vadd.f32 %v920, %v1088
  %1090 = vmatmul.bf16.gmra.mxu0 %v531
  %v1091 = vpop.f32.mrf.mxu0
  %v1092 = vadd.f32 %v923, %v1091
  %v1093 = vpop.f32.mrf.mxu0
  %v1094 = vadd.f32 %v925, %v1093
  %1095 = vmatmul.bf16.gmra.mxu0 %v534
  %v1096 = vpop.f32.mrf.mxu0
  %v1097 = vadd.f32 %v928, %v1096
  %v1098 = vpop.f32.mrf.mxu0
  %v1099 = vadd.f32 %v930, %v1098
  %1100 = vmatmul.bf16.gmra.mxu0 %v537
  %v1101 = vpop.f32.mrf.mxu0
  %v1102 = vadd.f32 %v933, %v1101
  %v1103 = vpop.f32.mrf.mxu0
  %v1104 = vadd.f32 %v935, %v1103
  %1105 = vmatmul.bf16.gmra.mxu0 %v540
  %v1106 = vpop.f32.mrf.mxu0
  %v1107 = vadd.f32 %v938, %v1106
  %v1108 = vpop.f32.mrf.mxu0
  %v1109 = vadd.f32 %v940, %v1108
  %1110 = vmatmul.bf16.gmra.mxu0 %v543
  %v1111 = vpop.f32.mrf.mxu0
  %v1112 = vadd.f32 %v943, %v1111
  %v1113 = vpop.f32.mrf.mxu0
  %v1114 = vadd.f32 %v945, %v1113
  %1115 = vmatmul.bf16.gmra.mxu0 %v546
  %v1116 = vpop.f32.mrf.mxu0
  %v1117 = vadd.f32 %v948, %v1116
  %v1118 = vpop.f32.mrf.mxu0
  %v1119 = vadd.f32 %v950, %v1118
  %1120 = vmatmul.bf16.gmra.mxu0 %v549
  %v1121 = vpop.f32.mrf.mxu0
  %v1122 = vadd.f32 %v953, %v1121
  %v1123 = vpop.f32.mrf.mxu0
  %v1124 = vadd.f32 %v955, %v1123
  %1125 = vmatmul.bf16.gmra.mxu0 %v552
  %v1126 = vpop.f32.mrf.mxu0
  %v1127 = vadd.f32 %v958, %v1126
  %v1128 = vpop.f32.mrf.mxu0
  %v1129 = vadd.f32 %v960, %v1128
  %1130 = vmatmul.bf16.gmra.mxu0 %v555
  %v1131 = vpop.f32.mrf.mxu0
  %v1132 = vadd.f32 %v963, %v1131
  %v1133 = vpop.f32.mrf.mxu0
  %v1134 = vadd.f32 %v965, %v1133
  %1135 = vmatmul.bf16.gmra.mxu0 %v558
  %v1136 = vpop.f32.mrf.mxu0
  %v1137 = vadd.f32 %v968, %v1136
  %v1138 = vpop.f32.mrf.mxu0
  %v1139 = vadd.f32 %v970, %v1138
  %1140 = vmatmul.bf16.gmra.mxu0 %v561
  %v1141 = vpop.f32.mrf.mxu0
  %v1142 = vadd.f32 %v973, %v1141
  %v1143 = vpop.f32.mrf.mxu0
  %v1144 = vadd.f32 %v975, %v1143
  %1145 = vmatmul.bf16.gmra.mxu0 %v564
  %v1146 = vpop.f32.mrf.mxu0
  %v1147 = vadd.f32 %v978, %v1146
  %v1148 = vpop.f32.mrf.mxu0
  %v1149 = vadd.f32 %v980, %v1148
  %1150 = vmatmul.bf16.gmra.mxu0 %v567
  %v1151 = vpop.f32.mrf.mxu0
  %v1152 = vadd.f32 %v983, %v1151
  %v1153 = vpop.f32.mrf.mxu0
  %v1154 = vadd.f32 %v985, %v1153
  %1155 = vmatmul.bf16.gmra.mxu0 %v570
  %v1156 = vpop.f32.mrf.mxu0
  %v1157 = vadd.f32 %v988, %v1156
  %v1158 = vpop.f32.mrf.mxu0
  %v1159 = vadd.f32 %v990, %v1158
  %1160 = vmatmul.bf16.gmra.mxu0 %v573
  %v1161 = vpop.f32.mrf.mxu0
  %v1162 = vadd.f32 %v993, %v1161
  %v1163 = vpop.f32.mrf.mxu0
  %v1164 = vadd.f32 %v995, %v1163
  %1165 = vmatmul.bf16.gmra.mxu0 %v576
  %v1166 = vpop.f32.mrf.mxu0
  %v1167 = vadd.f32 %v998, %v1166
  %v1168 = vpop.f32.mrf.mxu0
  %v1169 = vadd.f32 %v1000, %v1168
  %1170 = vmatmul.bf16.gmra.mxu0 %v579
  %v1171 = vpop.f32.mrf.mxu0
  %v1172 = vadd.f32 %v1003, %v1171
  %v1173 = vpop.f32.mrf.mxu0
  %v1174 = vadd.f32 %v1005, %v1173
  %1175 = vmatmul.bf16.gmra.mxu0 %v582
  %v1176 = vpop.f32.mrf.mxu0
  %v1177 = vadd.f32 %v1008, %v1176
  %v1178 = vpop.f32.mrf.mxu0
  %v1179 = vadd.f32 %v1010, %v1178
  %1180 = vmatmul.bf16.gmra.mxu0 %v585
  %v1181 = vpop.f32.mrf.mxu0
  %v1182 = vadd.f32 %v1013, %v1181
  %v1183 = vpop.f32.mrf.mxu0
  %v1184 = vadd.f32 %v1015, %v1183
  %1185 = vmatmul.bf16.gmra.mxu0 %v588
  %v1186 = vpop.f32.mrf.mxu0
  %v1187 = vadd.f32 %v1018, %v1186
  %v1188 = vpop.f32.mrf.mxu0
  %v1189 = vadd.f32 %v1020, %v1188
  %1190 = vmatmul.bf16.gmra.mxu0 %v591
  %v1191 = vpop.f32.mrf.mxu0
  %v1192 = vadd.f32 %v1023, %v1191
  %v1193 = vpop.f32.mrf.mxu0
  %v1194 = vadd.f32 %v1025, %v1193
  %1195 = vmatmul.bf16.gmra.mxu0 %v594
  %v1196 = vpop.f32.mrf.mxu0
  %v1197 = vadd.f32 %v1028, %v1196
  %v1198 = vpop.f32.mrf.mxu0
  %v1199 = vadd.f32 %v1030, %v1198
  %1200 = vmatmul.bf16.gmra.mxu0 %v597
  %v1201 = vpop.f32.mrf.mxu0
  %v1202 = vadd.f32 %v1033, %v1201
  %v1203 = vpop.f32.mrf.mxu0
  %v1204 = vadd.f32 %v1035, %v1203
  %1205 = vdwg.mxu0
  %1206 = vmatpush.bf16.msra.mxu0 0
  %1207 = vmatpush.bf16.msra.mxu0 0
  %1208 = vmatpush.bf16.msra.mxu0 0
  %1209 = vmatpush.bf16.msra.mxu0 0
  %1210 = vmatpush.bf16.msra.mxu0 0
  %1211 = vmatpush.bf16.msra.mxu0 0
  %1212 = vmatpush.bf16.msra.mxu0 %v752
  %1213 = vmatpush.bf16.msra.mxu0 %v751
  %1214 = vmatmul.bf16.gmra.mxu0 %v773
  %v1215 = vpop.f32.mrf.mxu0
  %v1216 = vadd.f32 %v1047, %v1215
  %v1217 = vpop.f32.mrf.mxu0
  %v1218 = vadd.f32 %v1049, %v1217
  %1219 = vmatmul.bf16.gmra.mxu0 %v776
  %v1220 = vpop.f32.mrf.mxu0
  %v1221 = vadd.f32 %v1052, %v1220
  %v1222 = vpop.f32.mrf.mxu0
  %v1223 = vadd.f32 %v1054, %v1222
  %1224 = vmatmul.bf16.gmra.mxu0 %v779
  %v1225 = vpop.f32.mrf.mxu0
  %v1226 = vadd.f32 %v1057, %v1225
  %v1227 = vpop.f32.mrf.mxu0
  %v1228 = vadd.f32 %v1059, %v1227
  %1229 = vmatmul.bf16.gmra.mxu0 %v782
  %v1230 = vpop.f32.mrf.mxu0
  %v1231 = vadd.f32 %v1062, %v1230
  %v1232 = vpop.f32.mrf.mxu0
  %v1233 = vadd.f32 %v1064, %v1232
  %1234 = vmatmul.bf16.gmra.mxu0 %v785
  %v1235 = vpop.f32.mrf.mxu0
  %v1236 = vadd.f32 %v1067, %v1235
  %v1237 = vpop.f32.mrf.mxu0
  %v1238 = vadd.f32 %v1069, %v1237
  %1239 = vmatmul.bf16.gmra.mxu0 %v788
  %v1240 = vpop.f32.mrf.mxu0
  %v1241 = vadd.f32 %v1072, %v1240
  %v1242 = vpop.f32.mrf.mxu0
  %v1243 = vadd.f32 %v1074, %v1242
  %1244 = vmatmul.bf16.gmra.mxu0 %v791
  %v1245 = vpop.f32.mrf.mxu0
  %v1246 = vadd.f32 %v1077, %v1245
  %v1247 = vpop.f32.mrf.mxu0
  %v1248 = vadd.f32 %v1079, %v1247
  %1249 = vmatmul.bf16.gmra.mxu0 %v794
  %v1250 = vpop.f32.mrf.mxu0
  %v1251 = vadd.f32 %v1082, %v1250
  %v1252 = vpop.f32.mrf.mxu0
  %v1253 = vadd.f32 %v1084, %v1252
  %1254 = vmatmul.bf16.gmra.mxu0 %v797
  %v1255 = vpop.f32.mrf.mxu0
  %v1256 = vadd.f32 %v1087, %v1255
  %v1257 = vpop.f32.mrf.mxu0
  %v1258 = vadd.f32 %v1089, %v1257
  %1259 = vmatmul.bf16.gmra.mxu0 %v800
  %v1260 = vpop.f32.mrf.mxu0
  %v1261 = vadd.f32 %v1092, %v1260
  %v1262 = vpop.f32.mrf.mxu0
  %v1263 = vadd.f32 %v1094, %v1262
  %1264 = vmatmul.bf16.gmra.mxu0 %v803
  %v1265 = vpop.f32.mrf.mxu0
  %v1266 = vadd.f32 %v1097, %v1265
  %v1267 = vpop.f32.mrf.mxu0
  %v1268 = vadd.f32 %v1099, %v1267
  %1269 = vmatmul.bf16.gmra.mxu0 %v806
  %v1270 = vpop.f32.mrf.mxu0
  %v1271 = vadd.f32 %v1102, %v1270
  %v1272 = vpop.f32.mrf.mxu0
  %v1273 = vadd.f32 %v1104, %v1272
  %1274 = vmatmul.bf16.gmra.mxu0 %v809
  %v1275 = vpop.f32.mrf.mxu0
  %v1276 = vadd.f32 %v1107, %v1275
  %v1277 = vpop.f32.mrf.mxu0
  %v1278 = vadd.f32 %v1109, %v1277
  %1279 = vmatmul.bf16.gmra.mxu0 %v812
  %v1280 = vpop.f32.mrf.mxu0
  %v1281 = vadd.f32 %v1112, %v1280
  %v1282 = vpop.f32.mrf.mxu0
  %v1283 = vadd.f32 %v1114, %v1282
  %1284 = vmatmul.bf16.gmra.mxu0 %v815
  %v1285 = vpop.f32.mrf.mxu0
  %v1286 = vadd.f32 %v1117, %v1285
  %v1287 = vpop.f32.mrf.mxu0
  %v1288 = vadd.f32 %v1119, %v1287
  %1289 = vmatmul.bf16.gmra.mxu0 %v818
  %v1290 = vpop.f32.mrf.mxu0
  %v1291 = vadd.f32 %v1122, %v1290
  %v1292 = vpop.f32.mrf.mxu0
  %v1293 = vadd.f32 %v1124, %v1292
  %1294 = vmatmul.bf16.gmra.mxu0 %v821
  %v1295 = vpop.f32.mrf.mxu0
  %v1296 = vadd.f32 %v1127, %v1295
  %v1297 = vpop.f32.mrf.mxu0
  %v1298 = vadd.f32 %v1129, %v1297
  %1299 = vmatmul.bf16.gmra.mxu0 %v824
  %v1300 = vpop.f32.mrf.mxu0
  %v1301 = vadd.f32 %v1132, %v1300
  %v1302 = vpop.f32.mrf.mxu0
  %v1303 = vadd.f32 %v1134, %v1302
  %1304 = vmatmul.bf16.gmra.mxu0 %v827
  %v1305 = vpop.f32.mrf.mxu0
  %v1306 = vadd.f32 %v1137, %v1305
  %v1307 = vpop.f32.mrf.mxu0
  %v1308 = vadd.f32 %v1139, %v1307
  %1309 = vmatmul.bf16.gmra.mxu0 %v830
  %v1310 = vpop.f32.mrf.mxu0
  %v1311 = vadd.f32 %v1142, %v1310
  %v1312 = vpop.f32.mrf.mxu0
  %v1313 = vadd.f32 %v1144, %v1312
  %1314 = vmatmul.bf16.gmra.mxu0 %v833
  %v1315 = vpop.f32.mrf.mxu0
  %v1316 = vadd.f32 %v1147, %v1315
  %v1317 = vpop.f32.mrf.mxu0
  %v1318 = vadd.f32 %v1149, %v1317
  %1319 = vmatmul.bf16.gmra.mxu0 %v836
  %v1320 = vpop.f32.mrf.mxu0
  %v1321 = vadd.f32 %v1152, %v1320
  %v1322 = vpop.f32.mrf.mxu0
  %v1323 = vadd.f32 %v1154, %v1322
  %1324 = vmatmul.bf16.gmra.mxu0 %v839
  %v1325 = vpop.f32.mrf.mxu0
  %v1326 = vadd.f32 %v1157, %v1325
  %v1327 = vpop.f32.mrf.mxu0
  %v1328 = vadd.f32 %v1159, %v1327
  %1329 = vmatmul.bf16.gmra.mxu0 %v842
  %v1330 = vpop.f32.mrf.mxu0
  %v1331 = vadd.f32 %v1162, %v1330
  %v1332 = vpop.f32.mrf.mxu0
  %v1333 = vadd.f32 %v1164, %v1332
  %1334 = vmatmul.bf16.gmra.mxu0 %v845
  %v1335 = vpop.f32.mrf.mxu0
  %v1336 = vadd.f32 %v1167, %v1335
  %v1337 = vpop.f32.mrf.mxu0
  %v1338 = vadd.f32 %v1169, %v1337
  %1339 = vmatmul.bf16.gmra.mxu0 %v848
  %v1340 = vpop.f32.mrf.mxu0
  %v1341 = vadd.f32 %v1172, %v1340
  %v1342 = vpop.f32.mrf.mxu0
  %v1343 = vadd.f32 %v1174, %v1342
  %1344 = vmatmul.bf16.gmra.mxu0 %v851
  %v1345 = vpop.f32.mrf.mxu0
  %v1346 = vadd.f32 %v1177, %v1345
  %v1347 = vpop.f32.mrf.mxu0
  %v1348 = vadd.f32 %v1179, %v1347
  %1349 = vmatmul.bf16.gmra.mxu0 %v854
  %v1350 = vpop.f32.mrf.mxu0
  %v1351 = vadd.f32 %v1182, %v1350
  %v1352 = vpop.f32.mrf.mxu0
  %v1353 = vadd.f32 %v1184, %v1352
  %1354 = vmatmul.bf16.gmra.mxu0 %v857
  %v1355 = vpop.f32.mrf.mxu0
  %v1356 = vadd.f32 %v1187, %v1355
  %v1357 = vpop.f32.mrf.mxu0
  %v1358 = vadd.f32 %v1189, %v1357
  %1359 = vmatmul.bf16.gmra.mxu0 %v860
  %v1360 = vpop.f32.mrf.mxu0
  %v1361 = vadd.f32 %v1192, %v1360
  %v1362 = vpop.f32.mrf.mxu0
  %v1363 = vadd.f32 %v1194, %v1362
  %1364 = vmatmul.bf16.gmra.mxu0 %v863
  %v1365 = vpop.f32.mrf.mxu0
  %v1366 = vadd.f32 %v1197, %v1365
  %v1367 = vpop.f32.mrf.mxu0
  %v1368 = vadd.f32 %v1199, %v1367
  %1369 = vmatmul.bf16.gmra.mxu0 %v866
  %v1370 = vpop.f32.mrf.mxu0
  %v1371 = vadd.f32 %v1202, %v1370
  %v1372 = vpop.f32.mrf.mxu0
  %v1373 = vadd.f32 %v1204, %v1372
  %1374 = vdwg.mxu0
  %v1375 = vmax.f32 %v1216, 0.0
  %v1376 = vmax.f32 %v1218, 0.0
  %v1377 = vmax.f32 %v1221, 0.0
  %v1378 = vmax.f32 %v1223, 0.0
  %v1379 = vmax.f32 %v1226, 0.0
  %v1380 = vmax.f32 %v1228, 0.0
  %v1381 = vmax.f32 %v1231, 0.0
  %v1382 = vmax.f32 %v1233, 0.0
  %v1383 = vmax.f32 %v1236, 0.0
  %v1384 = vmax.f32 %v1238, 0.0
  %v1385 = vmax.f32 %v1241, 0.0
  %v1386 = vmax.f32 %v1243, 0.0
  %v1387 = vmax.f32 %v1246, 0.0
  %v1388 = vmax.f32 %v1248, 0.0
  %v1389 = vmax.f32 %v1251, 0.0
  %v1390 = vmax.f32 %v1253, 0.0
  %v1391 = vmax.f32 %v1256, 0.0
  %v1392 = vmax.f32 %v1258, 0.0
  %v1393 = vmax.f32 %v1261, 0.0
  %v1394 = vmax.f32 %v1263, 0.0
  %v1395 = vmax.f32 %v1266, 0.0
  %v1396 = vmax.f32 %v1268, 0.0
  %v1397 = vmax.f32 %v1271, 0.0
  %v1398 = vmax.f32 %v1273, 0.0
  %v1399 = vmax.f32 %v1276, 0.0
  %v1400 = vmax.f32 %v1278, 0.0
  %v1401 = vmax.f32 %v1281, 0.0
  %v1402 = vmax.f32 %v1283, 0.0
  %v1403 = vmax.f32 %v1286, 0.0
  %v1404 = vmax.f32 %v1288, 0.0
  %v1405 = vmax.f32 %v1291, 0.0
  %v1406 = vmax.f32 %v1293, 0.0
  %v1407 = vmax.f32 %v1296, 0.0
  %v1408 = vmax.f32 %v1298, 0.0
  %v1409 = vmax.f32 %v1301, 0.0
  %v1410 = vmax.f32 %v1303, 0.0
  %v1411 = vmax.f32 %v1306, 0.0
  %v1412 = vmax.f32 %v1308, 0.0
  %v1413 = vmax.f32 %v1311, 0.0
  %v1414 = vmax.f32 %v1313, 0.0
  %v1415 = vmax.f32 %v1316, 0.0
  %v1416 = vmax.f32 %v1318, 0.0
  %v1417 = vmax.f32 %v1321, 0.0
  %v1418 = vmax.f32 %v1323, 0.0
  %v1419 = vmax.f32 %v1326, 0.0
  %v1420 = vmax.f32 %v1328, 0.0
  %v1421 = vmax.f32 %v1331, 0.0
  %v1422 = vmax.f32 %v1333, 0.0
  %v1423 = vmax.f32 %v1336, 0.0
  %v1424 = vmax.f32 %v1338, 0.0
  %v1425 = vmax.f32 %v1341, 0.0
  %v1426 = vmax.f32 %v1343, 0.0
  %v1427 = vmax.f32 %v1346, 0.0
  %v1428 = vmax.f32 %v1348, 0.0
  %v1429 = vmax.f32 %v1351, 0.0
  %v1430 = vmax.f32 %v1353, 0.0
  %v1431 = vmax.f32 %v1356, 0.0
  %v1432 = vmax.f32 %v1358, 0.0
  %v1433 = vmax.f32 %v1361, 0.0
  %v1434 = vmax.f32 %v1363, 0.0
  %v1435 = vmax.f32 %v1366, 0.0
  %v1436 = vmax.f32 %v1368, 0.0
  %v1437 = vmax.f32 %v1371, 0.0
  %v1438 = vmax.f32 %v1373, 0.0
  %v1439 = vpack.c.bf16 %v1375, %v1375
  %v1440 = vpack.c.bf16 %v1376, %v1376
  %v1441 = vpack.c.bf16 %v1377, %v1377
  %v1442 = vpack.c.bf16 %v1378, %v1378
  %v1443 = vpack.c.bf16 %v1379, %v1379
  %v1444 = vpack.c.bf16 %v1380, %v1380
  %v1445 = vpack.c.bf16 %v1381, %v1381
  %v1446 = vpack.c.bf16 %v1382, %v1382
  %v1447 = vpack.c.bf16 %v1383, %v1383
  %v1448 = vpack.c.bf16 %v1384, %v1384
  %v1449 = vpack.c.bf16 %v1385, %v1385
  %v1450 = vpack.c.bf16 %v1386, %v1386
  %v1451 = vpack.c.bf16 %v1387, %v1387
  %v1452 = vpack.c.bf16 %v1388, %v1388
  %v1453 = vpack.c.bf16 %v1389, %v1389
  %v1454 = vpack.c.bf16 %v1390, %v1390
  %v1455 = vpack.c.bf16 %v1391, %v1391
  %v1456 = vpack.c.bf16 %v1392, %v1392
  %v1457 = vpack.c.bf16 %v1393, %v1393
  %v1458 = vpack.c.bf16 %v1394, %v1394
  %v1459 = vpack.c.bf16 %v1395, %v1395
  %v1460 = vpack.c.bf16 %v1396, %v1396
  %v1461 = vpack.c.bf16 %v1397, %v1397
  %v1462 = vpack.c.bf16 %v1398, %v1398
  %v1463 = vpack.c.bf16 %v1399, %v1399
  %v1464 = vpack.c.bf16 %v1400, %v1400
  %v1465 = vpack.c.bf16 %v1401, %v1401
  %v1466 = vpack.c.bf16 %v1402, %v1402
  %v1467 = vpack.c.bf16 %v1403, %v1403
  %v1468 = vpack.c.bf16 %v1404, %v1404
  %v1469 = vpack.c.bf16 %v1405, %v1405
  %v1470 = vpack.c.bf16 %v1406, %v1406
  %v1471 = vpack.c.bf16 %v1407, %v1407
  %v1472 = vpack.c.bf16 %v1408, %v1408
  %v1473 = vpack.c.bf16 %v1409, %v1409
  %v1474 = vpack.c.bf16 %v1410, %v1410
  %v1475 = vpack.c.bf16 %v1411, %v1411
  %v1476 = vpack.c.bf16 %v1412, %v1412
  %v1477 = vpack.c.bf16 %v1413, %v1413
  %v1478 = vpack.c.bf16 %v1414, %v1414
  %v1479 = vpack.c.bf16 %v1415, %v1415
  %v1480 = vpack.c.bf16 %v1416, %v1416
  %v1481 = vpack.c.bf16 %v1417, %v1417
  %v1482 = vpack.c.bf16 %v1418, %v1418
  %v1483 = vpack.c.bf16 %v1419, %v1419
  %v1484 = vpack.c.bf16 %v1420, %v1420
  %v1485 = vpack.c.bf16 %v1421, %v1421
  %v1486 = vpack.c.bf16 %v1422, %v1422
  %v1487 = vpack.c.bf16 %v1423, %v1423
  %v1488 = vpack.c.bf16 %v1424, %v1424
  %v1489 = vpack.c.bf16 %v1425, %v1425
  %v1490 = vpack.c.bf16 %v1426, %v1426
  %v1491 = vpack.c.bf16 %v1427, %v1427
  %v1492 = vpack.c.bf16 %v1428, %v1428
  %v1493 = vpack.c.bf16 %v1429, %v1429
  %v1494 = vpack.c.bf16 %v1430, %v1430
  %v1495 = vpack.c.bf16 %v1431, %v1431
  %v1496 = vpack.c.bf16 %v1432, %v1432
  %v1497 = vpack.c.bf16 %v1433, %v1433
  %v1498 = vpack.c.bf16 %v1434, %v1434
  %v1499 = vpack.c.bf16 %v1435, %v1435
  %v1500 = vpack.c.bf16 %v1436, %v1436
  %v1501 = vpack.c.bf16 %v1437, %v1437
  %v1502 = vpack.c.bf16 %v1438, %v1438
  %vm1503 = vcmask 519168
  %1504 = vst.msk [vmem:[%s3] sm:$0xf] %vm1503, %v1439
  %1505 = vst.msk [vmem:[%s3 + $0x4] sm:$0xf] %vm1503, %v1440
  %1506 = vst.msk [vmem:[%s3 + $0x8] sm:$0xf] %vm1503, %v1441
  %1507 = vst.msk [vmem:[%s3 + $0xc] sm:$0xf] %vm1503, %v1442
  %1508 = vst.msk [vmem:[%s3 + $0x10] sm:$0xf] %vm1503, %v1443
  %1509 = vst.msk [vmem:[%s3 + $0x14] sm:$0xf] %vm1503, %v1444
  %1510 = vst.msk [vmem:[%s3 + $0x18] sm:$0xf] %vm1503, %v1445
  %1511 = vst.msk [vmem:[%s3 + $0x1c] sm:$0xf] %vm1503, %v1446
  %1512 = vst.msk [vmem:[%s3 + $0x20] sm:$0xf] %vm1503, %v1447
  %1513 = vst.msk [vmem:[%s3 + $0x24] sm:$0xf] %vm1503, %v1448
  %1514 = vst.msk [vmem:[%s3 + $0x28] sm:$0xf] %vm1503, %v1449
  %1515 = vst.msk [vmem:[%s3 + $0x2c] sm:$0xf] %vm1503, %v1450
  %1516 = vst.msk [vmem:[%s3 + $0x30] sm:$0xf] %vm1503, %v1451
  %1517 = vst.msk [vmem:[%s3 + $0x34] sm:$0xf] %vm1503, %v1452
  %1518 = vst.msk [vmem:[%s3 + $0x38] sm:$0xf] %vm1503, %v1453
  %1519 = vst.msk [vmem:[%s3 + $0x3c] sm:$0xf] %vm1503, %v1454
  %1520 = vst.msk [vmem:[%s3 + $0x40] sm:$0xf] %vm1503, %v1455
  %1521 = vst.msk [vmem:[%s3 + $0x44] sm:$0xf] %vm1503, %v1456
  %1522 = vst.msk [vmem:[%s3 + $0x48] sm:$0xf] %vm1503, %v1457
  %1523 = vst.msk [vmem:[%s3 + $0x4c] sm:$0xf] %vm1503, %v1458
  %1524 = vst.msk [vmem:[%s3 + $0x50] sm:$0xf] %vm1503, %v1459
  %1525 = vst.msk [vmem:[%s3 + $0x54] sm:$0xf] %vm1503, %v1460
  %1526 = vst.msk [vmem:[%s3 + $0x58] sm:$0xf] %vm1503, %v1461
  %1527 = vst.msk [vmem:[%s3 + $0x5c] sm:$0xf] %vm1503, %v1462
  %1528 = vst.msk [vmem:[%s3 + $0x60] sm:$0xf] %vm1503, %v1463
  %1529 = vst.msk [vmem:[%s3 + $0x64] sm:$0xf] %vm1503, %v1464
  %1530 = vst.msk [vmem:[%s3 + $0x68] sm:$0xf] %vm1503, %v1465
  %1531 = vst.msk [vmem:[%s3 + $0x6c] sm:$0xf] %vm1503, %v1466
  %1532 = vst.msk [vmem:[%s3 + $0x70] sm:$0xf] %vm1503, %v1467
  %1533 = vst.msk [vmem:[%s3 + $0x74] sm:$0xf] %vm1503, %v1468
  %1534 = vst.msk [vmem:[%s3 + $0x78] sm:$0xf] %vm1503, %v1469
  %1535 = vst.msk [vmem:[%s3 + $0x7c] sm:$0xf] %vm1503, %v1470
  %1536 = vst.msk [vmem:[%s3 + $0x80] sm:$0xf] %vm1503, %v1471
  %1537 = vst.msk [vmem:[%s3 + $0x84] sm:$0xf] %vm1503, %v1472
  %1538 = vst.msk [vmem:[%s3 + $0x88] sm:$0xf] %vm1503, %v1473
  %1539 = vst.msk [vmem:[%s3 + $0x8c] sm:$0xf] %vm1503, %v1474
  %1540 = vst.msk [vmem:[%s3 + $0x90] sm:$0xf] %vm1503, %v1475
  %1541 = vst.msk [vmem:[%s3 + $0x94] sm:$0xf] %vm1503, %v1476
  %1542 = vst.msk [vmem:[%s3 + $0x98] sm:$0xf] %vm1503, %v1477
  %1543 = vst.msk [vmem:[%s3 + $0x9c] sm:$0xf] %vm1503, %v1478
  %1544 = vst.msk [vmem:[%s3 + $0xa0] sm:$0xf] %vm1503, %v1479
  %1545 = vst.msk [vmem:[%s3 + $0xa4] sm:$0xf] %vm1503, %v1480
  %1546 = vst.msk [vmem:[%s3 + $0xa8] sm:$0xf] %vm1503, %v1481
  %1547 = vst.msk [vmem:[%s3 + $0xac] sm:$0xf] %vm1503, %v1482
  %1548 = vst.msk [vmem:[%s3 + $0xb0] sm:$0xf] %vm1503, %v1483
  %1549 = vst.msk [vmem:[%s3 + $0xb4] sm:$0xf] %vm1503, %v1484
  %1550 = vst.msk [vmem:[%s3 + $0xb8] sm:$0xf] %vm1503, %v1485
  %1551 = vst.msk [vmem:[%s3 + $0xbc] sm:$0xf] %vm1503, %v1486
  %1552 = vst.msk [vmem:[%s3 + $0xc0] sm:$0xf] %vm1503, %v1487
  %1553 = vst.msk [vmem:[%s3 + $0xc4] sm:$0xf] %vm1503, %v1488
  %1554 = vst.msk [vmem:[%s3 + $0xc8] sm:$0xf] %vm1503, %v1489
  %1555 = vst.msk [vmem:[%s3 + $0xcc] sm:$0xf] %vm1503, %v1490
  %1556 = vst.msk [vmem:[%s3 + $0xd0] sm:$0xf] %vm1503, %v1491
  %1557 = vst.msk [vmem:[%s3 + $0xd4] sm:$0xf] %vm1503, %v1492
  %1558 = vst.msk [vmem:[%s3 + $0xd8] sm:$0xf] %vm1503, %v1493
  %1559 = vst.msk [vmem:[%s3 + $0xdc] sm:$0xf] %vm1503, %v1494
  %1560 = vst.msk [vmem:[%s3 + $0xe0] sm:$0xf] %vm1503, %v1495
  %1561 = vst.msk [vmem:[%s3 + $0xe4] sm:$0xf] %vm1503, %v1496
  %1562 = vst.msk [vmem:[%s3 + $0xe8] sm:$0xf] %vm1503, %v1497
  %1563 = vst.msk [vmem:[%s3 + $0xec] sm:$0xf] %vm1503, %v1498
  %1564 = vst.msk [vmem:[%s3 + $0xf0] sm:$0xf] %vm1503, %v1499
  %1565 = vst.msk [vmem:[%s3 + $0xf4] sm:$0xf] %vm1503, %v1500
  %1566 = vst.msk [vmem:[%s3 + $0xf8] sm:$0xf] %vm1503, %v1501
  %1567 = vst.msk [vmem:[%s3 + $0xfc] sm:$0xf] %vm1503, %v1502
  // Predicated region
  $region14: #{rnet_forward.6} parent=0 // pred_check
    _
  $region15: #{rnet_forward.6} parent=0 // pred_check_branch
    %1569 = sbr.rel (0) target = $region17
  $region16: #{rnet_forward.6} parent=0 // pred_region
    _
  $region17: #{rnet_forward.6} parent=0 // pred_fallthru
    _
  // Predicated region
  $region18: #{rnet_forward.6} parent=0 // pred_check
    _
  $region19: #{rnet_forward.6} parent=0 // pred_check_branch
    %1571 = sbr.rel (0) target = $region21
  $region20: #{rnet_forward.6} parent=0 // pred_region
    _
  $region21: #{rnet_forward.6} parent=0 // pred_fallthru
    _

// kernel: rnet_forward.7
$region0: #{rnet_forward.7}
  #allocation0 [shape = 'u32[]', space=smem, size = 0x4, offset = 0x4, fixed_abs, tag = 'smem constant byte address 0x4 - core index']
  #allocation1 [shape = 'u32[72,128]{1,0:T(1,128)}', space=vmem, size = 0x9000, scoped, tag = 'internal scratch']
  %s0 = inlined_call_operand.vmem [shape: bf16[128,576], index: 0, kind: input, shape index: {}]
  %s1 = inlined_call_operand.vmem [shape: bf16[576,128], index: 1, kind: input, shape index: {}]
  %s2 = inlined_call_operand.vmem [shape: f32[1,128], index: 2, kind: input, shape index: {}]
  %s3 = inlined_call_operand.vmem [shape: bf16[128,128], index: 3, kind: output, shape index: {}]
  %s4 = sld [smem:[#allocation0]]
  $region22: #{rnet_forward.7} parent=0
    _
  %s6 = ssub.s32 1, %s4
  %s7 = scalar_select 0, %s6, %s4
  // Predicated region
  $region2: #{rnet_forward.7} parent=0 // pred_check
    _
  $region3: #{rnet_forward.7} parent=0 // pred_check_branch
    %9 = sbr.rel (0) target = $region5
  $region4: #{rnet_forward.7} parent=0 // pred_region
    _
  $region5: #{rnet_forward.7} parent=0 // pred_fallthru
    _
  // Predicated region
  $region6: #{rnet_forward.7} parent=0 // pred_check
    _
  $region7: #{rnet_forward.7} parent=0 // pred_check_branch
    %11 = sbr.rel (0) target = $region9
  $region8: #{rnet_forward.7} parent=0 // pred_region
    _
  $region9: #{rnet_forward.7} parent=0 // pred_fallthru
    _
  // Predicated region
  $region10: #{rnet_forward.7} parent=0 // pred_check
    _
  $region11: #{rnet_forward.7} parent=0 // pred_check_branch
    %13 = sbr.rel (0) target = $region13
  $region12: #{rnet_forward.7} parent=0 // pred_region
    _
  $region13: #{rnet_forward.7} parent=0 // pred_fallthru
    _
  %v15 = vld [vmem:[%s0] sm:$0xff]
  %v16 = vld [vmem:[%s0 + $0x8] sm:$0xff]
  %v17 = vld [vmem:[%s0 + $0x10] sm:$0xf]
  %v18 = vld [vmem:[%s0 + $0x14] sm:$0xff]
  %v19 = vld [vmem:[%s0 + $0x1c] sm:$0xff]
  %v20 = vld [vmem:[%s0 + $0x24] sm:$0xf]
  %v21 = vld [vmem:[%s0 + $0x28] sm:$0xff]
  %v22 = vld [vmem:[%s0 + $0x30] sm:$0xff]
  %v23 = vld [vmem:[%s0 + $0x38] sm:$0xf]
  %v24 = vld [vmem:[%s0 + $0x3c] sm:$0xff]
  %v25 = vld [vmem:[%s0 + $0x44] sm:$0xff]
  %v26 = vld [vmem:[%s0 + $0x4c] sm:$0xf]
  %v27 = vld [vmem:[%s0 + $0x50] sm:$0xff]
  %v28 = vld [vmem:[%s0 + $0x58] sm:$0xff]
  %v29 = vld [vmem:[%s0 + $0x60] sm:$0xf]
  %v30 = vld [vmem:[%s0 + $0x64] sm:$0xff]
  %v31 = vld [vmem:[%s0 + $0x6c] sm:$0xff]
  %v32 = vld [vmem:[%s0 + $0x74] sm:$0xf]
  %v33 = vld [vmem:[%s0 + $0x78] sm:$0xff]
  %v34 = vld [vmem:[%s0 + $0x80] sm:$0xff]
  %v35 = vld [vmem:[%s0 + $0x88] sm:$0xf]
  %v36 = vld [vmem:[%s0 + $0x8c] sm:$0xff]
  %v37 = vld [vmem:[%s0 + $0x94] sm:$0xff]
  %v38 = vld [vmem:[%s0 + $0x9c] sm:$0xf]
  %v39 = vld [vmem:[%s0 + $0xa0] sm:$0xff]
  %v40 = vld [vmem:[%s0 + $0xa8] sm:$0xff]
  %v41 = vld [vmem:[%s0 + $0xb0] sm:$0xf]
  %v42 = vld [vmem:[%s0 + $0xb4] sm:$0xff]
  %v43 = vld [vmem:[%s0 + $0xbc] sm:$0xff]
  %v44 = vld [vmem:[%s0 + $0xc4] sm:$0xf]
  %v45 = vld [vmem:[%s0 + $0xc8] sm:$0xff]
  %v46 = vld [vmem:[%s0 + $0xd0] sm:$0xff]
  %v47 = vld [vmem:[%s0 + $0xd8] sm:$0xf]
  %v48 = vld [vmem:[%s0 + $0xdc] sm:$0xff]
  %v49 = vld [vmem:[%s0 + $0xe4] sm:$0xff]
  %v50 = vld [vmem:[%s0 + $0xec] sm:$0xf]
  %v51 = vld [vmem:[%s0 + $0xf0] sm:$0xff]
  %v52 = vld [vmem:[%s0 + $0xf8] sm:$0xff]
  %v53 = vld [vmem:[%s0 + $0x100] sm:$0xf]
  %v54 = vld [vmem:[%s0 + $0x104] sm:$0xff]
  %v55 = vld [vmem:[%s0 + $0x10c] sm:$0xff]
  %v56 = vld [vmem:[%s0 + $0x114] sm:$0xf]
  %v57 = vld [vmem:[%s0 + $0x118] sm:$0xff]
  %v58 = vld [vmem:[%s0 + $0x120] sm:$0xff]
  %v59 = vld [vmem:[%s0 + $0x128] sm:$0xf]
  %v60 = vld [vmem:[%s0 + $0x12c] sm:$0xff]
  %v61 = vld [vmem:[%s0 + $0x134] sm:$0xff]
  %v62 = vld [vmem:[%s0 + $0x13c] sm:$0xf]
  %v63 = vld [vmem:[%s1] sm:$0xf]
  %v64 = vld [vmem:[%s1 + $0x4] sm:$0xf]
  %v65 = vld [vmem:[%s1 + $0x8] sm:$0xf]
  %v66 = vld [vmem:[%s1 + $0xc] sm:$0xf]
  %v67 = vld [vmem:[%s1 + $0x10] sm:$0xf]
  %v68 = vld [vmem:[%s1 + $0x14] sm:$0xf]
  %v69 = vld [vmem:[%s1 + $0x18] sm:$0xf]
  %v70 = vld [vmem:[%s1 + $0x1c] sm:$0xf]
  %v71 = vld [vmem:[%s1 + $0x20] sm:$0xf]
  %v72 = vld [vmem:[%s1 + $0x24] sm:$0xf]
  %v73 = vld [vmem:[%s1 + $0x28] sm:$0xf]
  %v74 = vld [vmem:[%s1 + $0x2c] sm:$0xf]
  %v75 = vld [vmem:[%s1 + $0x30] sm:$0xf]
  %v76 = vld [vmem:[%s1 + $0x34] sm:$0xf]
  %v77 = vld [vmem:[%s1 + $0x38] sm:$0xf]
  %v78 = vld [vmem:[%s1 + $0x3c] sm:$0xf]
  %v79 = vld [vmem:[%s1 + $0x40] sm:$0xf]
  %v80 = vld [vmem:[%s1 + $0x44] sm:$0xf]
  %v81 = vld [vmem:[%s1 + $0x48] sm:$0xf]
  %v82 = vld [vmem:[%s1 + $0x4c] sm:$0xf]
  %v83 = vld [vmem:[%s1 + $0x50] sm:$0xf]
  %v84 = vld [vmem:[%s1 + $0x54] sm:$0xf]
  %v85 = vld [vmem:[%s1 + $0x58] sm:$0xf]
  %v86 = vld [vmem:[%s1 + $0x5c] sm:$0xf]
  %v87 = vld [vmem:[%s1 + $0x60] sm:$0xf]
  %v88 = vld [vmem:[%s1 + $0x64] sm:$0xf]
  %v89 = vld [vmem:[%s1 + $0x68] sm:$0xf]
  %v90 = vld [vmem:[%s1 + $0x6c] sm:$0xf]
  %v91 = vld [vmem:[%s1 + $0x70] sm:$0xf]
  %v92 = vld [vmem:[%s1 + $0x74] sm:$0xf]
  %v93 = vld [vmem:[%s1 + $0x78] sm:$0xf]
  %v94 = vld [vmem:[%s1 + $0x7c] sm:$0xf]
  %v95 = vld [vmem:[%s1 + $0x80] sm:$0xf]
  %v96 = vld [vmem:[%s1 + $0x84] sm:$0xf]
  %v97 = vld [vmem:[%s1 + $0x88] sm:$0xf]
  %v98 = vld [vmem:[%s1 + $0x8c] sm:$0xf]
  %v99 = vld [vmem:[%s1 + $0x90] sm:$0xf]
  %v100 = vld [vmem:[%s1 + $0x94] sm:$0xf]
  %v101 = vld [vmem:[%s1 + $0x98] sm:$0xf]
  %v102 = vld [vmem:[%s1 + $0x9c] sm:$0xf]
  %v103 = vld [vmem:[%s1 + $0xa0] sm:$0xf]
  %v104 = vld [vmem:[%s1 + $0xa4] sm:$0xf]
  %v105 = vld [vmem:[%s1 + $0xa8] sm:$0xf]
  %v106 = vld [vmem:[%s1 + $0xac] sm:$0xf]
  %v107 = vld [vmem:[%s1 + $0xb0] sm:$0xf]
  %v108 = vld [vmem:[%s1 + $0xb4] sm:$0xf]
  %v109 = vld [vmem:[%s1 + $0xb8] sm:$0xf]
  %v110 = vld [vmem:[%s1 + $0xbc] sm:$0xf]
  %v111 = vld [vmem:[%s1 + $0xc0] sm:$0xf]
  %v112 = vld [vmem:[%s1 + $0xc4] sm:$0xf]
  %v113 = vld [vmem:[%s1 + $0xc8] sm:$0xf]
  %v114 = vld [vmem:[%s1 + $0xcc] sm:$0xf]
  %v115 = vld [vmem:[%s1 + $0xd0] sm:$0xf]
  %v116 = vld [vmem:[%s1 + $0xd4] sm:$0xf]
  %v117 = vld [vmem:[%s1 + $0xd8] sm:$0xf]
  %v118 = vld [vmem:[%s1 + $0xdc] sm:$0xf]
  %v119 = vld [vmem:[%s1 + $0xe0] sm:$0xf]
  %v120 = vld [vmem:[%s1 + $0xe4] sm:$0xf]
  %v121 = vld [vmem:[%s1 + $0xe8] sm:$0xf]
  %v122 = vld [vmem:[%s1 + $0xec] sm:$0xf]
  %v123 = vld [vmem:[%s1 + $0xf0] sm:$0xf]
  %v124 = vld [vmem:[%s1 + $0xf4] sm:$0xf]
  %v125 = vld [vmem:[%s1 + $0xf8] sm:$0xf]
  %v126 = vld [vmem:[%s1 + $0xfc] sm:$0xf]
  %v127 = vld [vmem:[%s1 + $0x100] sm:$0xf]
  %v128 = vld [vmem:[%s1 + $0x104] sm:$0xf]
  %v129 = vld [vmem:[%s1 + $0x108] sm:$0xf]
  %v130 = vld [vmem:[%s1 + $0x10c] sm:$0xf]
  %v131 = vld [vmem:[%s1 + $0x110] sm:$0xf]
  %v132 = vld [vmem:[%s1 + $0x114] sm:$0xf]
  %v133 = vld [vmem:[%s1 + $0x118] sm:$0xf]
  %v134 = vld [vmem:[%s1 + $0x11c] sm:$0xf]
  %v135 = vld [vmem:[%s2] sm:$0x1]
  %v137 = vperm.slane %v135, 0
  %v187 = vunpack.c.l.b16 %v15
  %v188 = vunpack.c.h.b16 %v15
  %v189 = vunpack.c.l.b16 %v16
  %v190 = vunpack.c.h.b16 %v16
  %v191 = vunpack.c.l.b16 %v17
  %v192 = vunpack.c.l.b16 %v18
  %v193 = vunpack.c.h.b16 %v18
  %v194 = vunpack.c.l.b16 %v19
  %v195 = vunpack.c.h.b16 %v19
  %v196 = vunpack.c.l.b16 %v20
  %v197 = vunpack.c.l.b16 %v21
  %v198 = vunpack.c.h.b16 %v21
  %v199 = vunpack.c.l.b16 %v22
  %v200 = vunpack.c.h.b16 %v22
  %v201 = vunpack.c.l.b16 %v23
  %v202 = vunpack.c.l.b16 %v24
  %v203 = vunpack.c.h.b16 %v24
  %v204 = vunpack.c.l.b16 %v25
  %v205 = vunpack.c.h.b16 %v25
  %v206 = vunpack.c.l.b16 %v26
  %v207 = vunpack.c.l.b16 %v27
  %v208 = vunpack.c.h.b16 %v27
  %v209 = vunpack.c.l.b16 %v28
  %v210 = vunpack.c.h.b16 %v28
  %v211 = vunpack.c.l.b16 %v29
  %v212 = vunpack.c.l.b16 %v30
  %v213 = vunpack.c.h.b16 %v30
  %v214 = vunpack.c.l.b16 %v31
  %v215 = vunpack.c.h.b16 %v31
  %v216 = vunpack.c.l.b16 %v32
  %v217 = vunpack.c.l.b16 %v33
  %v218 = vunpack.c.h.b16 %v33
  %v219 = vunpack.c.l.b16 %v34
  %v220 = vunpack.c.h.b16 %v34
  %v221 = vunpack.c.l.b16 %v35
  %v222 = vunpack.c.l.b16 %v36
  %v223 = vunpack.c.h.b16 %v36
  %v224 = vunpack.c.l.b16 %v37
  %v225 = vunpack.c.h.b16 %v37
  %v226 = vunpack.c.l.b16 %v38
  %v227 = vunpack.c.l.b16 %v39
  %v228 = vunpack.c.h.b16 %v39
  %v229 = vunpack.c.l.b16 %v40
  %v230 = vunpack.c.h.b16 %v40
  %v231 = vunpack.c.l.b16 %v41
  %v232 = vunpack.c.l.b16 %v42
  %v233 = vunpack.c.h.b16 %v42
  %v234 = vunpack.c.l.b16 %v43
  %v235 = vunpack.c.h.b16 %v43
  %v236 = vunpack.c.l.b16 %v44
  %v237 = vunpack.c.l.b16 %v45
  %v238 = vunpack.c.h.b16 %v45
  %v239 = vunpack.c.l.b16 %v46
  %v240 = vunpack.c.h.b16 %v46
  %v241 = vunpack.c.l.b16 %v47
  %v242 = vunpack.c.l.b16 %v48
  %v243 = vunpack.c.h.b16 %v48
  %v244 = vunpack.c.l.b16 %v49
  %v245 = vunpack.c.h.b16 %v49
  %v246 = vunpack.c.l.b16 %v50
  %v247 = vunpack.c.l.b16 %v51
  %v248 = vunpack.c.h.b16 %v51
  %v249 = vunpack.c.l.b16 %v52
  %v250 = vunpack.c.h.b16 %v52
  %v251 = vunpack.c.l.b16 %v53
  %v252 = vunpack.c.l.b16 %v54
  %v253 = vunpack.c.h.b16 %v54
  %v254 = vunpack.c.l.b16 %v55
  %v255 = vunpack.c.h.b16 %v55
  %v256 = vunpack.c.l.b16 %v56
  %v257 = vunpack.c.l.b16 %v57
  %v258 = vunpack.c.h.b16 %v57
  %v259 = vunpack.c.l.b16 %v58
  %v260 = vunpack.c.h.b16 %v58
  %v261 = vunpack.c.l.b16 %v59
  %v262 = vunpack.c.l.b16 %v60
  %v263 = vunpack.c.h.b16 %v60
  %v264 = vunpack.c.l.b16 %v61
  %v265 = vunpack.c.h.b16 %v61
  %v266 = vunpack.c.l.b16 %v62
  %v267 = vpack.c.b16 %v192, %v187
  %v268 = vpack.c.b16 %v193, %v188
  %v269 = vpack.c.b16 %v194, %v189
  %v270 = vpack.c.b16 %v195, %v190
  %v271 = vpack.c.b16 %v196, %v191
  %v272 = vpack.c.b16 %v202, %v197
  %v273 = vpack.c.b16 %v203, %v198
  %v274 = vpack.c.b16 %v204, %v199
  %v275 = vpack.c.b16 %v205, %v200
  %v276 = vpack.c.b16 %v206, %v201
  %v277 = vpack.c.b16 %v212, %v207
  %v278 = vpack.c.b16 %v213, %v208
  %v279 = vpack.c.b16 %v214, %v209
  %v280 = vpack.c.b16 %v215, %v210
  %v281 = vpack.c.b16 %v216, %v211
  %v282 = vpack.c.b16 %v222, %v217
  %v283 = vpack.c.b16 %v223, %v218
  %v284 = vpack.c.b16 %v224, %v219
  %v285 = vpack.c.b16 %v225, %v220
  %v286 = vpack.c.b16 %v226, %v221
  %v287 = vpack.c.b16 %v232, %v227
  %v288 = vpack.c.b16 %v233, %v228
  %v289 = vpack.c.b16 %v234, %v229
  %v290 = vpack.c.b16 %v235, %v230
  %v291 = vpack.c.b16 %v236, %v231
  %v292 = vpack.c.b16 %v242, %v237
  %v293 = vpack.c.b16 %v243, %v238
  %v294 = vpack.c.b16 %v244, %v239
  %v295 = vpack.c.b16 %v245, %v240
  %v296 = vpack.c.b16 %v246, %v241
  %v297 = vpack.c.b16 %v252, %v247
  %v298 = vpack.c.b16 %v253, %v248
  %v299 = vpack.c.b16 %v254, %v249
  %v300 = vpack.c.b16 %v255, %v250
  %v301 = vpack.c.b16 %v256, %v251
  %v302 = vpack.c.b16 %v262, %v257
  %v303 = vpack.c.b16 %v263, %v258
  %v304 = vpack.c.b16 %v264, %v259
  %v305 = vpack.c.b16 %v265, %v260
  %v306 = vpack.c.b16 %v266, %v261
  %v411 = vunpack.c.l.b16 %v63
  %v412 = vunpack.c.l.b16 %v64
  %v413 = vunpack.c.l.b16 %v65
  %v414 = vunpack.c.l.b16 %v66
  %v415 = vunpack.c.l.b16 %v67
  %v416 = vunpack.c.l.b16 %v68
  %v417 = vunpack.c.l.b16 %v69
  %v418 = vunpack.c.l.b16 %v70
  %v419 = vunpack.c.l.b16 %v71
  %v420 = vunpack.c.l.b16 %v72
  %v421 = vunpack.c.l.b16 %v73
  %v422 = vunpack.c.l.b16 %v74
  %v423 = vunpack.c.l.b16 %v75
  %v424 = vunpack.c.l.b16 %v76
  %v425 = vunpack.c.l.b16 %v77
  %v426 = vunpack.c.l.b16 %v78
  %v427 = vunpack.c.l.b16 %v79
  %v428 = vunpack.c.l.b16 %v80
  %v429 = vunpack.c.l.b16 %v81
  %v430 = vunpack.c.l.b16 %v82
  %v431 = vunpack.c.l.b16 %v83
  %v432 = vunpack.c.l.b16 %v84
  %v433 = vunpack.c.l.b16 %v85
  %v434 = vunpack.c.l.b16 %v86
  %v435 = vunpack.c.l.b16 %v87
  %v436 = vunpack.c.l.b16 %v88
  %v437 = vunpack.c.l.b16 %v89
  %v438 = vunpack.c.l.b16 %v90
  %v439 = vunpack.c.l.b16 %v91
  %v440 = vunpack.c.l.b16 %v92
  %v441 = vunpack.c.l.b16 %v93
  %v442 = vunpack.c.l.b16 %v94
  %v443 = vunpack.c.l.b16 %v95
  %v444 = vunpack.c.l.b16 %v96
  %v445 = vunpack.c.l.b16 %v97
  %v446 = vunpack.c.l.b16 %v98
  %v447 = vunpack.c.l.b16 %v99
  %v448 = vunpack.c.l.b16 %v100
  %v449 = vunpack.c.l.b16 %v101
  %v450 = vunpack.c.l.b16 %v102
  %v451 = vunpack.c.l.b16 %v103
  %v452 = vunpack.c.l.b16 %v104
  %v453 = vunpack.c.l.b16 %v105
  %v454 = vunpack.c.l.b16 %v106
  %v455 = vunpack.c.l.b16 %v107
  %v456 = vunpack.c.l.b16 %v108
  %v457 = vunpack.c.l.b16 %v109
  %v458 = vunpack.c.l.b16 %v110
  %v459 = vunpack.c.l.b16 %v111
  %v460 = vunpack.c.l.b16 %v112
  %v461 = vunpack.c.l.b16 %v113
  %v462 = vunpack.c.l.b16 %v114
  %v463 = vunpack.c.l.b16 %v115
  %v464 = vunpack.c.l.b16 %v116
  %v465 = vunpack.c.l.b16 %v117
  %v466 = vunpack.c.l.b16 %v118
  %v467 = vunpack.c.l.b16 %v119
  %v468 = vunpack.c.l.b16 %v120
  %v469 = vunpack.c.l.b16 %v121
  %v470 = vunpack.c.l.b16 %v122
  %v471 = vunpack.c.l.b16 %v123
  %v472 = vunpack.c.l.b16 %v124
  %v473 = vunpack.c.l.b16 %v125
  %v474 = vunpack.c.l.b16 %v126
  %v475 = vunpack.c.l.b16 %v127
  %v476 = vunpack.c.l.b16 %v128
  %v477 = vunpack.c.l.b16 %v129
  %v478 = vunpack.c.l.b16 %v130
  %v479 = vunpack.c.l.b16 %v131
  %v480 = vunpack.c.l.b16 %v132
  %v481 = vunpack.c.l.b16 %v133
  %v482 = vunpack.c.l.b16 %v134
  %v483 = vpack.c.b16 %v412, %v411
  %v484 = vpack.c.b16 %v414, %v413
  %v485 = vpack.c.b16 %v416, %v415
  %v486 = vpack.c.b16 %v418, %v417
  %v487 = vpack.c.b16 %v420, %v419
  %v488 = vpack.c.b16 %v422, %v421
  %v489 = vpack.c.b16 %v424, %v423
  %v490 = vpack.c.b16 %v426, %v425
  %v491 = vpack.c.b16 %v428, %v427
  %v492 = vpack.c.b16 %v430, %v429
  %v493 = vpack.c.b16 %v432, %v431
  %v494 = vpack.c.b16 %v434, %v433
  %v495 = vpack.c.b16 %v436, %v435
  %v496 = vpack.c.b16 %v438, %v437
  %v497 = vpack.c.b16 %v440, %v439
  %v498 = vpack.c.b16 %v442, %v441
  %v499 = vpack.c.b16 %v444, %v443
  %v500 = vpack.c.b16 %v446, %v445
  %v501 = vpack.c.b16 %v448, %v447
  %v502 = vpack.c.b16 %v450, %v449
  %v503 = vpack.c.b16 %v452, %v451
  %v504 = vpack.c.b16 %v454, %v453
  %v505 = vpack.c.b16 %v456, %v455
  %v506 = vpack.c.b16 %v458, %v457
  %v507 = vpack.c.b16 %v460, %v459
  %v508 = vpack.c.b16 %v462, %v461
  %v509 = vpack.c.b16 %v464, %v463
  %v510 = vpack.c.b16 %v466, %v465
  %v511 = vpack.c.b16 %v468, %v467
  %v512 = vpack.c.b16 %v470, %v469
  %v513 = vpack.c.b16 %v472, %v471
  %v514 = vpack.c.b16 %v474, %v473
  %v515 = vpack.c.b16 %v476, %v475
  %v516 = vpack.c.b16 %v478, %v477
  %v517 = vpack.c.b16 %v480, %v479
  %v518 = vpack.c.b16 %v482, %v481
  %vm555 = vcmask 523264
  %v557 = vsel %vm555, %v271, 0
  %v560 = vsel %vm555, %v276, 0
  %v563 = vsel %vm555, %v281, 0
  %v566 = vsel %vm555, %v286, 0
  %v569 = vsel %vm555, %v291, 0
  %v572 = vsel %vm555, %v296, 0
  %v575 = vsel %vm555, %v301, 0
  %v578 = vsel %vm555, %v306, 0
  %580 = vmatpush.bf16.msra.mxu0 %v490
  %581 = vmatpush.bf16.msra.mxu0 %v489
  %582 = vmatpush.bf16.msra.mxu0 %v488
  %583 = vmatpush.bf16.msra.mxu0 %v487
  %584 = vmatpush.bf16.msra.mxu0 %v486
  %585 = vmatpush.bf16.msra.mxu0 %v485
  %586 = vmatpush.bf16.msra.mxu0 %v484
  %587 = vmatpush.bf16.msra.mxu0 %v483
  %588 = vmatmul.bf16.gmra.mxu0 %v267
  %v589 = vpop.f32.mrf.mxu0
  %v590 = vadd.f32 %v137, %v589
  %v591 = vpop.f32.mrf.mxu0
  %v592 = vadd.f32 %v137, %v591
  %593 = vmatmul.bf16.gmra.mxu0 %v272
  %v594 = vpop.f32.mrf.mxu0
  %v595 = vadd.f32 %v137, %v594
  %v596 = vpop.f32.mrf.mxu0
  %v597 = vadd.f32 %v137, %v596
  %598 = vmatmul.bf16.gmra.mxu0 %v277
  %v599 = vpop.f32.mrf.mxu0
  %v600 = vadd.f32 %v137, %v599
  %v601 = vpop.f32.mrf.mxu0
  %v602 = vadd.f32 %v137, %v601
  %603 = vmatmul.bf16.gmra.mxu0 %v282
  %v604 = vpop.f32.mrf.mxu0
  %v605 = vadd.f32 %v137, %v604
  %v606 = vpop.f32.mrf.mxu0
  %v607 = vadd.f32 %v137, %v606
  %608 = vmatmul.bf16.gmra.mxu0 %v287
  %v609 = vpop.f32.mrf.mxu0
  %v610 = vadd.f32 %v137, %v609
  %v611 = vpop.f32.mrf.mxu0
  %v612 = vadd.f32 %v137, %v611
  %613 = vmatmul.bf16.gmra.mxu0 %v292
  %v614 = vpop.f32.mrf.mxu0
  %v615 = vadd.f32 %v137, %v614
  %v616 = vpop.f32.mrf.mxu0
  %v617 = vadd.f32 %v137, %v616
  %618 = vmatmul.bf16.gmra.mxu0 %v297
  %v619 = vpop.f32.mrf.mxu0
  %v620 = vadd.f32 %v137, %v619
  %v621 = vpop.f32.mrf.mxu0
  %v622 = vadd.f32 %v137, %v621
  %623 = vmatmul.bf16.gmra.mxu0 %v302
  %v624 = vpop.f32.mrf.mxu0
  %v625 = vadd.f32 %v137, %v624
  %v626 = vpop.f32.mrf.mxu0
  %v627 = vadd.f32 %v137, %v626
  %628 = vdwg.mxu0
  %629 = vmatpush.bf16.msra.mxu0 %v498
  %630 = vmatpush.bf16.msra.mxu0 %v497
  %631 = vmatpush.bf16.msra.mxu0 %v496
  %632 = vmatpush.bf16.msra.mxu0 %v495
  %633 = vmatpush.bf16.msra.mxu0 %v494
  %634 = vmatpush.bf16.msra.mxu0 %v493
  %635 = vmatpush.bf16.msra.mxu0 %v492
  %636 = vmatpush.bf16.msra.mxu0 %v491
  %637 = vmatmul.bf16.gmra.mxu0 %v268
  %v638 = vpop.f32.mrf.mxu0
  %v639 = vadd.f32 %v590, %v638
  %v640 = vpop.f32.mrf.mxu0
  %v641 = vadd.f32 %v592, %v640
  %642 = vmatmul.bf16.gmra.mxu0 %v273
  %v643 = vpop.f32.mrf.mxu0
  %v644 = vadd.f32 %v595, %v643
  %v645 = vpop.f32.mrf.mxu0
  %v646 = vadd.f32 %v597, %v645
  %647 = vmatmul.bf16.gmra.mxu0 %v278
  %v648 = vpop.f32.mrf.mxu0
  %v649 = vadd.f32 %v600, %v648
  %v650 = vpop.f32.mrf.mxu0
  %v651 = vadd.f32 %v602, %v650
  %652 = vmatmul.bf16.gmra.mxu0 %v283
  %v653 = vpop.f32.mrf.mxu0
  %v654 = vadd.f32 %v605, %v653
  %v655 = vpop.f32.mrf.mxu0
  %v656 = vadd.f32 %v607, %v655
  %657 = vmatmul.bf16.gmra.mxu0 %v288
  %v658 = vpop.f32.mrf.mxu0
  %v659 = vadd.f32 %v610, %v658
  %v660 = vpop.f32.mrf.mxu0
  %v661 = vadd.f32 %v612, %v660
  %662 = vmatmul.bf16.gmra.mxu0 %v293
  %v663 = vpop.f32.mrf.mxu0
  %v664 = vadd.f32 %v615, %v663
  %v665 = vpop.f32.mrf.mxu0
  %v666 = vadd.f32 %v617, %v665
  %667 = vmatmul.bf16.gmra.mxu0 %v298
  %v668 = vpop.f32.mrf.mxu0
  %v669 = vadd.f32 %v620, %v668
  %v670 = vpop.f32.mrf.mxu0
  %v671 = vadd.f32 %v622, %v670
  %672 = vmatmul.bf16.gmra.mxu0 %v303
  %v673 = vpop.f32.mrf.mxu0
  %v674 = vadd.f32 %v625, %v673
  %v675 = vpop.f32.mrf.mxu0
  %v676 = vadd.f32 %v627, %v675
  %677 = vdwg.mxu0
  %678 = vmatpush.bf16.msra.mxu0 %v506
  %679 = vmatpush.bf16.msra.mxu0 %v505
  %680 = vmatpush.bf16.msra.mxu0 %v504
  %681 = vmatpush.bf16.msra.mxu0 %v503
  %682 = vmatpush.bf16.msra.mxu0 %v502
  %683 = vmatpush.bf16.msra.mxu0 %v501
  %684 = vmatpush.bf16.msra.mxu0 %v500
  %685 = vmatpush.bf16.msra.mxu0 %v499
  %686 = vmatmul.bf16.gmra.mxu0 %v269
  %v687 = vpop.f32.mrf.mxu0
  %v688 = vadd.f32 %v639, %v687
  %v689 = vpop.f32.mrf.mxu0
  %v690 = vadd.f32 %v641, %v689
  %691 = vmatmul.bf16.gmra.mxu0 %v274
  %v692 = vpop.f32.mrf.mxu0
  %v693 = vadd.f32 %v644, %v692
  %v694 = vpop.f32.mrf.mxu0
  %v695 = vadd.f32 %v646, %v694
  %696 = vmatmul.bf16.gmra.mxu0 %v279
  %v697 = vpop.f32.mrf.mxu0
  %v698 = vadd.f32 %v649, %v697
  %v699 = vpop.f32.mrf.mxu0
  %v700 = vadd.f32 %v651, %v699
  %701 = vmatmul.bf16.gmra.mxu0 %v284
  %v702 = vpop.f32.mrf.mxu0
  %v703 = vadd.f32 %v654, %v702
  %v704 = vpop.f32.mrf.mxu0
  %v705 = vadd.f32 %v656, %v704
  %706 = vmatmul.bf16.gmra.mxu0 %v289
  %v707 = vpop.f32.mrf.mxu0
  %v708 = vadd.f32 %v659, %v707
  %v709 = vpop.f32.mrf.mxu0
  %v710 = vadd.f32 %v661, %v709
  %711 = vmatmul.bf16.gmra.mxu0 %v294
  %v712 = vpop.f32.mrf.mxu0
  %v713 = vadd.f32 %v664, %v712
  %v714 = vpop.f32.mrf.mxu0
  %v715 = vadd.f32 %v666, %v714
  %716 = vmatmul.bf16.gmra.mxu0 %v299
  %v717 = vpop.f32.mrf.mxu0
  %v718 = vadd.f32 %v669, %v717
  %v719 = vpop.f32.mrf.mxu0
  %v720 = vadd.f32 %v671, %v719
  %721 = vmatmul.bf16.gmra.mxu0 %v304
  %v722 = vpop.f32.mrf.mxu0
  %v723 = vadd.f32 %v674, %v722
  %v724 = vpop.f32.mrf.mxu0
  %v725 = vadd.f32 %v676, %v724
  %726 = vdwg.mxu0
  %727 = vmatpush.bf16.msra.mxu0 %v514
  %728 = vmatpush.bf16.msra.mxu0 %v513
  %729 = vmatpush.bf16.msra.mxu0 %v512
  %730 = vmatpush.bf16.msra.mxu0 %v511
  %731 = vmatpush.bf16.msra.mxu0 %v510
  %732 = vmatpush.bf16.msra.mxu0 %v509
  %733 = vmatpush.bf16.msra.mxu0 %v508
  %734 = vmatpush.bf16.msra.mxu0 %v507
  %735 = vmatmul.bf16.gmra.mxu0 %v270
  %v736 = vpop.f32.mrf.mxu0
  %v737 = vadd.f32 %v688, %v736
  %v738 = vpop.f32.mrf.mxu0
  %v739 = vadd.f32 %v690, %v738
  %740 = vmatmul.bf16.gmra.mxu0 %v275
  %v741 = vpop.f32.mrf.mxu0
  %v742 = vadd.f32 %v693, %v741
  %v743 = vpop.f32.mrf.mxu0
  %v744 = vadd.f32 %v695, %v743
  %745 = vmatmul.bf16.gmra.mxu0 %v280
  %v746 = vpop.f32.mrf.mxu0
  %v747 = vadd.f32 %v698, %v746
  %v748 = vpop.f32.mrf.mxu0
  %v749 = vadd.f32 %v700, %v748
  %750 = vmatmul.bf16.gmra.mxu0 %v285
  %v751 = vpop.f32.mrf.mxu0
  %v752 = vadd.f32 %v703, %v751
  %v753 = vpop.f32.mrf.mxu0
  %v754 = vadd.f32 %v705, %v753
  %755 = vmatmul.bf16.gmra.mxu0 %v290
  %v756 = vpop.f32.mrf.mxu0
  %v757 = vadd.f32 %v708, %v756
  %v758 = vpop.f32.mrf.mxu0
  %v759 = vadd.f32 %v710, %v758
  %760 = vmatmul.bf16.gmra.mxu0 %v295
  %v761 = vpop.f32.mrf.mxu0
  %v762 = vadd.f32 %v713, %v761
  %v763 = vpop.f32.mrf.mxu0
  %v764 = vadd.f32 %v715, %v763
  %765 = vmatmul.bf16.gmra.mxu0 %v300
  %v766 = vpop.f32.mrf.mxu0
  %v767 = vadd.f32 %v718, %v766
  %v768 = vpop.f32.mrf.mxu0
  %v769 = vadd.f32 %v720, %v768
  %770 = vmatmul.bf16.gmra.mxu0 %v305
  %v771 = vpop.f32.mrf.mxu0
  %v772 = vadd.f32 %v723, %v771
  %v773 = vpop.f32.mrf.mxu0
  %v774 = vadd.f32 %v725, %v773
  %775 = vdwg.mxu0
  %776 = vmatpush.bf16.msra.mxu0 0
  %777 = vmatpush.bf16.msra.mxu0 0
  %778 = vmatpush.bf16.msra.mxu0 0
  %779 = vmatpush.bf16.msra.mxu0 0
  %780 = vmatpush.bf16.msra.mxu0 %v518
  %781 = vmatpush.bf16.msra.mxu0 %v517
  %782 = vmatpush.bf16.msra.mxu0 %v516
  %783 = vmatpush.bf16.msra.mxu0 %v515
  %784 = vmatmul.bf16.gmra.mxu0 %v557
  %v785 = vpop.f32.mrf.mxu0
  %v786 = vadd.f32 %v737, %v785
  %v787 = vpop.f32.mrf.mxu0
  %v788 = vadd.f32 %v739, %v787
  %789 = vmatmul.bf16.gmra.mxu0 %v560
  %v790 = vpop.f32.mrf.mxu0
  %v791 = vadd.f32 %v742, %v790
  %v792 = vpop.f32.mrf.mxu0
  %v793 = vadd.f32 %v744, %v792
  %794 = vmatmul.bf16.gmra.mxu0 %v563
  %v795 = vpop.f32.mrf.mxu0
  %v796 = vadd.f32 %v747, %v795
  %v797 = vpop.f32.mrf.mxu0
  %v798 = vadd.f32 %v749, %v797
  %799 = vmatmul.bf16.gmra.mxu0 %v566
  %v800 = vpop.f32.mrf.mxu0
  %v801 = vadd.f32 %v752, %v800
  %v802 = vpop.f32.mrf.mxu0
  %v803 = vadd.f32 %v754, %v802
  %804 = vmatmul.bf16.gmra.mxu0 %v569
  %v805 = vpop.f32.mrf.mxu0
  %v806 = vadd.f32 %v757, %v805
  %v807 = vpop.f32.mrf.mxu0
  %v808 = vadd.f32 %v759, %v807
  %809 = vmatmul.bf16.gmra.mxu0 %v572
  %v810 = vpop.f32.mrf.mxu0
  %v811 = vadd.f32 %v762, %v810
  %v812 = vpop.f32.mrf.mxu0
  %v813 = vadd.f32 %v764, %v812
  %814 = vmatmul.bf16.gmra.mxu0 %v575
  %v815 = vpop.f32.mrf.mxu0
  %v816 = vadd.f32 %v767, %v815
  %v817 = vpop.f32.mrf.mxu0
  %v818 = vadd.f32 %v769, %v817
  %819 = vmatmul.bf16.gmra.mxu0 %v578
  %v820 = vpop.f32.mrf.mxu0
  %v821 = vadd.f32 %v772, %v820
  %v822 = vpop.f32.mrf.mxu0
  %v823 = vadd.f32 %v774, %v822
  %824 = vdwg.mxu0
  %v825 = vmax.f32 %v786, 0.0
  %v826 = vmax.f32 %v788, 0.0
  %v827 = vmax.f32 %v791, 0.0
  %v828 = vmax.f32 %v793, 0.0
  %v829 = vmax.f32 %v796, 0.0
  %v830 = vmax.f32 %v798, 0.0
  %v831 = vmax.f32 %v801, 0.0
  %v832 = vmax.f32 %v803, 0.0
  %v833 = vmax.f32 %v806, 0.0
  %v834 = vmax.f32 %v808, 0.0
  %v835 = vmax.f32 %v811, 0.0
  %v836 = vmax.f32 %v813, 0.0
  %v837 = vmax.f32 %v816, 0.0
  %v838 = vmax.f32 %v818, 0.0
  %v839 = vmax.f32 %v821, 0.0
  %v840 = vmax.f32 %v823, 0.0
  %v841 = vpack.c.bf16 %v825, %v825
  %v842 = vpack.c.bf16 %v826, %v826
  %v843 = vpack.c.bf16 %v827, %v827
  %v844 = vpack.c.bf16 %v828, %v828
  %v845 = vpack.c.bf16 %v829, %v829
  %v846 = vpack.c.bf16 %v830, %v830
  %v847 = vpack.c.bf16 %v831, %v831
  %v848 = vpack.c.bf16 %v832, %v832
  %v849 = vpack.c.bf16 %v833, %v833
  %v850 = vpack.c.bf16 %v834, %v834
  %v851 = vpack.c.bf16 %v835, %v835
  %v852 = vpack.c.bf16 %v836, %v836
  %v853 = vpack.c.bf16 %v837, %v837
  %v854 = vpack.c.bf16 %v838, %v838
  %v855 = vpack.c.bf16 %v839, %v839
  %v856 = vpack.c.bf16 %v840, %v840
  %857 = vst [vmem:[%s3] sm:$0xf] %v841
  %858 = vst [vmem:[%s3 + $0x4] sm:$0xf] %v842
  %859 = vst [vmem:[%s3 + $0x8] sm:$0xf] %v843
  %860 = vst [vmem:[%s3 + $0xc] sm:$0xf] %v844
  %861 = vst [vmem:[%s3 + $0x10] sm:$0xf] %v845
  %862 = vst [vmem:[%s3 + $0x14] sm:$0xf] %v846
  %863 = vst [vmem:[%s3 + $0x18] sm:$0xf] %v847
  %864 = vst [vmem:[%s3 + $0x1c] sm:$0xf] %v848
  %865 = vst [vmem:[%s3 + $0x20] sm:$0xf] %v849
  %866 = vst [vmem:[%s3 + $0x24] sm:$0xf] %v850
  %867 = vst [vmem:[%s3 + $0x28] sm:$0xf] %v851
  %868 = vst [vmem:[%s3 + $0x2c] sm:$0xf] %v852
  %869 = vst [vmem:[%s3 + $0x30] sm:$0xf] %v853
  %870 = vst [vmem:[%s3 + $0x34] sm:$0xf] %v854
  %871 = vst [vmem:[%s3 + $0x38] sm:$0xf] %v855
  %872 = vst [vmem:[%s3 + $0x3c] sm:$0xf] %v856
  // Predicated region
  $region14: #{rnet_forward.7} parent=0 // pred_check
    _
  $region15: #{rnet_forward.7} parent=0 // pred_check_branch
    %874 = sbr.rel (0) target = $region17
  $region16: #{rnet_forward.7} parent=0 // pred_region
    _
  $region17: #{rnet_forward.7} parent=0 // pred_fallthru
    _
  // Predicated region
  $region18: #{rnet_forward.7} parent=0 // pred_check
    _
  $region19: #{rnet_forward.7} parent=0 // pred_check_branch
    %876 = sbr.rel (0) target = $region21
  $region20: #{rnet_forward.7} parent=0 // pred_region
    _
  $region21: #{rnet_forward.7} parent=0 // pred_fallthru
    _

// kernel: rnet_forward.8
$region0: #{rnet_forward.8}
  #allocation0 [shape = 'u32[]', space=smem, size = 0x4, offset = 0x4, fixed_abs, tag = 'smem constant byte address 0x4 - core index']
  #allocation1 [shape = 'u32[72,128]{1,0:T(1,128)}', space=vmem, size = 0x9000, scoped, tag = 'internal scratch']
  %s0 = inlined_call_operand.vmem [shape: bf16[32,1152], index: 0, kind: input, shape index: {}]
  %s1 = inlined_call_operand.vmem [shape: bf16[1152,128], index: 1, kind: input, shape index: {}]
  %s2 = inlined_call_operand.vmem [shape: f32[1,128], index: 2, kind: input, shape index: {}]
  %s3 = inlined_call_operand.vmem [shape: bf16[32,128], index: 3, kind: output, shape index: {}]
  %s4 = sld [smem:[#allocation0]]
  $region22: #{rnet_forward.8} parent=0
    _
  %s6 = ssub.s32 1, %s4
  %s7 = scalar_select 0, %s6, %s4
  // Predicated region
  $region2: #{rnet_forward.8} parent=0 // pred_check
    _
  $region3: #{rnet_forward.8} parent=0 // pred_check_branch
    %9 = sbr.rel (0) target = $region5
  $region4: #{rnet_forward.8} parent=0 // pred_region
    _
  $region5: #{rnet_forward.8} parent=0 // pred_fallthru
    _
  // Predicated region
  $region6: #{rnet_forward.8} parent=0 // pred_check
    _
  $region7: #{rnet_forward.8} parent=0 // pred_check_branch
    %11 = sbr.rel (0) target = $region9
  $region8: #{rnet_forward.8} parent=0 // pred_region
    _
  $region9: #{rnet_forward.8} parent=0 // pred_fallthru
    _
  // Predicated region
  $region10: #{rnet_forward.8} parent=0 // pred_check
    _
  $region11: #{rnet_forward.8} parent=0 // pred_check_branch
    %13 = sbr.rel (0) target = $region13
  $region12: #{rnet_forward.8} parent=0 // pred_region
    _
  $region13: #{rnet_forward.8} parent=0 // pred_fallthru
    _
  %v14 = vld [vmem:[%s0] sm:$0xff]
  %v15 = vld [vmem:[%s0 + $0x8] sm:$0xff]
  %v16 = vld [vmem:[%s0 + $0x10] sm:$0xff]
  %v17 = vld [vmem:[%s0 + $0x18] sm:$0xff]
  %v18 = vld [vmem:[%s0 + $0x20] sm:$0xf]
  %v19 = vld [vmem:[%s0 + $0x24] sm:$0xff]
  %v20 = vld [vmem:[%s0 + $0x2c] sm:$0xff]
  %v21 = vld [vmem:[%s0 + $0x34] sm:$0xff]
  %v22 = vld [vmem:[%s0 + $0x3c] sm:$0xff]
  %v23 = vld [vmem:[%s0 + $0x44] sm:$0xf]
  %v24 = vld [vmem:[%s0 + $0x48] sm:$0xff]
  %v25 = vld [vmem:[%s0 + $0x50] sm:$0xff]
  %v26 = vld [vmem:[%s0 + $0x58] sm:$0xff]
  %v27 = vld [vmem:[%s0 + $0x60] sm:$0xff]
  %v28 = vld [vmem:[%s0 + $0x68] sm:$0xf]
  %v29 = vld [vmem:[%s0 + $0x6c] sm:$0xff]
  %v30 = vld [vmem:[%s0 + $0x74] sm:$0xff]
  %v31 = vld [vmem:[%s0 + $0x7c] sm:$0xff]
  %v32 = vld [vmem:[%s0 + $0x84] sm:$0xff]
  %v33 = vld [vmem:[%s0 + $0x8c] sm:$0xf]
  %v34 = vld [vmem:[%s1] sm:$0xf]
  %v35 = vld [vmem:[%s1 + $0x4] sm:$0xf]
  %v36 = vld [vmem:[%s1 + $0x8] sm:$0xf]
  %v37 = vld [vmem:[%s1 + $0xc] sm:$0xf]
  %v38 = vld [vmem:[%s1 + $0x10] sm:$0xf]
  %v39 = vld [vmem:[%s1 + $0x14] sm:$0xf]
  %v40 = vld [vmem:[%s1 + $0x18] sm:$0xf]
  %v41 = vld [vmem:[%s1 + $0x1c] sm:$0xf]
  %v42 = vld [vmem:[%s1 + $0x20] sm:$0xf]
  %v43 = vld [vmem:[%s1 + $0x24] sm:$0xf]
  %v44 = vld [vmem:[%s1 + $0x28] sm:$0xf]
  %v45 = vld [vmem:[%s1 + $0x2c] sm:$0xf]
  %v46 = vld [vmem:[%s1 + $0x30] sm:$0xf]
  %v47 = vld [vmem:[%s1 + $0x34] sm:$0xf]
  %v48 = vld [vmem:[%s1 + $0x38] sm:$0xf]
  %v49 = vld [vmem:[%s1 + $0x3c] sm:$0xf]
  %v50 = vld [vmem:[%s1 + $0x40] sm:$0xf]
  %v51 = vld [vmem:[%s1 + $0x44] sm:$0xf]
  %v52 = vld [vmem:[%s1 + $0x48] sm:$0xf]
  %v53 = vld [vmem:[%s1 + $0x4c] sm:$0xf]
  %v54 = vld [vmem:[%s1 + $0x50] sm:$0xf]
  %v55 = vld [vmem:[%s1 + $0x54] sm:$0xf]
  %v56 = vld [vmem:[%s1 + $0x58] sm:$0xf]
  %v57 = vld [vmem:[%s1 + $0x5c] sm:$0xf]
  %v58 = vld [vmem:[%s1 + $0x60] sm:$0xf]
  %v59 = vld [vmem:[%s1 + $0x64] sm:$0xf]
  %v60 = vld [vmem:[%s1 + $0x68] sm:$0xf]
  %v61 = vld [vmem:[%s1 + $0x6c] sm:$0xf]
  %v62 = vld [vmem:[%s1 + $0x70] sm:$0xf]
  %v63 = vld [vmem:[%s1 + $0x74] sm:$0xf]
  %v64 = vld [vmem:[%s1 + $0x78] sm:$0xf]
  %v65 = vld [vmem:[%s1 + $0x7c] sm:$0xf]
  %v66 = vld [vmem:[%s1 + $0x80] sm:$0xf]
  %v67 = vld [vmem:[%s1 + $0x84] sm:$0xf]
  %v68 = vld [vmem:[%s1 + $0x88] sm:$0xf]
  %v69 = vld [vmem:[%s1 + $0x8c] sm:$0xf]
  %v70 = vld [vmem:[%s1 + $0x90] sm:$0xf]
  %v71 = vld [vmem:[%s1 + $0x94] sm:$0xf]
  %v72 = vld [vmem:[%s1 + $0x98] sm:$0xf]
  %v73 = vld [vmem:[%s1 + $0x9c] sm:$0xf]
  %v74 = vld [vmem:[%s1 + $0xa0] sm:$0xf]
  %v75 = vld [vmem:[%s1 + $0xa4] sm:$0xf]
  %v76 = vld [vmem:[%s1 + $0xa8] sm:$0xf]
  %v77 = vld [vmem:[%s1 + $0xac] sm:$0xf]
  %v78 = vld [vmem:[%s1 + $0xb0] sm:$0xf]
  %v79 = vld [vmem:[%s1 + $0xb4] sm:$0xf]
  %v80 = vld [vmem:[%s1 + $0xb8] sm:$0xf]
  %v81 = vld [vmem:[%s1 + $0xbc] sm:$0xf]
  %v82 = vld [vmem:[%s1 + $0xc0] sm:$0xf]
  %v83 = vld [vmem:[%s1 + $0xc4] sm:$0xf]
  %v84 = vld [vmem:[%s1 + $0xc8] sm:$0xf]
  %v85 = vld [vmem:[%s1 + $0xcc] sm:$0xf]
  %v86 = vld [vmem:[%s1 + $0xd0] sm:$0xf]
  %v87 = vld [vmem:[%s1 + $0xd4] sm:$0xf]
  %v88 = vld [vmem:[%s1 + $0xd8] sm:$0xf]
  %v89 = vld [vmem:[%s1 + $0xdc] sm:$0xf]
  %v90 = vld [vmem:[%s1 + $0xe0] sm:$0xf]
  %v91 = vld [vmem:[%s1 + $0xe4] sm:$0xf]
  %v92 = vld [vmem:[%s1 + $0xe8] sm:$0xf]
  %v93 = vld [vmem:[%s1 + $0xec] sm:$0xf]
  %v94 = vld [vmem:[%s1 + $0xf0] sm:$0xf]
  %v95 = vld [vmem:[%s1 + $0xf4] sm:$0xf]
  %v96 = vld [vmem:[%s1 + $0xf8] sm:$0xf]
  %v97 = vld [vmem:[%s1 + $0xfc] sm:$0xf]
  %v98 = vld [vmem:[%s1 + $0x100] sm:$0xf]
  %v99 = vld [vmem:[%s1 + $0x104] sm:$0xf]
  %v100 = vld [vmem:[%s1 + $0x108] sm:$0xf]
  %v101 = vld [vmem:[%s1 + $0x10c] sm:$0xf]
  %v102 = vld [vmem:[%s1 + $0x110] sm:$0xf]
  %v103 = vld [vmem:[%s1 + $0x114] sm:$0xf]
  %v104 = vld [vmem:[%s1 + $0x118] sm:$0xf]
  %v105 = vld [vmem:[%s1 + $0x11c] sm:$0xf]
  %v106 = vld [vmem:[%s1 + $0x120] sm:$0xf]
  %v107 = vld [vmem:[%s1 + $0x124] sm:$0xf]
  %v108 = vld [vmem:[%s1 + $0x128] sm:$0xf]
  %v109 = vld [vmem:[%s1 + $0x12c] sm:$0xf]
  %v110 = vld [vmem:[%s1 + $0x130] sm:$0xf]
  %v111 = vld [vmem:[%s1 + $0x134] sm:$0xf]
  %v112 = vld [vmem:[%s1 + $0x138] sm:$0xf]
  %v113 = vld [vmem:[%s1 + $0x13c] sm:$0xf]
  %v114 = vld [vmem:[%s1 + $0x140] sm:$0xf]
  %v115 = vld [vmem:[%s1 + $0x144] sm:$0xf]
  %v116 = vld [vmem:[%s1 + $0x148] sm:$0xf]
  %v117 = vld [vmem:[%s1 + $0x14c] sm:$0xf]
  %v118 = vld [vmem:[%s1 + $0x150] sm:$0xf]
  %v119 = vld [vmem:[%s1 + $0x154] sm:$0xf]
  %v120 = vld [vmem:[%s1 + $0x158] sm:$0xf]
  %v121 = vld [vmem:[%s1 + $0x15c] sm:$0xf]
  %v122 = vld [vmem:[%s1 + $0x160] sm:$0xf]
  %v123 = vld [vmem:[%s1 + $0x164] sm:$0xf]
  %v124 = vld [vmem:[%s1 + $0x168] sm:$0xf]
  %v125 = vld [vmem:[%s1 + $0x16c] sm:$0xf]
  %v126 = vld [vmem:[%s1 + $0x170] sm:$0xf]
  %v127 = vld [vmem:[%s1 + $0x174] sm:$0xf]
  %v128 = vld [vmem:[%s1 + $0x178] sm:$0xf]
  %v129 = vld [vmem:[%s1 + $0x17c] sm:$0xf]
  %v130 = vld [vmem:[%s1 + $0x180] sm:$0xf]
  %v131 = vld [vmem:[%s1 + $0x184] sm:$0xf]
  %v132 = vld [vmem:[%s1 + $0x188] sm:$0xf]
  %v133 = vld [vmem:[%s1 + $0x18c] sm:$0xf]
  %v134 = vld [vmem:[%s1 + $0x190] sm:$0xf]
  %v135 = vld [vmem:[%s1 + $0x194] sm:$0xf]
  %v136 = vld [vmem:[%s1 + $0x198] sm:$0xf]
  %v137 = vld [vmem:[%s1 + $0x19c] sm:$0xf]
  %v138 = vld [vmem:[%s1 + $0x1a0] sm:$0xf]
  %v139 = vld [vmem:[%s1 + $0x1a4] sm:$0xf]
  %v140 = vld [vmem:[%s1 + $0x1a8] sm:$0xf]
  %v141 = vld [vmem:[%s1 + $0x1ac] sm:$0xf]
  %v142 = vld [vmem:[%s1 + $0x1b0] sm:$0xf]
  %v143 = vld [vmem:[%s1 + $0x1b4] sm:$0xf]
  %v144 = vld [vmem:[%s1 + $0x1b8] sm:$0xf]
  %v145 = vld [vmem:[%s1 + $0x1bc] sm:$0xf]
  %v146 = vld [vmem:[%s1 + $0x1c0] sm:$0xf]
  %v147 = vld [vmem:[%s1 + $0x1c4] sm:$0xf]
  %v148 = vld [vmem:[%s1 + $0x1c8] sm:$0xf]
  %v149 = vld [vmem:[%s1 + $0x1cc] sm:$0xf]
  %v150 = vld [vmem:[%s1 + $0x1d0] sm:$0xf]
  %v151 = vld [vmem:[%s1 + $0x1d4] sm:$0xf]
  %v152 = vld [vmem:[%s1 + $0x1d8] sm:$0xf]
  %v153 = vld [vmem:[%s1 + $0x1dc] sm:$0xf]
  %v154 = vld [vmem:[%s1 + $0x1e0] sm:$0xf]
  %v155 = vld [vmem:[%s1 + $0x1e4] sm:$0xf]
  %v156 = vld [vmem:[%s1 + $0x1e8] sm:$0xf]
  %v157 = vld [vmem:[%s1 + $0x1ec] sm:$0xf]
  %v158 = vld [vmem:[%s1 + $0x1f0] sm:$0xf]
  %v159 = vld [vmem:[%s1 + $0x1f4] sm:$0xf]
  %v160 = vld [vmem:[%s1 + $0x1f8] sm:$0xf]
  %v161 = vld [vmem:[%s1 + $0x1fc] sm:$0xf]
  %v162 = vld [vmem:[%s1 + $0x200] sm:$0xf]
  %v163 = vld [vmem:[%s1 + $0x204] sm:$0xf]
  %v164 = vld [vmem:[%s1 + $0x208] sm:$0xf]
  %v165 = vld [vmem:[%s1 + $0x20c] sm:$0xf]
  %v166 = vld [vmem:[%s1 + $0x210] sm:$0xf]
  %v167 = vld [vmem:[%s1 + $0x214] sm:$0xf]
  %v168 = vld [vmem:[%s1 + $0x218] sm:$0xf]
  %v169 = vld [vmem:[%s1 + $0x21c] sm:$0xf]
  %v170 = vld [vmem:[%s1 + $0x220] sm:$0xf]
  %v171 = vld [vmem:[%s1 + $0x224] sm:$0xf]
  %v172 = vld [vmem:[%s1 + $0x228] sm:$0xf]
  %v173 = vld [vmem:[%s1 + $0x22c] sm:$0xf]
  %v174 = vld [vmem:[%s1 + $0x230] sm:$0xf]
  %v175 = vld [vmem:[%s1 + $0x234] sm:$0xf]
  %v176 = vld [vmem:[%s1 + $0x238] sm:$0xf]
  %v177 = vld [vmem:[%s1 + $0x23c] sm:$0xf]
  %v178 = vld [vmem:[%s2] sm:$0x1]
  %v180 = vperm.slane %v178, 0
  %v202 = vunpack.c.l.b16 %v14
  %v203 = vunpack.c.h.b16 %v14
  %v204 = vunpack.c.l.b16 %v15
  %v205 = vunpack.c.h.b16 %v15
  %v206 = vunpack.c.l.b16 %v16
  %v207 = vunpack.c.h.b16 %v16
  %v208 = vunpack.c.l.b16 %v17
  %v209 = vunpack.c.h.b16 %v17
  %v210 = vunpack.c.l.b16 %v18
  %v211 = vunpack.c.l.b16 %v19
  %v212 = vunpack.c.h.b16 %v19
  %v213 = vunpack.c.l.b16 %v20
  %v214 = vunpack.c.h.b16 %v20
  %v215 = vunpack.c.l.b16 %v21
  %v216 = vunpack.c.h.b16 %v21
  %v217 = vunpack.c.l.b16 %v22
  %v218 = vunpack.c.h.b16 %v22
  %v219 = vunpack.c.l.b16 %v23
  %v220 = vunpack.c.l.b16 %v24
  %v221 = vunpack.c.h.b16 %v24
  %v222 = vunpack.c.l.b16 %v25
  %v223 = vunpack.c.h.b16 %v25
  %v224 = vunpack.c.l.b16 %v26
  %v225 = vunpack.c.h.b16 %v26
  %v226 = vunpack.c.l.b16 %v27
  %v227 = vunpack.c.h.b16 %v27
  %v228 = vunpack.c.l.b16 %v28
  %v229 = vunpack.c.l.b16 %v29
  %v230 = vunpack.c.h.b16 %v29
  %v231 = vunpack.c.l.b16 %v30
  %v232 = vunpack.c.h.b16 %v30
  %v233 = vunpack.c.l.b16 %v31
  %v234 = vunpack.c.h.b16 %v31
  %v235 = vunpack.c.l.b16 %v32
  %v236 = vunpack.c.h.b16 %v32
  %v237 = vunpack.c.l.b16 %v33
  %v238 = vpack.c.b16 %v211, %v202
  %v239 = vpack.c.b16 %v212, %v203
  %v240 = vpack.c.b16 %v213, %v204
  %v241 = vpack.c.b16 %v214, %v205
  %v242 = vpack.c.b16 %v215, %v206
  %v243 = vpack.c.b16 %v216, %v207
  %v244 = vpack.c.b16 %v217, %v208
  %v245 = vpack.c.b16 %v218, %v209
  %v246 = vpack.c.b16 %v219, %v210
  %v247 = vpack.c.b16 %v229, %v220
  %v248 = vpack.c.b16 %v230, %v221
  %v249 = vpack.c.b16 %v231, %v222
  %v250 = vpack.c.b16 %v232, %v223
  %v251 = vpack.c.b16 %v233, %v224
  %v252 = vpack.c.b16 %v234, %v225
  %v253 = vpack.c.b16 %v235, %v226
  %v254 = vpack.c.b16 %v236, %v227
  %v255 = vpack.c.b16 %v237, %v228
  %v418 = vunpack.c.l.b16 %v34
  %v419 = vunpack.c.l.b16 %v35
  %v420 = vunpack.c.l.b16 %v36
  %v421 = vunpack.c.l.b16 %v37
  %v422 = vunpack.c.l.b16 %v38
  %v423 = vunpack.c.l.b16 %v39
  %v424 = vunpack.c.l.b16 %v40
  %v425 = vunpack.c.l.b16 %v41
  %v426 = vunpack.c.l.b16 %v42
  %v427 = vunpack.c.l.b16 %v43
  %v428 = vunpack.c.l.b16 %v44
  %v429 = vunpack.c.l.b16 %v45
  %v430 = vunpack.c.l.b16 %v46
  %v431 = vunpack.c.l.b16 %v47
  %v432 = vunpack.c.l.b16 %v48
  %v433 = vunpack.c.l.b16 %v49
  %v434 = vunpack.c.l.b16 %v50
  %v435 = vunpack.c.l.b16 %v51
  %v436 = vunpack.c.l.b16 %v52
  %v437 = vunpack.c.l.b16 %v53
  %v438 = vunpack.c.l.b16 %v54
  %v439 = vunpack.c.l.b16 %v55
  %v440 = vunpack.c.l.b16 %v56
  %v441 = vunpack.c.l.b16 %v57
  %v442 = vunpack.c.l.b16 %v58
  %v443 = vunpack.c.l.b16 %v59
  %v444 = vunpack.c.l.b16 %v60
  %v445 = vunpack.c.l.b16 %v61
  %v446 = vunpack.c.l.b16 %v62
  %v447 = vunpack.c.l.b16 %v63
  %v448 = vunpack.c.l.b16 %v64
  %v449 = vunpack.c.l.b16 %v65
  %v450 = vunpack.c.l.b16 %v66
  %v451 = vunpack.c.l.b16 %v67
  %v452 = vunpack.c.l.b16 %v68
  %v453 = vunpack.c.l.b16 %v69
  %v454 = vunpack.c.l.b16 %v70
  %v455 = vunpack.c.l.b16 %v71
  %v456 = vunpack.c.l.b16 %v72
  %v457 = vunpack.c.l.b16 %v73
  %v458 = vunpack.c.l.b16 %v74
  %v459 = vunpack.c.l.b16 %v75
  %v460 = vunpack.c.l.b16 %v76
  %v461 = vunpack.c.l.b16 %v77
  %v462 = vunpack.c.l.b16 %v78
  %v463 = vunpack.c.l.b16 %v79
  %v464 = vunpack.c.l.b16 %v80
  %v465 = vunpack.c.l.b16 %v81
  %v466 = vunpack.c.l.b16 %v82
  %v467 = vunpack.c.l.b16 %v83
  %v468 = vunpack.c.l.b16 %v84
  %v469 = vunpack.c.l.b16 %v85
  %v470 = vunpack.c.l.b16 %v86
  %v471 = vunpack.c.l.b16 %v87
  %v472 = vunpack.c.l.b16 %v88
  %v473 = vunpack.c.l.b16 %v89
  %v474 = vunpack.c.l.b16 %v90
  %v475 = vunpack.c.l.b16 %v91
  %v476 = vunpack.c.l.b16 %v92
  %v477 = vunpack.c.l.b16 %v93
  %v478 = vunpack.c.l.b16 %v94
  %v479 = vunpack.c.l.b16 %v95
  %v480 = vunpack.c.l.b16 %v96
  %v481 = vunpack.c.l.b16 %v97
  %v482 = vunpack.c.l.b16 %v98
  %v483 = vunpack.c.l.b16 %v99
  %v484 = vunpack.c.l.b16 %v100
  %v485 = vunpack.c.l.b16 %v101
  %v486 = vunpack.c.l.b16 %v102
  %v487 = vunpack.c.l.b16 %v103
  %v488 = vunpack.c.l.b16 %v104
  %v489 = vunpack.c.l.b16 %v105
  %v490 = vunpack.c.l.b16 %v106
  %v491 = vunpack.c.l.b16 %v107
  %v492 = vunpack.c.l.b16 %v108
  %v493 = vunpack.c.l.b16 %v109
  %v494 = vunpack.c.l.b16 %v110
  %v495 = vunpack.c.l.b16 %v111
  %v496 = vunpack.c.l.b16 %v112
  %v497 = vunpack.c.l.b16 %v113
  %v498 = vunpack.c.l.b16 %v114
  %v499 = vunpack.c.l.b16 %v115
  %v500 = vunpack.c.l.b16 %v116
  %v501 = vunpack.c.l.b16 %v117
  %v502 = vunpack.c.l.b16 %v118
  %v503 = vunpack.c.l.b16 %v119
  %v504 = vunpack.c.l.b16 %v120
  %v505 = vunpack.c.l.b16 %v121
  %v506 = vunpack.c.l.b16 %v122
  %v507 = vunpack.c.l.b16 %v123
  %v508 = vunpack.c.l.b16 %v124
  %v509 = vunpack.c.l.b16 %v125
  %v510 = vunpack.c.l.b16 %v126
  %v511 = vunpack.c.l.b16 %v127
  %v512 = vunpack.c.l.b16 %v128
  %v513 = vunpack.c.l.b16 %v129
  %v514 = vunpack.c.l.b16 %v130
  %v515 = vunpack.c.l.b16 %v131
  %v516 = vunpack.c.l.b16 %v132
  %v517 = vunpack.c.l.b16 %v133
  %v518 = vunpack.c.l.b16 %v134
  %v519 = vunpack.c.l.b16 %v135
  %v520 = vunpack.c.l.b16 %v136
  %v521 = vunpack.c.l.b16 %v137
  %v522 = vunpack.c.l.b16 %v138
  %v523 = vunpack.c.l.b16 %v139
  %v524 = vunpack.c.l.b16 %v140
  %v525 = vunpack.c.l.b16 %v141
  %v526 = vunpack.c.l.b16 %v142
  %v527 = vunpack.c.l.b16 %v143
  %v528 = vunpack.c.l.b16 %v144
  %v529 = vunpack.c.l.b16 %v145
  %v530 = vunpack.c.l.b16 %v146
  %v531 = vunpack.c.l.b16 %v147
  %v532 = vunpack.c.l.b16 %v148
  %v533 = vunpack.c.l.b16 %v149
  %v534 = vunpack.c.l.b16 %v150
  %v535 = vunpack.c.l.b16 %v151
  %v536 = vunpack.c.l.b16 %v152
  %v537 = vunpack.c.l.b16 %v153
  %v538 = vunpack.c.l.b16 %v154
  %v539 = vunpack.c.l.b16 %v155
  %v540 = vunpack.c.l.b16 %v156
  %v541 = vunpack.c.l.b16 %v157
  %v542 = vunpack.c.l.b16 %v158
  %v543 = vunpack.c.l.b16 %v159
  %v544 = vunpack.c.l.b16 %v160
  %v545 = vunpack.c.l.b16 %v161
  %v546 = vunpack.c.l.b16 %v162
  %v547 = vunpack.c.l.b16 %v163
  %v548 = vunpack.c.l.b16 %v164
  %v549 = vunpack.c.l.b16 %v165
  %v550 = vunpack.c.l.b16 %v166
  %v551 = vunpack.c.l.b16 %v167
  %v552 = vunpack.c.l.b16 %v168
  %v553 = vunpack.c.l.b16 %v169
  %v554 = vunpack.c.l.b16 %v170
  %v555 = vunpack.c.l.b16 %v171
  %v556 = vunpack.c.l.b16 %v172
  %v557 = vunpack.c.l.b16 %v173
  %v558 = vunpack.c.l.b16 %v174
  %v559 = vunpack.c.l.b16 %v175
  %v560 = vunpack.c.l.b16 %v176
  %v561 = vunpack.c.l.b16 %v177
  %v562 = vpack.c.b16 %v419, %v418
  %v563 = vpack.c.b16 %v421, %v420
  %v564 = vpack.c.b16 %v423, %v422
  %v565 = vpack.c.b16 %v425, %v424
  %v566 = vpack.c.b16 %v427, %v426
  %v567 = vpack.c.b16 %v429, %v428
  %v568 = vpack.c.b16 %v431, %v430
  %v569 = vpack.c.b16 %v433, %v432
  %v570 = vpack.c.b16 %v435, %v434
  %v571 = vpack.c.b16 %v437, %v436
  %v572 = vpack.c.b16 %v439, %v438
  %v573 = vpack.c.b16 %v441, %v440
  %v574 = vpack.c.b16 %v443, %v442
  %v575 = vpack.c.b16 %v445, %v444
  %v576 = vpack.c.b16 %v447, %v446
  %v577 = vpack.c.b16 %v449, %v448
  %v578 = vpack.c.b16 %v451, %v450
  %v579 = vpack.c.b16 %v453, %v452
  %v580 = vpack.c.b16 %v455, %v454
  %v581 = vpack.c.b16 %v457, %v456
  %v582 = vpack.c.b16 %v459, %v458
  %v583 = vpack.c.b16 %v461, %v460
  %v584 = vpack.c.b16 %v463, %v462
  %v585 = vpack.c.b16 %v465, %v464
  %v586 = vpack.c.b16 %v467, %v466
  %v587 = vpack.c.b16 %v469, %v468
  %v588 = vpack.c.b16 %v471, %v470
  %v589 = vpack.c.b16 %v473, %v472
  %v590 = vpack.c.b16 %v475, %v474
  %v591 = vpack.c.b16 %v477, %v476
  %v592 = vpack.c.b16 %v479, %v478
  %v593 = vpack.c.b16 %v481, %v480
  %v594 = vpack.c.b16 %v483, %v482
  %v595 = vpack.c.b16 %v485, %v484
  %v596 = vpack.c.b16 %v487, %v486
  %v597 = vpack.c.b16 %v489, %v488
  %v598 = vpack.c.b16 %v491, %v490
  %v599 = vpack.c.b16 %v493, %v492
  %v600 = vpack.c.b16 %v495, %v494
  %v601 = vpack.c.b16 %v497, %v496
  %v602 = vpack.c.b16 %v499, %v498
  %v603 = vpack.c.b16 %v501, %v500
  %v604 = vpack.c.b16 %v503, %v502
  %v605 = vpack.c.b16 %v505, %v504
  %v606 = vpack.c.b16 %v507, %v506
  %v607 = vpack.c.b16 %v509, %v508
  %v608 = vpack.c.b16 %v511, %v510
  %v609 = vpack.c.b16 %v513, %v512
  %v610 = vpack.c.b16 %v515, %v514
  %v611 = vpack.c.b16 %v517, %v516
  %v612 = vpack.c.b16 %v519, %v518
  %v613 = vpack.c.b16 %v521, %v520
  %v614 = vpack.c.b16 %v523, %v522
  %v615 = vpack.c.b16 %v525, %v524
  %v616 = vpack.c.b16 %v527, %v526
  %v617 = vpack.c.b16 %v529, %v528
  %v618 = vpack.c.b16 %v531, %v530
  %v619 = vpack.c.b16 %v533, %v532
  %v620 = vpack.c.b16 %v535, %v534
  %v621 = vpack.c.b16 %v537, %v536
  %v622 = vpack.c.b16 %v539, %v538
  %v623 = vpack.c.b16 %v541, %v540
  %v624 = vpack.c.b16 %v543, %v542
  %v625 = vpack.c.b16 %v545, %v544
  %v626 = vpack.c.b16 %v547, %v546
  %v627 = vpack.c.b16 %v549, %v548
  %v628 = vpack.c.b16 %v551, %v550
  %v629 = vpack.c.b16 %v553, %v552
  %v630 = vpack.c.b16 %v555, %v554
  %v631 = vpack.c.b16 %v557, %v556
  %v632 = vpack.c.b16 %v559, %v558
  %v633 = vpack.c.b16 %v561, %v560
  %706 = vmatpush.bf16.msra.mxu0 %v569
  %707 = vmatpush.bf16.msra.mxu0 %v568
  %708 = vmatpush.bf16.msra.mxu0 %v567
  %709 = vmatpush.bf16.msra.mxu0 %v566
  %710 = vmatpush.bf16.msra.mxu0 %v565
  %711 = vmatpush.bf16.msra.mxu0 %v564
  %712 = vmatpush.bf16.msra.mxu0 %v563
  %713 = vmatpush.bf16.msra.mxu0 %v562
  %714 = vmatmul.bf16.gmra.mxu0 %v238
  %v715 = vpop.f32.mrf.mxu0
  %v716 = vadd.f32 %v180, %v715
  %v717 = vpop.f32.mrf.mxu0
  %v718 = vadd.f32 %v180, %v717
  %719 = vmatmul.bf16.gmra.mxu0 %v247
  %v720 = vpop.f32.mrf.mxu0
  %v721 = vadd.f32 %v180, %v720
  %v722 = vpop.f32.mrf.mxu0
  %v723 = vadd.f32 %v180, %v722
  %724 = vdwg.mxu0
  %725 = vmatpush.bf16.msra.mxu0 %v577
  %726 = vmatpush.bf16.msra.mxu0 %v576
  %727 = vmatpush.bf16.msra.mxu0 %v575
  %728 = vmatpush.bf16.msra.mxu0 %v574
  %729 = vmatpush.bf16.msra.mxu0 %v573
  %730 = vmatpush.bf16.msra.mxu0 %v572
  %731 = vmatpush.bf16.msra.mxu0 %v571
  %732 = vmatpush.bf16.msra.mxu0 %v570
  %733 = vmatmul.bf16.gmra.mxu0 %v239
  %v734 = vpop.f32.mrf.mxu0
  %v735 = vadd.f32 %v716, %v734
  %v736 = vpop.f32.mrf.mxu0
  %v737 = vadd.f32 %v718, %v736
  %738 = vmatmul.bf16.gmra.mxu0 %v248
  %v739 = vpop.f32.mrf.mxu0
  %v740 = vadd.f32 %v721, %v739
  %v741 = vpop.f32.mrf.mxu0
  %v742 = vadd.f32 %v723, %v741
  %743 = vdwg.mxu0
  %744 = vmatpush.bf16.msra.mxu0 %v585
  %745 = vmatpush.bf16.msra.mxu0 %v584
  %746 = vmatpush.bf16.msra.mxu0 %v583
  %747 = vmatpush.bf16.msra.mxu0 %v582
  %748 = vmatpush.bf16.msra.mxu0 %v581
  %749 = vmatpush.bf16.msra.mxu0 %v580
  %750 = vmatpush.bf16.msra.mxu0 %v579
  %751 = vmatpush.bf16.msra.mxu0 %v578
  %752 = vmatmul.bf16.gmra.mxu0 %v240
  %v753 = vpop.f32.mrf.mxu0
  %v754 = vadd.f32 %v735, %v753
  %v755 = vpop.f32.mrf.mxu0
  %v756 = vadd.f32 %v737, %v755
  %757 = vmatmul.bf16.gmra.mxu0 %v249
  %v758 = vpop.f32.mrf.mxu0
  %v759 = vadd.f32 %v740, %v758
  %v760 = vpop.f32.mrf.mxu0
  %v761 = vadd.f32 %v742, %v760
  %762 = vdwg.mxu0
  %763 = vmatpush.bf16.msra.mxu0 %v593
  %764 = vmatpush.bf16.msra.mxu0 %v592
  %765 = vmatpush.bf16.msra.mxu0 %v591
  %766 = vmatpush.bf16.msra.mxu0 %v590
  %767 = vmatpush.bf16.msra.mxu0 %v589
  %768 = vmatpush.bf16.msra.mxu0 %v588
  %769 = vmatpush.bf16.msra.mxu0 %v587
  %770 = vmatpush.bf16.msra.mxu0 %v586
  %771 = vmatmul.bf16.gmra.mxu0 %v241
  %v772 = vpop.f32.mrf.mxu0
  %v773 = vadd.f32 %v754, %v772
  %v774 = vpop.f32.mrf.mxu0
  %v775 = vadd.f32 %v756, %v774
  %776 = vmatmul.bf16.gmra.mxu0 %v250
  %v777 = vpop.f32.mrf.mxu0
  %v778 = vadd.f32 %v759, %v777
  %v779 = vpop.f32.mrf.mxu0
  %v780 = vadd.f32 %v761, %v779
  %781 = vdwg.mxu0
  %782 = vmatpush.bf16.msra.mxu0 %v601
  %783 = vmatpush.bf16.msra.mxu0 %v600
  %784 = vmatpush.bf16.msra.mxu0 %v599
  %785 = vmatpush.bf16.msra.mxu0 %v598
  %786 = vmatpush.bf16.msra.mxu0 %v597
  %787 = vmatpush.bf16.msra.mxu0 %v596
  %788 = vmatpush.bf16.msra.mxu0 %v595
  %789 = vmatpush.bf16.msra.mxu0 %v594
  %790 = vmatmul.bf16.gmra.mxu0 %v242
  %v791 = vpop.f32.mrf.mxu0
  %v792 = vadd.f32 %v773, %v791
  %v793 = vpop.f32.mrf.mxu0
  %v794 = vadd.f32 %v775, %v793
  %795 = vmatmul.bf16.gmra.mxu0 %v251
  %v796 = vpop.f32.mrf.mxu0
  %v797 = vadd.f32 %v778, %v796
  %v798 = vpop.f32.mrf.mxu0
  %v799 = vadd.f32 %v780, %v798
  %800 = vdwg.mxu0
  %801 = vmatpush.bf16.msra.mxu0 %v609
  %802 = vmatpush.bf16.msra.mxu0 %v608
  %803 = vmatpush.bf16.msra.mxu0 %v607
  %804 = vmatpush.bf16.msra.mxu0 %v606
  %805 = vmatpush.bf16.msra.mxu0 %v605
  %806 = vmatpush.bf16.msra.mxu0 %v604
  %807 = vmatpush.bf16.msra.mxu0 %v603
  %808 = vmatpush.bf16.msra.mxu0 %v602
  %809 = vmatmul.bf16.gmra.mxu0 %v243
  %v810 = vpop.f32.mrf.mxu0
  %v811 = vadd.f32 %v792, %v810
  %v812 = vpop.f32.mrf.mxu0
  %v813 = vadd.f32 %v794, %v812
  %814 = vmatmul.bf16.gmra.mxu0 %v252
  %v815 = vpop.f32.mrf.mxu0
  %v816 = vadd.f32 %v797, %v815
  %v817 = vpop.f32.mrf.mxu0
  %v818 = vadd.f32 %v799, %v817
  %819 = vdwg.mxu0
  %820 = vmatpush.bf16.msra.mxu0 %v617
  %821 = vmatpush.bf16.msra.mxu0 %v616
  %822 = vmatpush.bf16.msra.mxu0 %v615
  %823 = vmatpush.bf16.msra.mxu0 %v614
  %824 = vmatpush.bf16.msra.mxu0 %v613
  %825 = vmatpush.bf16.msra.mxu0 %v612
  %826 = vmatpush.bf16.msra.mxu0 %v611
  %827 = vmatpush.bf16.msra.mxu0 %v610
  %828 = vmatmul.bf16.gmra.mxu0 %v244
  %v829 = vpop.f32.mrf.mxu0
  %v830 = vadd.f32 %v811, %v829
  %v831 = vpop.f32.mrf.mxu0
  %v832 = vadd.f32 %v813, %v831
  %833 = vmatmul.bf16.gmra.mxu0 %v253
  %v834 = vpop.f32.mrf.mxu0
  %v835 = vadd.f32 %v816, %v834
  %v836 = vpop.f32.mrf.mxu0
  %v837 = vadd.f32 %v818, %v836
  %838 = vdwg.mxu0
  %839 = vmatpush.bf16.msra.mxu0 %v625
  %840 = vmatpush.bf16.msra.mxu0 %v624
  %841 = vmatpush.bf16.msra.mxu0 %v623
  %842 = vmatpush.bf16.msra.mxu0 %v622
  %843 = vmatpush.bf16.msra.mxu0 %v621
  %844 = vmatpush.bf16.msra.mxu0 %v620
  %845 = vmatpush.bf16.msra.mxu0 %v619
  %846 = vmatpush.bf16.msra.mxu0 %v618
  %847 = vmatmul.bf16.gmra.mxu0 %v245
  %v848 = vpop.f32.mrf.mxu0
  %v849 = vadd.f32 %v830, %v848
  %v850 = vpop.f32.mrf.mxu0
  %v851 = vadd.f32 %v832, %v850
  %852 = vmatmul.bf16.gmra.mxu0 %v254
  %v853 = vpop.f32.mrf.mxu0
  %v854 = vadd.f32 %v835, %v853
  %v855 = vpop.f32.mrf.mxu0
  %v856 = vadd.f32 %v837, %v855
  %857 = vdwg.mxu0
  %858 = vmatpush.bf16.msra.mxu0 %v633
  %859 = vmatpush.bf16.msra.mxu0 %v632
  %860 = vmatpush.bf16.msra.mxu0 %v631
  %861 = vmatpush.bf16.msra.mxu0 %v630
  %862 = vmatpush.bf16.msra.mxu0 %v629
  %863 = vmatpush.bf16.msra.mxu0 %v628
  %864 = vmatpush.bf16.msra.mxu0 %v627
  %865 = vmatpush.bf16.msra.mxu0 %v626
  %866 = vmatmul.bf16.gmra.mxu0 %v246
  %v867 = vpop.f32.mrf.mxu0
  %v868 = vadd.f32 %v849, %v867
  %v869 = vpop.f32.mrf.mxu0
  %v870 = vadd.f32 %v851, %v869
  %871 = vmatmul.bf16.gmra.mxu0 %v255
  %v872 = vpop.f32.mrf.mxu0
  %v873 = vadd.f32 %v854, %v872
  %v874 = vpop.f32.mrf.mxu0
  %v875 = vadd.f32 %v856, %v874
  %876 = vdwg.mxu0
  %v877 = vmax.f32 %v868, 0.0
  %v878 = vmax.f32 %v870, 0.0
  %v879 = vmax.f32 %v873, 0.0
  %v880 = vmax.f32 %v875, 0.0
  %v881 = vpack.c.bf16 %v877, %v877
  %v882 = vpack.c.bf16 %v878, %v878
  %v883 = vpack.c.bf16 %v879, %v879
  %v884 = vpack.c.bf16 %v880, %v880
  %885 = vst [vmem:[%s3] sm:$0xf] %v881
  %886 = vst [vmem:[%s3 + $0x4] sm:$0xf] %v882
  %887 = vst [vmem:[%s3 + $0x8] sm:$0xf] %v883
  %888 = vst [vmem:[%s3 + $0xc] sm:$0xf] %v884
  // Predicated region
  $region14: #{rnet_forward.8} parent=0 // pred_check
    _
  $region15: #{rnet_forward.8} parent=0 // pred_check_branch
    %890 = sbr.rel (0) target = $region17
  $region16: #{rnet_forward.8} parent=0 // pred_region
    _
  $region17: #{rnet_forward.8} parent=0 // pred_fallthru
    _
  // Predicated region
  $region18: #{rnet_forward.8} parent=0 // pred_check
    _
  $region19: #{rnet_forward.8} parent=0 // pred_check_branch
    %892 = sbr.rel (0) target = $region21
  $region20: #{rnet_forward.8} parent=0 // pred_region
    _
  $region21: #{rnet_forward.8} parent=0 // pred_fallthru
    _

// kernel: rnet_forward.9
$region0: #{rnet_forward.9}
  #allocation0 [shape = 'u32[]', space=smem, size = 0x4, offset = 0x4, fixed_abs, tag = 'smem constant byte address 0x4 - core index']
  #allocation1 [shape = 'u32[72,128]{1,0:T(1,128)}', space=vmem, size = 0x9000, scoped, tag = 'internal scratch']
  %s0 = inlined_call_operand.vmem [shape: bf16[2,2048], index: 0, kind: input, shape index: {}]
  %s1 = inlined_call_operand.vmem [shape: bf16[2048,128], index: 1, kind: input, shape index: {}]
  %s2 = inlined_call_operand.vmem [shape: f32[1,128], index: 2, kind: input, shape index: {}]
  %s3 = inlined_call_operand.vmem [shape: bf16[128,128], index: 3, kind: input, shape index: {}]
  %s4 = inlined_call_operand.vmem [shape: f32[1,128], index: 4, kind: input, shape index: {}]
  %s5 = inlined_call_operand.vmem [shape: bf16[128,4], index: 5, kind: input, shape index: {}]
  %s6 = inlined_call_operand.vmem [shape: f32[1,4], index: 6, kind: input, shape index: {}]
  %s7 = inlined_call_operand.hbm [shape: f32[2,4], index: 7, kind: output, shape index: {}]
  %s8 = sld [smem:[#allocation0]]
  $region38: #{rnet_forward.9} parent=0
    _
  %s10 = ssub.s32 1, %s8
  %s11 = scalar_select 0, %s10, %s8
  $region1: #{rnet_forward.9} parent=0
    #allocation2 [shape = 'u8[1024]{0}', space=vmem, size = 0x400, scoped, tag = 'output window, operand 0, single buffered']
    #allocation3 [shape = 's32[1]{0}', space=sflag, size = 0x4, scoped, tag = 'scoped memory for rnet_forward.9']
    %12 = vsyncpa [#allocation3], 0
    // Predicated region
    $region2: #{rnet_forward.9} parent=1 // pred_check
      _
    $region3: #{rnet_forward.9} parent=1 // pred_check_branch
      %14 = sbr.rel (0) target = $region5
    $region4: #{rnet_forward.9} parent=1 // pred_region
      _
    $region5: #{rnet_forward.9} parent=1 // pred_fallthru
      _
    // Predicated region
    $region6: #{rnet_forward.9} parent=1 // pred_check
      _
    $region7: #{rnet_forward.9} parent=1 // pred_check_branch
      %16 = sbr.rel (0) target = $region9
    $region8: #{rnet_forward.9} parent=1 // pred_region
      _
    $region9: #{rnet_forward.9} parent=1 // pred_fallthru
      _
    // Predicated region
    $region10: #{rnet_forward.9} parent=1 // pred_check
      _
    $region11: #{rnet_forward.9} parent=1 // pred_check_branch
      %18 = sbr.rel (0) target = $region13
    $region12: #{rnet_forward.9} parent=1 // pred_region
      _
    $region13: #{rnet_forward.9} parent=1 // pred_fallthru
      _
    // Predicated region
    $region14: #{rnet_forward.9} parent=1 // pred_check
      _
    $region15: #{rnet_forward.9} parent=1 // pred_check_branch
      %20 = sbr.rel (0) target = $region17
    $region16: #{rnet_forward.9} parent=1 // pred_region
      _
    $region17: #{rnet_forward.9} parent=1 // pred_fallthru
      _
    // Predicated region
    $region18: #{rnet_forward.9} parent=1 // pred_check
      _
    $region19: #{rnet_forward.9} parent=1 // pred_check_branch
      %22 = sbr.rel (0) target = $region21
    $region20: #{rnet_forward.9} parent=1 // pred_region
      _
    $region21: #{rnet_forward.9} parent=1 // pred_fallthru
      _
    // Predicated region
    $region22: #{rnet_forward.9} parent=1 // pred_check
      _
    $region23: #{rnet_forward.9} parent=1 // pred_check_branch
      %24 = sbr.rel (0) target = $region25
    $region24: #{rnet_forward.9} parent=1 // pred_region
      _
    $region25: #{rnet_forward.9} parent=1 // pred_fallthru
      _
    // Predicated region
    $region26: #{rnet_forward.9} parent=1 // pred_check
      _
    $region27: #{rnet_forward.9} parent=1 // pred_check_branch
      %26 = sbr.rel (0) target = $region29
    $region28: #{rnet_forward.9} parent=1 // pred_region
      _
    $region29: #{rnet_forward.9} parent=1 // pred_fallthru
      _
    %v27 = vld [vmem:[%s0] sm:$0xff]
    %v28 = vld [vmem:[%s0 + $0x8] sm:$0xff]
    %v29 = vld [vmem:[%s1] sm:$0xf]
    %v30 = vld [vmem:[%s1 + $0x4] sm:$0xf]
    %v31 = vld [vmem:[%s1 + $0x8] sm:$0xf]
    %v32 = vld [vmem:[%s1 + $0xc] sm:$0xf]
    %v33 = vld [vmem:[%s1 + $0x10] sm:$0xf]
    %v34 = vld [vmem:[%s1 + $0x14] sm:$0xf]
    %v35 = vld [vmem:[%s1 + $0x18] sm:$0xf]
    %v36 = vld [vmem:[%s1 + $0x1c] sm:$0xf]
    %v37 = vld [vmem:[%s1 + $0x20] sm:$0xf]
    %v38 = vld [vmem:[%s1 + $0x24] sm:$0xf]
    %v39 = vld [vmem:[%s1 + $0x28] sm:$0xf]
    %v40 = vld [vmem:[%s1 + $0x2c] sm:$0xf]
    %v41 = vld [vmem:[%s1 + $0x30] sm:$0xf]
    %v42 = vld [vmem:[%s1 + $0x34] sm:$0xf]
    %v43 = vld [vmem:[%s1 + $0x38] sm:$0xf]
    %v44 = vld [vmem:[%s1 + $0x3c] sm:$0xf]
    %v45 = vld [vmem:[%s1 + $0x40] sm:$0xf]
    %v46 = vld [vmem:[%s1 + $0x44] sm:$0xf]
    %v47 = vld [vmem:[%s1 + $0x48] sm:$0xf]
    %v48 = vld [vmem:[%s1 + $0x4c] sm:$0xf]
    %v49 = vld [vmem:[%s1 + $0x50] sm:$0xf]
    %v50 = vld [vmem:[%s1 + $0x54] sm:$0xf]
    %v51 = vld [vmem:[%s1 + $0x58] sm:$0xf]
    %v52 = vld [vmem:[%s1 + $0x5c] sm:$0xf]
    %v53 = vld [vmem:[%s1 + $0x60] sm:$0xf]
    %v54 = vld [vmem:[%s1 + $0x64] sm:$0xf]
    %v55 = vld [vmem:[%s1 + $0x68] sm:$0xf]
    %v56 = vld [vmem:[%s1 + $0x6c] sm:$0xf]
    %v57 = vld [vmem:[%s1 + $0x70] sm:$0xf]
    %v58 = vld [vmem:[%s1 + $0x74] sm:$0xf]
    %v59 = vld [vmem:[%s1 + $0x78] sm:$0xf]
    %v60 = vld [vmem:[%s1 + $0x7c] sm:$0xf]
    %v61 = vld [vmem:[%s1 + $0x80] sm:$0xf]
    %v62 = vld [vmem:[%s1 + $0x84] sm:$0xf]
    %v63 = vld [vmem:[%s1 + $0x88] sm:$0xf]
    %v64 = vld [vmem:[%s1 + $0x8c] sm:$0xf]
    %v65 = vld [vmem:[%s1 + $0x90] sm:$0xf]
    %v66 = vld [vmem:[%s1 + $0x94] sm:$0xf]
    %v67 = vld [vmem:[%s1 + $0x98] sm:$0xf]
    %v68 = vld [vmem:[%s1 + $0x9c] sm:$0xf]
    %v69 = vld [vmem:[%s1 + $0xa0] sm:$0xf]
    %v70 = vld [vmem:[%s1 + $0xa4] sm:$0xf]
    %v71 = vld [vmem:[%s1 + $0xa8] sm:$0xf]
    %v72 = vld [vmem:[%s1 + $0xac] sm:$0xf]
    %v73 = vld [vmem:[%s1 + $0xb0] sm:$0xf]
    %v74 = vld [vmem:[%s1 + $0xb4] sm:$0xf]
    %v75 = vld [vmem:[%s1 + $0xb8] sm:$0xf]
    %v76 = vld [vmem:[%s1 + $0xbc] sm:$0xf]
    %v77 = vld [vmem:[%s1 + $0xc0] sm:$0xf]
    %v78 = vld [vmem:[%s1 + $0xc4] sm:$0xf]
    %v79 = vld [vmem:[%s1 + $0xc8] sm:$0xf]
    %v80 = vld [vmem:[%s1 + $0xcc] sm:$0xf]
    %v81 = vld [vmem:[%s1 + $0xd0] sm:$0xf]
    %v82 = vld [vmem:[%s1 + $0xd4] sm:$0xf]
    %v83 = vld [vmem:[%s1 + $0xd8] sm:$0xf]
    %v84 = vld [vmem:[%s1 + $0xdc] sm:$0xf]
    %v85 = vld [vmem:[%s1 + $0xe0] sm:$0xf]
    %v86 = vld [vmem:[%s1 + $0xe4] sm:$0xf]
    %v87 = vld [vmem:[%s1 + $0xe8] sm:$0xf]
    %v88 = vld [vmem:[%s1 + $0xec] sm:$0xf]
    %v89 = vld [vmem:[%s1 + $0xf0] sm:$0xf]
    %v90 = vld [vmem:[%s1 + $0xf4] sm:$0xf]
    %v91 = vld [vmem:[%s1 + $0xf8] sm:$0xf]
    %v92 = vld [vmem:[%s1 + $0xfc] sm:$0xf]
    %v93 = vld [vmem:[%s1 + $0x100] sm:$0xf]
    %v94 = vld [vmem:[%s1 + $0x104] sm:$0xf]
    %v95 = vld [vmem:[%s1 + $0x108] sm:$0xf]
    %v96 = vld [vmem:[%s1 + $0x10c] sm:$0xf]
    %v97 = vld [vmem:[%s1 + $0x110] sm:$0xf]
    %v98 = vld [vmem:[%s1 + $0x114] sm:$0xf]
    %v99 = vld [vmem:[%s1 + $0x118] sm:$0xf]
    %v100 = vld [vmem:[%s1 + $0x11c] sm:$0xf]
    %v101 = vld [vmem:[%s1 + $0x120] sm:$0xf]
    %v102 = vld [vmem:[%s1 + $0x124] sm:$0xf]
    %v103 = vld [vmem:[%s1 + $0x128] sm:$0xf]
    %v104 = vld [vmem:[%s1 + $0x12c] sm:$0xf]
    %v105 = vld [vmem:[%s1 + $0x130] sm:$0xf]
    %v106 = vld [vmem:[%s1 + $0x134] sm:$0xf]
    %v107 = vld [vmem:[%s1 + $0x138] sm:$0xf]
    %v108 = vld [vmem:[%s1 + $0x13c] sm:$0xf]
    %v109 = vld [vmem:[%s1 + $0x140] sm:$0xf]
    %v110 = vld [vmem:[%s1 + $0x144] sm:$0xf]
    %v111 = vld [vmem:[%s1 + $0x148] sm:$0xf]
    %v112 = vld [vmem:[%s1 + $0x14c] sm:$0xf]
    %v113 = vld [vmem:[%s1 + $0x150] sm:$0xf]
    %v114 = vld [vmem:[%s1 + $0x154] sm:$0xf]
    %v115 = vld [vmem:[%s1 + $0x158] sm:$0xf]
    %v116 = vld [vmem:[%s1 + $0x15c] sm:$0xf]
    %v117 = vld [vmem:[%s1 + $0x160] sm:$0xf]
    %v118 = vld [vmem:[%s1 + $0x164] sm:$0xf]
    %v119 = vld [vmem:[%s1 + $0x168] sm:$0xf]
    %v120 = vld [vmem:[%s1 + $0x16c] sm:$0xf]
    %v121 = vld [vmem:[%s1 + $0x170] sm:$0xf]
    %v122 = vld [vmem:[%s1 + $0x174] sm:$0xf]
    %v123 = vld [vmem:[%s1 + $0x178] sm:$0xf]
    %v124 = vld [vmem:[%s1 + $0x17c] sm:$0xf]
    %v125 = vld [vmem:[%s1 + $0x180] sm:$0xf]
    %v126 = vld [vmem:[%s1 + $0x184] sm:$0xf]
    %v127 = vld [vmem:[%s1 + $0x188] sm:$0xf]
    %v128 = vld [vmem:[%s1 + $0x18c] sm:$0xf]
    %v129 = vld [vmem:[%s1 + $0x190] sm:$0xf]
    %v130 = vld [vmem:[%s1 + $0x194] sm:$0xf]
    %v131 = vld [vmem:[%s1 + $0x198] sm:$0xf]
    %v132 = vld [vmem:[%s1 + $0x19c] sm:$0xf]
    %v133 = vld [vmem:[%s1 + $0x1a0] sm:$0xf]
    %v134 = vld [vmem:[%s1 + $0x1a4] sm:$0xf]
    %v135 = vld [vmem:[%s1 + $0x1a8] sm:$0xf]
    %v136 = vld [vmem:[%s1 + $0x1ac] sm:$0xf]
    %v137 = vld [vmem:[%s1 + $0x1b0] sm:$0xf]
    %v138 = vld [vmem:[%s1 + $0x1b4] sm:$0xf]
    %v139 = vld [vmem:[%s1 + $0x1b8] sm:$0xf]
    %v140 = vld [vmem:[%s1 + $0x1bc] sm:$0xf]
    %v141 = vld [vmem:[%s1 + $0x1c0] sm:$0xf]
    %v142 = vld [vmem:[%s1 + $0x1c4] sm:$0xf]
    %v143 = vld [vmem:[%s1 + $0x1c8] sm:$0xf]
    %v144 = vld [vmem:[%s1 + $0x1cc] sm:$0xf]
    %v145 = vld [vmem:[%s1 + $0x1d0] sm:$0xf]
    %v146 = vld [vmem:[%s1 + $0x1d4] sm:$0xf]
    %v147 = vld [vmem:[%s1 + $0x1d8] sm:$0xf]
    %v148 = vld [vmem:[%s1 + $0x1dc] sm:$0xf]
    %v149 = vld [vmem:[%s1 + $0x1e0] sm:$0xf]
    %v150 = vld [vmem:[%s1 + $0x1e4] sm:$0xf]
    %v151 = vld [vmem:[%s1 + $0x1e8] sm:$0xf]
    %v152 = vld [vmem:[%s1 + $0x1ec] sm:$0xf]
    %v153 = vld [vmem:[%s1 + $0x1f0] sm:$0xf]
    %v154 = vld [vmem:[%s1 + $0x1f4] sm:$0xf]
    %v155 = vld [vmem:[%s1 + $0x1f8] sm:$0xf]
    %v156 = vld [vmem:[%s1 + $0x1fc] sm:$0xf]
    %v157 = vld [vmem:[%s1 + $0x200] sm:$0xf]
    %v158 = vld [vmem:[%s1 + $0x204] sm:$0xf]
    %v159 = vld [vmem:[%s1 + $0x208] sm:$0xf]
    %v160 = vld [vmem:[%s1 + $0x20c] sm:$0xf]
    %v161 = vld [vmem:[%s1 + $0x210] sm:$0xf]
    %v162 = vld [vmem:[%s1 + $0x214] sm:$0xf]
    %v163 = vld [vmem:[%s1 + $0x218] sm:$0xf]
    %v164 = vld [vmem:[%s1 + $0x21c] sm:$0xf]
    %v165 = vld [vmem:[%s1 + $0x220] sm:$0xf]
    %v166 = vld [vmem:[%s1 + $0x224] sm:$0xf]
    %v167 = vld [vmem:[%s1 + $0x228] sm:$0xf]
    %v168 = vld [vmem:[%s1 + $0x22c] sm:$0xf]
    %v169 = vld [vmem:[%s1 + $0x230] sm:$0xf]
    %v170 = vld [vmem:[%s1 + $0x234] sm:$0xf]
    %v171 = vld [vmem:[%s1 + $0x238] sm:$0xf]
    %v172 = vld [vmem:[%s1 + $0x23c] sm:$0xf]
    %v173 = vld [vmem:[%s1 + $0x240] sm:$0xf]
    %v174 = vld [vmem:[%s1 + $0x244] sm:$0xf]
    %v175 = vld [vmem:[%s1 + $0x248] sm:$0xf]
    %v176 = vld [vmem:[%s1 + $0x24c] sm:$0xf]
    %v177 = vld [vmem:[%s1 + $0x250] sm:$0xf]
    %v178 = vld [vmem:[%s1 + $0x254] sm:$0xf]
    %v179 = vld [vmem:[%s1 + $0x258] sm:$0xf]
    %v180 = vld [vmem:[%s1 + $0x25c] sm:$0xf]
    %v181 = vld [vmem:[%s1 + $0x260] sm:$0xf]
    %v182 = vld [vmem:[%s1 + $0x264] sm:$0xf]
    %v183 = vld [vmem:[%s1 + $0x268] sm:$0xf]
    %v184 = vld [vmem:[%s1 + $0x26c] sm:$0xf]
    %v185 = vld [vmem:[%s1 + $0x270] sm:$0xf]
    %v186 = vld [vmem:[%s1 + $0x274] sm:$0xf]
    %v187 = vld [vmem:[%s1 + $0x278] sm:$0xf]
    %v188 = vld [vmem:[%s1 + $0x27c] sm:$0xf]
    %v189 = vld [vmem:[%s1 + $0x280] sm:$0xf]
    %v190 = vld [vmem:[%s1 + $0x284] sm:$0xf]
    %v191 = vld [vmem:[%s1 + $0x288] sm:$0xf]
    %v192 = vld [vmem:[%s1 + $0x28c] sm:$0xf]
    %v193 = vld [vmem:[%s1 + $0x290] sm:$0xf]
    %v194 = vld [vmem:[%s1 + $0x294] sm:$0xf]
    %v195 = vld [vmem:[%s1 + $0x298] sm:$0xf]
    %v196 = vld [vmem:[%s1 + $0x29c] sm:$0xf]
    %v197 = vld [vmem:[%s1 + $0x2a0] sm:$0xf]
    %v198 = vld [vmem:[%s1 + $0x2a4] sm:$0xf]
    %v199 = vld [vmem:[%s1 + $0x2a8] sm:$0xf]
    %v200 = vld [vmem:[%s1 + $0x2ac] sm:$0xf]
    %v201 = vld [vmem:[%s1 + $0x2b0] sm:$0xf]
    %v202 = vld [vmem:[%s1 + $0x2b4] sm:$0xf]
    %v203 = vld [vmem:[%s1 + $0x2b8] sm:$0xf]
    %v204 = vld [vmem:[%s1 + $0x2bc] sm:$0xf]
    %v205 = vld [vmem:[%s1 + $0x2c0] sm:$0xf]
    %v206 = vld [vmem:[%s1 + $0x2c4] sm:$0xf]
    %v207 = vld [vmem:[%s1 + $0x2c8] sm:$0xf]
    %v208 = vld [vmem:[%s1 + $0x2cc] sm:$0xf]
    %v209 = vld [vmem:[%s1 + $0x2d0] sm:$0xf]
    %v210 = vld [vmem:[%s1 + $0x2d4] sm:$0xf]
    %v211 = vld [vmem:[%s1 + $0x2d8] sm:$0xf]
    %v212 = vld [vmem:[%s1 + $0x2dc] sm:$0xf]
    %v213 = vld [vmem:[%s1 + $0x2e0] sm:$0xf]
    %v214 = vld [vmem:[%s1 + $0x2e4] sm:$0xf]
    %v215 = vld [vmem:[%s1 + $0x2e8] sm:$0xf]
    %v216 = vld [vmem:[%s1 + $0x2ec] sm:$0xf]
    %v217 = vld [vmem:[%s1 + $0x2f0] sm:$0xf]
    %v218 = vld [vmem:[%s1 + $0x2f4] sm:$0xf]
    %v219 = vld [vmem:[%s1 + $0x2f8] sm:$0xf]
    %v220 = vld [vmem:[%s1 + $0x2fc] sm:$0xf]
    %v221 = vld [vmem:[%s1 + $0x300] sm:$0xf]
    %v222 = vld [vmem:[%s1 + $0x304] sm:$0xf]
    %v223 = vld [vmem:[%s1 + $0x308] sm:$0xf]
    %v224 = vld [vmem:[%s1 + $0x30c] sm:$0xf]
    %v225 = vld [vmem:[%s1 + $0x310] sm:$0xf]
    %v226 = vld [vmem:[%s1 + $0x314] sm:$0xf]
    %v227 = vld [vmem:[%s1 + $0x318] sm:$0xf]
    %v228 = vld [vmem:[%s1 + $0x31c] sm:$0xf]
    %v229 = vld [vmem:[%s1 + $0x320] sm:$0xf]
    %v230 = vld [vmem:[%s1 + $0x324] sm:$0xf]
    %v231 = vld [vmem:[%s1 + $0x328] sm:$0xf]
    %v232 = vld [vmem:[%s1 + $0x32c] sm:$0xf]
    %v233 = vld [vmem:[%s1 + $0x330] sm:$0xf]
    %v234 = vld [vmem:[%s1 + $0x334] sm:$0xf]
    %v235 = vld [vmem:[%s1 + $0x338] sm:$0xf]
    %v236 = vld [vmem:[%s1 + $0x33c] sm:$0xf]
    %v237 = vld [vmem:[%s1 + $0x340] sm:$0xf]
    %v238 = vld [vmem:[%s1 + $0x344] sm:$0xf]
    %v239 = vld [vmem:[%s1 + $0x348] sm:$0xf]
    %v240 = vld [vmem:[%s1 + $0x34c] sm:$0xf]
    %v241 = vld [vmem:[%s1 + $0x350] sm:$0xf]
    %v242 = vld [vmem:[%s1 + $0x354] sm:$0xf]
    %v243 = vld [vmem:[%s1 + $0x358] sm:$0xf]
    %v244 = vld [vmem:[%s1 + $0x35c] sm:$0xf]
    %v245 = vld [vmem:[%s1 + $0x360] sm:$0xf]
    %v246 = vld [vmem:[%s1 + $0x364] sm:$0xf]
    %v247 = vld [vmem:[%s1 + $0x368] sm:$0xf]
    %v248 = vld [vmem:[%s1 + $0x36c] sm:$0xf]
    %v249 = vld [vmem:[%s1 + $0x370] sm:$0xf]
    %v250 = vld [vmem:[%s1 + $0x374] sm:$0xf]
    %v251 = vld [vmem:[%s1 + $0x378] sm:$0xf]
    %v252 = vld [vmem:[%s1 + $0x37c] sm:$0xf]
    %v253 = vld [vmem:[%s1 + $0x380] sm:$0xf]
    %v254 = vld [vmem:[%s1 + $0x384] sm:$0xf]
    %v255 = vld [vmem:[%s1 + $0x388] sm:$0xf]
    %v256 = vld [vmem:[%s1 + $0x38c] sm:$0xf]
    %v257 = vld [vmem:[%s1 + $0x390] sm:$0xf]
    %v258 = vld [vmem:[%s1 + $0x394] sm:$0xf]
    %v259 = vld [vmem:[%s1 + $0x398] sm:$0xf]
    %v260 = vld [vmem:[%s1 + $0x39c] sm:$0xf]
    %v261 = vld [vmem:[%s1 + $0x3a0] sm:$0xf]
    %v262 = vld [vmem:[%s1 + $0x3a4] sm:$0xf]
    %v263 = vld [vmem:[%s1 + $0x3a8] sm:$0xf]
    %v264 = vld [vmem:[%s1 + $0x3ac] sm:$0xf]
    %v265 = vld [vmem:[%s1 + $0x3b0] sm:$0xf]
    %v266 = vld [vmem:[%s1 + $0x3b4] sm:$0xf]
    %v267 = vld [vmem:[%s1 + $0x3b8] sm:$0xf]
    %v268 = vld [vmem:[%s1 + $0x3bc] sm:$0xf]
    %v269 = vld [vmem:[%s1 + $0x3c0] sm:$0xf]
    %v270 = vld [vmem:[%s1 + $0x3c4] sm:$0xf]
    %v271 = vld [vmem:[%s1 + $0x3c8] sm:$0xf]
    %v272 = vld [vmem:[%s1 + $0x3cc] sm:$0xf]
    %v273 = vld [vmem:[%s1 + $0x3d0] sm:$0xf]
    %v274 = vld [vmem:[%s1 + $0x3d4] sm:$0xf]
    %v275 = vld [vmem:[%s1 + $0x3d8] sm:$0xf]
    %v276 = vld [vmem:[%s1 + $0x3dc] sm:$0xf]
    %v277 = vld [vmem:[%s1 + $0x3e0] sm:$0xf]
    %v278 = vld [vmem:[%s1 + $0x3e4] sm:$0xf]
    %v279 = vld [vmem:[%s1 + $0x3e8] sm:$0xf]
    %v280 = vld [vmem:[%s1 + $0x3ec] sm:$0xf]
    %v281 = vld [vmem:[%s1 + $0x3f0] sm:$0xf]
    %v282 = vld [vmem:[%s1 + $0x3f4] sm:$0xf]
    %v283 = vld [vmem:[%s1 + $0x3f8] sm:$0xf]
    %v284 = vld [vmem:[%s1 + $0x3fc] sm:$0xf]
    %v285 = vld [vmem:[%s2] sm:$0x1]
    %v287 = vperm.slane %v285, 0
    %290 = vst [vmem:[#allocation1] ss:$9 sm:$0xff] %v27
    %v291 = vld [vmem:[#allocation1] sm:$0xff]
    %v292 = vld [vmem:[#allocation1 + $0x9] sm:$0xff]
    %v293 = vld [vmem:[#allocation1 + $0x12] sm:$0xff]
    %v294 = vld [vmem:[#allocation1 + $0x1b] sm:$0xff]
    %v295 = vld [vmem:[#allocation1 + $0x24] sm:$0xff]
    %v296 = vld [vmem:[#allocation1 + $0x2d] sm:$0xff]
    %v297 = vld [vmem:[#allocation1 + $0x36] sm:$0xff]
    %v298 = vld [vmem:[#allocation1 + $0x3f] sm:$0xff]
    %300 = vst [vmem:[#allocation1] ss:$9 sm:$0xff] %v28
    %v301 = vld [vmem:[#allocation1] sm:$0xff]
    %v302 = vld [vmem:[#allocation1 + $0x9] sm:$0xff]
    %v303 = vld [vmem:[#allocation1 + $0x12] sm:$0xff]
    %v304 = vld [vmem:[#allocation1 + $0x1b] sm:$0xff]
    %v305 = vld [vmem:[#allocation1 + $0x24] sm:$0xff]
    %v306 = vld [vmem:[#allocation1 + $0x2d] sm:$0xff]
    %v307 = vld [vmem:[#allocation1 + $0x36] sm:$0xff]
    %v308 = vld [vmem:[#allocation1 + $0x3f] sm:$0xff]
    %v581 = vunpack.c.l.b16 %v29
    %v582 = vunpack.c.l.b16 %v30
    %v583 = vunpack.c.l.b16 %v31
    %v584 = vunpack.c.l.b16 %v32
    %v585 = vunpack.c.l.b16 %v33
    %v586 = vunpack.c.l.b16 %v34
    %v587 = vunpack.c.l.b16 %v35
    %v588 = vunpack.c.l.b16 %v36
    %v589 = vunpack.c.l.b16 %v37
    %v590 = vunpack.c.l.b16 %v38
    %v591 = vunpack.c.l.b16 %v39
    %v592 = vunpack.c.l.b16 %v40
    %v593 = vunpack.c.l.b16 %v41
    %v594 = vunpack.c.l.b16 %v42
    %v595 = vunpack.c.l.b16 %v43
    %v596 = vunpack.c.l.b16 %v44
    %v597 = vunpack.c.l.b16 %v45
    %v598 = vunpack.c.l.b16 %v46
    %v599 = vunpack.c.l.b16 %v47
    %v600 = vunpack.c.l.b16 %v48
    %v601 = vunpack.c.l.b16 %v49
    %v602 = vunpack.c.l.b16 %v50
    %v603 = vunpack.c.l.b16 %v51
    %v604 = vunpack.c.l.b16 %v52
    %v605 = vunpack.c.l.b16 %v53
    %v606 = vunpack.c.l.b16 %v54
    %v607 = vunpack.c.l.b16 %v55
    %v608 = vunpack.c.l.b16 %v56
    %v609 = vunpack.c.l.b16 %v57
    %v610 = vunpack.c.l.b16 %v58
    %v611 = vunpack.c.l.b16 %v59
    %v612 = vunpack.c.l.b16 %v60
    %v613 = vunpack.c.l.b16 %v61
    %v614 = vunpack.c.l.b16 %v62
    %v615 = vunpack.c.l.b16 %v63
    %v616 = vunpack.c.l.b16 %v64
    %v617 = vunpack.c.l.b16 %v65
    %v618 = vunpack.c.l.b16 %v66
    %v619 = vunpack.c.l.b16 %v67
    %v620 = vunpack.c.l.b16 %v68
    %v621 = vunpack.c.l.b16 %v69
    %v622 = vunpack.c.l.b16 %v70
    %v623 = vunpack.c.l.b16 %v71
    %v624 = vunpack.c.l.b16 %v72
    %v625 = vunpack.c.l.b16 %v73
    %v626 = vunpack.c.l.b16 %v74
    %v627 = vunpack.c.l.b16 %v75
    %v628 = vunpack.c.l.b16 %v76
    %v629 = vunpack.c.l.b16 %v77
    %v630 = vunpack.c.l.b16 %v78
    %v631 = vunpack.c.l.b16 %v79
    %v632 = vunpack.c.l.b16 %v80
    %v633 = vunpack.c.l.b16 %v81
    %v634 = vunpack.c.l.b16 %v82
    %v635 = vunpack.c.l.b16 %v83
    %v636 = vunpack.c.l.b16 %v84
    %v637 = vunpack.c.l.b16 %v85
    %v638 = vunpack.c.l.b16 %v86
    %v639 = vunpack.c.l.b16 %v87
    %v640 = vunpack.c.l.b16 %v88
    %v641 = vunpack.c.l.b16 %v89
    %v642 = vunpack.c.l.b16 %v90
    %v643 = vunpack.c.l.b16 %v91
    %v644 = vunpack.c.l.b16 %v92
    %v645 = vunpack.c.l.b16 %v93
    %v646 = vunpack.c.l.b16 %v94
    %v647 = vunpack.c.l.b16 %v95
    %v648 = vunpack.c.l.b16 %v96
    %v649 = vunpack.c.l.b16 %v97
    %v650 = vunpack.c.l.b16 %v98
    %v651 = vunpack.c.l.b16 %v99
    %v652 = vunpack.c.l.b16 %v100
    %v653 = vunpack.c.l.b16 %v101
    %v654 = vunpack.c.l.b16 %v102
    %v655 = vunpack.c.l.b16 %v103
    %v656 = vunpack.c.l.b16 %v104
    %v657 = vunpack.c.l.b16 %v105
    %v658 = vunpack.c.l.b16 %v106
    %v659 = vunpack.c.l.b16 %v107
    %v660 = vunpack.c.l.b16 %v108
    %v661 = vunpack.c.l.b16 %v109
    %v662 = vunpack.c.l.b16 %v110
    %v663 = vunpack.c.l.b16 %v111
    %v664 = vunpack.c.l.b16 %v112
    %v665 = vunpack.c.l.b16 %v113
    %v666 = vunpack.c.l.b16 %v114
    %v667 = vunpack.c.l.b16 %v115
    %v668 = vunpack.c.l.b16 %v116
    %v669 = vunpack.c.l.b16 %v117
    %v670 = vunpack.c.l.b16 %v118
    %v671 = vunpack.c.l.b16 %v119
    %v672 = vunpack.c.l.b16 %v120
    %v673 = vunpack.c.l.b16 %v121
    %v674 = vunpack.c.l.b16 %v122
    %v675 = vunpack.c.l.b16 %v123
    %v676 = vunpack.c.l.b16 %v124
    %v677 = vunpack.c.l.b16 %v125
    %v678 = vunpack.c.l.b16 %v126
    %v679 = vunpack.c.l.b16 %v127
    %v680 = vunpack.c.l.b16 %v128
    %v681 = vunpack.c.l.b16 %v129
    %v682 = vunpack.c.l.b16 %v130
    %v683 = vunpack.c.l.b16 %v131
    %v684 = vunpack.c.l.b16 %v132
    %v685 = vunpack.c.l.b16 %v133
    %v686 = vunpack.c.l.b16 %v134
    %v687 = vunpack.c.l.b16 %v135
    %v688 = vunpack.c.l.b16 %v136
    %v689 = vunpack.c.l.b16 %v137
    %v690 = vunpack.c.l.b16 %v138
    %v691 = vunpack.c.l.b16 %v139
    %v692 = vunpack.c.l.b16 %v140
    %v693 = vunpack.c.l.b16 %v141
    %v694 = vunpack.c.l.b16 %v142
    %v695 = vunpack.c.l.b16 %v143
    %v696 = vunpack.c.l.b16 %v144
    %v697 = vunpack.c.l.b16 %v145
    %v698 = vunpack.c.l.b16 %v146
    %v699 = vunpack.c.l.b16 %v147
    %v700 = vunpack.c.l.b16 %v148
    %v701 = vunpack.c.l.b16 %v149
    %v702 = vunpack.c.l.b16 %v150
    %v703 = vunpack.c.l.b16 %v151
    %v704 = vunpack.c.l.b16 %v152
    %v705 = vunpack.c.l.b16 %v153
    %v706 = vunpack.c.l.b16 %v154
    %v707 = vunpack.c.l.b16 %v155
    %v708 = vunpack.c.l.b16 %v156
    %v709 = vunpack.c.l.b16 %v157
    %v710 = vunpack.c.l.b16 %v158
    %v711 = vunpack.c.l.b16 %v159
    %v712 = vunpack.c.l.b16 %v160
    %v713 = vunpack.c.l.b16 %v161
    %v714 = vunpack.c.l.b16 %v162
    %v715 = vunpack.c.l.b16 %v163
    %v716 = vunpack.c.l.b16 %v164
    %v717 = vunpack.c.l.b16 %v165
    %v718 = vunpack.c.l.b16 %v166
    %v719 = vunpack.c.l.b16 %v167
    %v720 = vunpack.c.l.b16 %v168
    %v721 = vunpack.c.l.b16 %v169
    %v722 = vunpack.c.l.b16 %v170
    %v723 = vunpack.c.l.b16 %v171
    %v724 = vunpack.c.l.b16 %v172
    %v725 = vunpack.c.l.b16 %v173
    %v726 = vunpack.c.l.b16 %v174
    %v727 = vunpack.c.l.b16 %v175
    %v728 = vunpack.c.l.b16 %v176
    %v729 = vunpack.c.l.b16 %v177
    %v730 = vunpack.c.l.b16 %v178
    %v731 = vunpack.c.l.b16 %v179
    %v732 = vunpack.c.l.b16 %v180
    %v733 = vunpack.c.l.b16 %v181
    %v734 = vunpack.c.l.b16 %v182
    %v735 = vunpack.c.l.b16 %v183
    %v736 = vunpack.c.l.b16 %v184
    %v737 = vunpack.c.l.b16 %v185
    %v738 = vunpack.c.l.b16 %v186
    %v739 = vunpack.c.l.b16 %v187
    %v740 = vunpack.c.l.b16 %v188
    %v741 = vunpack.c.l.b16 %v189
    %v742 = vunpack.c.l.b16 %v190
    %v743 = vunpack.c.l.b16 %v191
    %v744 = vunpack.c.l.b16 %v192
    %v745 = vunpack.c.l.b16 %v193
    %v746 = vunpack.c.l.b16 %v194
    %v747 = vunpack.c.l.b16 %v195
    %v748 = vunpack.c.l.b16 %v196
    %v749 = vunpack.c.l.b16 %v197
    %v750 = vunpack.c.l.b16 %v198
    %v751 = vunpack.c.l.b16 %v199
    %v752 = vunpack.c.l.b16 %v200
    %v753 = vunpack.c.l.b16 %v201
    %v754 = vunpack.c.l.b16 %v202
    %v755 = vunpack.c.l.b16 %v203
    %v756 = vunpack.c.l.b16 %v204
    %v757 = vunpack.c.l.b16 %v205
    %v758 = vunpack.c.l.b16 %v206
    %v759 = vunpack.c.l.b16 %v207
    %v760 = vunpack.c.l.b16 %v208
    %v761 = vunpack.c.l.b16 %v209
    %v762 = vunpack.c.l.b16 %v210
    %v763 = vunpack.c.l.b16 %v211
    %v764 = vunpack.c.l.b16 %v212
    %v765 = vunpack.c.l.b16 %v213
    %v766 = vunpack.c.l.b16 %v214
    %v767 = vunpack.c.l.b16 %v215
    %v768 = vunpack.c.l.b16 %v216
    %v769 = vunpack.c.l.b16 %v217
    %v770 = vunpack.c.l.b16 %v218
    %v771 = vunpack.c.l.b16 %v219
    %v772 = vunpack.c.l.b16 %v220
    %v773 = vunpack.c.l.b16 %v221
    %v774 = vunpack.c.l.b16 %v222
    %v775 = vunpack.c.l.b16 %v223
    %v776 = vunpack.c.l.b16 %v224
    %v777 = vunpack.c.l.b16 %v225
    %v778 = vunpack.c.l.b16 %v226
    %v779 = vunpack.c.l.b16 %v227
    %v780 = vunpack.c.l.b16 %v228
    %v781 = vunpack.c.l.b16 %v229
    %v782 = vunpack.c.l.b16 %v230
    %v783 = vunpack.c.l.b16 %v231
    %v784 = vunpack.c.l.b16 %v232
    %v785 = vunpack.c.l.b16 %v233
    %v786 = vunpack.c.l.b16 %v234
    %v787 = vunpack.c.l.b16 %v235
    %v788 = vunpack.c.l.b16 %v236
    %v789 = vunpack.c.l.b16 %v237
    %v790 = vunpack.c.l.b16 %v238
    %v791 = vunpack.c.l.b16 %v239
    %v792 = vunpack.c.l.b16 %v240
    %v793 = vunpack.c.l.b16 %v241
    %v794 = vunpack.c.l.b16 %v242
    %v795 = vunpack.c.l.b16 %v243
    %v796 = vunpack.c.l.b16 %v244
    %v797 = vunpack.c.l.b16 %v245
    %v798 = vunpack.c.l.b16 %v246
    %v799 = vunpack.c.l.b16 %v247
    %v800 = vunpack.c.l.b16 %v248
    %v801 = vunpack.c.l.b16 %v249
    %v802 = vunpack.c.l.b16 %v250
    %v803 = vunpack.c.l.b16 %v251
    %v804 = vunpack.c.l.b16 %v252
    %v805 = vunpack.c.l.b16 %v253
    %v806 = vunpack.c.l.b16 %v254
    %v807 = vunpack.c.l.b16 %v255
    %v808 = vunpack.c.l.b16 %v256
    %v809 = vunpack.c.l.b16 %v257
    %v810 = vunpack.c.l.b16 %v258
    %v811 = vunpack.c.l.b16 %v259
    %v812 = vunpack.c.l.b16 %v260
    %v813 = vunpack.c.l.b16 %v261
    %v814 = vunpack.c.l.b16 %v262
    %v815 = vunpack.c.l.b16 %v263
    %v816 = vunpack.c.l.b16 %v264
    %v817 = vunpack.c.l.b16 %v265
    %v818 = vunpack.c.l.b16 %v266
    %v819 = vunpack.c.l.b16 %v267
    %v820 = vunpack.c.l.b16 %v268
    %v821 = vunpack.c.l.b16 %v269
    %v822 = vunpack.c.l.b16 %v270
    %v823 = vunpack.c.l.b16 %v271
    %v824 = vunpack.c.l.b16 %v272
    %v825 = vunpack.c.l.b16 %v273
    %v826 = vunpack.c.l.b16 %v274
    %v827 = vunpack.c.l.b16 %v275
    %v828 = vunpack.c.l.b16 %v276
    %v829 = vunpack.c.l.b16 %v277
    %v830 = vunpack.c.l.b16 %v278
    %v831 = vunpack.c.l.b16 %v279
    %v832 = vunpack.c.l.b16 %v280
    %v833 = vunpack.c.l.b16 %v281
    %v834 = vunpack.c.l.b16 %v282
    %v835 = vunpack.c.l.b16 %v283
    %v836 = vunpack.c.l.b16 %v284
    %v837 = vpack.c.b16 %v582, %v581
    %v838 = vpack.c.b16 %v584, %v583
    %v839 = vpack.c.b16 %v586, %v585
    %v840 = vpack.c.b16 %v588, %v587
    %v841 = vpack.c.b16 %v590, %v589
    %v842 = vpack.c.b16 %v592, %v591
    %v843 = vpack.c.b16 %v594, %v593
    %v844 = vpack.c.b16 %v596, %v595
    %v845 = vpack.c.b16 %v598, %v597
    %v846 = vpack.c.b16 %v600, %v599
    %v847 = vpack.c.b16 %v602, %v601
    %v848 = vpack.c.b16 %v604, %v603
    %v849 = vpack.c.b16 %v606, %v605
    %v850 = vpack.c.b16 %v608, %v607
    %v851 = vpack.c.b16 %v610, %v609
    %v852 = vpack.c.b16 %v612, %v611
    %v853 = vpack.c.b16 %v614, %v613
    %v854 = vpack.c.b16 %v616, %v615
    %v855 = vpack.c.b16 %v618, %v617
    %v856 = vpack.c.b16 %v620, %v619
    %v857 = vpack.c.b16 %v622, %v621
    %v858 = vpack.c.b16 %v624, %v623
    %v859 = vpack.c.b16 %v626, %v625
    %v860 = vpack.c.b16 %v628, %v627
    %v861 = vpack.c.b16 %v630, %v629
    %v862 = vpack.c.b16 %v632, %v631
    %v863 = vpack.c.b16 %v634, %v633
    %v864 = vpack.c.b16 %v636, %v635
    %v865 = vpack.c.b16 %v638, %v637
    %v866 = vpack.c.b16 %v640, %v639
    %v867 = vpack.c.b16 %v642, %v641
    %v868 = vpack.c.b16 %v644, %v643
    %v869 = vpack.c.b16 %v646, %v645
    %v870 = vpack.c.b16 %v648, %v647
    %v871 = vpack.c.b16 %v650, %v649
    %v872 = vpack.c.b16 %v652, %v651
    %v873 = vpack.c.b16 %v654, %v653
    %v874 = vpack.c.b16 %v656, %v655
    %v875 = vpack.c.b16 %v658, %v657
    %v876 = vpack.c.b16 %v660, %v659
    %v877 = vpack.c.b16 %v662, %v661
    %v878 = vpack.c.b16 %v664, %v663
    %v879 = vpack.c.b16 %v666, %v665
    %v880 = vpack.c.b16 %v668, %v667
    %v881 = vpack.c.b16 %v670, %v669
    %v882 = vpack.c.b16 %v672, %v671
    %v883 = vpack.c.b16 %v674, %v673
    %v884 = vpack.c.b16 %v676, %v675
    %v885 = vpack.c.b16 %v678, %v677
    %v886 = vpack.c.b16 %v680, %v679
    %v887 = vpack.c.b16 %v682, %v681
    %v888 = vpack.c.b16 %v684, %v683
    %v889 = vpack.c.b16 %v686, %v685
    %v890 = vpack.c.b16 %v688, %v687
    %v891 = vpack.c.b16 %v690, %v689
    %v892 = vpack.c.b16 %v692, %v691
    %v893 = vpack.c.b16 %v694, %v693
    %v894 = vpack.c.b16 %v696, %v695
    %v895 = vpack.c.b16 %v698, %v697
    %v896 = vpack.c.b16 %v700, %v699
    %v897 = vpack.c.b16 %v702, %v701
    %v898 = vpack.c.b16 %v704, %v703
    %v899 = vpack.c.b16 %v706, %v705
    %v900 = vpack.c.b16 %v708, %v707
    %v901 = vpack.c.b16 %v710, %v709
    %v902 = vpack.c.b16 %v712, %v711
    %v903 = vpack.c.b16 %v714, %v713
    %v904 = vpack.c.b16 %v716, %v715
    %v905 = vpack.c.b16 %v718, %v717
    %v906 = vpack.c.b16 %v720, %v719
    %v907 = vpack.c.b16 %v722, %v721
    %v908 = vpack.c.b16 %v724, %v723
    %v909 = vpack.c.b16 %v726, %v725
    %v910 = vpack.c.b16 %v728, %v727
    %v911 = vpack.c.b16 %v730, %v729
    %v912 = vpack.c.b16 %v732, %v731
    %v913 = vpack.c.b16 %v734, %v733
    %v914 = vpack.c.b16 %v736, %v735
    %v915 = vpack.c.b16 %v738, %v737
    %v916 = vpack.c.b16 %v740, %v739
    %v917 = vpack.c.b16 %v742, %v741
    %v918 = vpack.c.b16 %v744, %v743
    %v919 = vpack.c.b16 %v746, %v745
    %v920 = vpack.c.b16 %v748, %v747
    %v921 = vpack.c.b16 %v750, %v749
    %v922 = vpack.c.b16 %v752, %v751
    %v923 = vpack.c.b16 %v754, %v753
    %v924 = vpack.c.b16 %v756, %v755
    %v925 = vpack.c.b16 %v758, %v757
    %v926 = vpack.c.b16 %v760, %v759
    %v927 = vpack.c.b16 %v762, %v761
    %v928 = vpack.c.b16 %v764, %v763
    %v929 = vpack.c.b16 %v766, %v765
    %v930 = vpack.c.b16 %v768, %v767
    %v931 = vpack.c.b16 %v770, %v769
    %v932 = vpack.c.b16 %v772, %v771
    %v933 = vpack.c.b16 %v774, %v773
    %v934 = vpack.c.b16 %v776, %v775
    %v935 = vpack.c.b16 %v778, %v777
    %v936 = vpack.c.b16 %v780, %v779
    %v937 = vpack.c.b16 %v782, %v781
    %v938 = vpack.c.b16 %v784, %v783
    %v939 = vpack.c.b16 %v786, %v785
    %v940 = vpack.c.b16 %v788, %v787
    %v941 = vpack.c.b16 %v790, %v789
    %v942 = vpack.c.b16 %v792, %v791
    %v943 = vpack.c.b16 %v794, %v793
    %v944 = vpack.c.b16 %v796, %v795
    %v945 = vpack.c.b16 %v798, %v797
    %v946 = vpack.c.b16 %v800, %v799
    %v947 = vpack.c.b16 %v802, %v801
    %v948 = vpack.c.b16 %v804, %v803
    %v949 = vpack.c.b16 %v806, %v805
    %v950 = vpack.c.b16 %v808, %v807
    %v951 = vpack.c.b16 %v810, %v809
    %v952 = vpack.c.b16 %v812, %v811
    %v953 = vpack.c.b16 %v814, %v813
    %v954 = vpack.c.b16 %v816, %v815
    %v955 = vpack.c.b16 %v818, %v817
    %v956 = vpack.c.b16 %v820, %v819
    %v957 = vpack.c.b16 %v822, %v821
    %v958 = vpack.c.b16 %v824, %v823
    %v959 = vpack.c.b16 %v826, %v825
    %v960 = vpack.c.b16 %v828, %v827
    %v961 = vpack.c.b16 %v830, %v829
    %v962 = vpack.c.b16 %v832, %v831
    %v963 = vpack.c.b16 %v834, %v833
    %v964 = vpack.c.b16 %v836, %v835
    %1093 = vmatpush.bf16.msra.mxu0 %v844
    %1094 = vmatpush.bf16.msra.mxu0 %v843
    %1095 = vmatpush.bf16.msra.mxu0 %v842
    %1096 = vmatpush.bf16.msra.mxu0 %v841
    %1097 = vmatpush.bf16.msra.mxu0 %v840
    %1098 = vmatpush.bf16.msra.mxu0 %v839
    %1099 = vmatpush.bf16.msra.mxu0 %v838
    %1100 = vmatpush.bf16.msra.mxu0 %v837
    %1101 = vmatmul.bf16.gmra.mxu0 %v291
    %v1102 = vpop.f32.mrf.mxu0
    %v1103 = vadd.f32 %v287, %v1102
    %v1104 = vpop.f32.mrf.mxu0
    %1105 = vdwg.mxu0
    %1106 = vmatpush.bf16.msra.mxu0 %v852
    %1107 = vmatpush.bf16.msra.mxu0 %v851
    %1108 = vmatpush.bf16.msra.mxu0 %v850
    %1109 = vmatpush.bf16.msra.mxu0 %v849
    %1110 = vmatpush.bf16.msra.mxu0 %v848
    %1111 = vmatpush.bf16.msra.mxu0 %v847
    %1112 = vmatpush.bf16.msra.mxu0 %v846
    %1113 = vmatpush.bf16.msra.mxu0 %v845
    %1114 = vmatmul.bf16.gmra.mxu0 %v292
    %v1115 = vpop.f32.mrf.mxu0
    %v1116 = vadd.f32 %v1103, %v1115
    %v1117 = vpop.f32.mrf.mxu0
    %1118 = vdwg.mxu0
    %1119 = vmatpush.bf16.msra.mxu0 %v860
    %1120 = vmatpush.bf16.msra.mxu0 %v859
    %1121 = vmatpush.bf16.msra.mxu0 %v858
    %1122 = vmatpush.bf16.msra.mxu0 %v857
    %1123 = vmatpush.bf16.msra.mxu0 %v856
    %1124 = vmatpush.bf16.msra.mxu0 %v855
    %1125 = vmatpush.bf16.msra.mxu0 %v854
    %1126 = vmatpush.bf16.msra.mxu0 %v853
    %1127 = vmatmul.bf16.gmra.mxu0 %v293
    %v1128 = vpop.f32.mrf.mxu0
    %v1129 = vadd.f32 %v1116, %v1128
    %v1130 = vpop.f32.mrf.mxu0
    %1131 = vdwg.mxu0
    %1132 = vmatpush.bf16.msra.mxu0 %v868
    %1133 = vmatpush.bf16.msra.mxu0 %v867
    %1134 = vmatpush.bf16.msra.mxu0 %v866
    %1135 = vmatpush.bf16.msra.mxu0 %v865
    %1136 = vmatpush.bf16.msra.mxu0 %v864
    %1137 = vmatpush.bf16.msra.mxu0 %v863
    %1138 = vmatpush.bf16.msra.mxu0 %v862
    %1139 = vmatpush.bf16.msra.mxu0 %v861
    %1140 = vmatmul.bf16.gmra.mxu0 %v294
    %v1141 = vpop.f32.mrf.mxu0
    %v1142 = vadd.f32 %v1129, %v1141
    %v1143 = vpop.f32.mrf.mxu0
    %1144 = vdwg.mxu0
    %1145 = vmatpush.bf16.msra.mxu0 %v876
    %1146 = vmatpush.bf16.msra.mxu0 %v875
    %1147 = vmatpush.bf16.msra.mxu0 %v874
    %1148 = vmatpush.bf16.msra.mxu0 %v873
    %1149 = vmatpush.bf16.msra.mxu0 %v872
    %1150 = vmatpush.bf16.msra.mxu0 %v871
    %1151 = vmatpush.bf16.msra.mxu0 %v870
    %1152 = vmatpush.bf16.msra.mxu0 %v869
    %1153 = vmatmul.bf16.gmra.mxu0 %v295
    %v1154 = vpop.f32.mrf.mxu0
    %v1155 = vadd.f32 %v1142, %v1154
    %v1156 = vpop.f32.mrf.mxu0
    %1157 = vdwg.mxu0
    %1158 = vmatpush.bf16.msra.mxu0 %v884
    %1159 = vmatpush.bf16.msra.mxu0 %v883
    %1160 = vmatpush.bf16.msra.mxu0 %v882
    %1161 = vmatpush.bf16.msra.mxu0 %v881
    %1162 = vmatpush.bf16.msra.mxu0 %v880
    %1163 = vmatpush.bf16.msra.mxu0 %v879
    %1164 = vmatpush.bf16.msra.mxu0 %v878
    %1165 = vmatpush.bf16.msra.mxu0 %v877
    %1166 = vmatmul.bf16.gmra.mxu0 %v296
    %v1167 = vpop.f32.mrf.mxu0
    %v1168 = vadd.f32 %v1155, %v1167
    %v1169 = vpop.f32.mrf.mxu0
    %1170 = vdwg.mxu0
    %1171 = vmatpush.bf16.msra.mxu0 %v892
    %1172 = vmatpush.bf16.msra.mxu0 %v891
    %1173 = vmatpush.bf16.msra.mxu0 %v890
    %1174 = vmatpush.bf16.msra.mxu0 %v889
    %1175 = vmatpush.bf16.msra.mxu0 %v888
    %1176 = vmatpush.bf16.msra.mxu0 %v887
    %1177 = vmatpush.bf16.msra.mxu0 %v886
    %1178 = vmatpush.bf16.msra.mxu0 %v885
    %1179 = vmatmul.bf16.gmra.mxu0 %v297
    %v1180 = vpop.f32.mrf.mxu0
    %v1181 = vadd.f32 %v1168, %v1180
    %v1182 = vpop.f32.mrf.mxu0
    %1183 = vdwg.mxu0
    %1184 = vmatpush.bf16.msra.mxu0 %v900
    %1185 = vmatpush.bf16.msra.mxu0 %v899
    %1186 = vmatpush.bf16.msra.mxu0 %v898
    %1187 = vmatpush.bf16.msra.mxu0 %v897
    %1188 = vmatpush.bf16.msra.mxu0 %v896
    %1189 = vmatpush.bf16.msra.mxu0 %v895
    %1190 = vmatpush.bf16.msra.mxu0 %v894
    %1191 = vmatpush.bf16.msra.mxu0 %v893
    %1192 = vmatmul.bf16.gmra.mxu0 %v298
    %v1193 = vpop.f32.mrf.mxu0
    %v1194 = vadd.f32 %v1181, %v1193
    %v1195 = vpop.f32.mrf.mxu0
    %1196 = vdwg.mxu0
    %1197 = vmatpush.bf16.msra.mxu0 %v908
    %1198 = vmatpush.bf16.msra.mxu0 %v907
    %1199 = vmatpush.bf16.msra.mxu0 %v906
    %1200 = vmatpush.bf16.msra.mxu0 %v905
    %1201 = vmatpush.bf16.msra.mxu0 %v904
    %1202 = vmatpush.bf16.msra.mxu0 %v903
    %1203 = vmatpush.bf16.msra.mxu0 %v902
    %1204 = vmatpush.bf16.msra.mxu0 %v901
    %1205 = vmatmul.bf16.gmra.mxu0 %v301
    %v1206 = vpop.f32.mrf.mxu0
    %v1207 = vadd.f32 %v1194, %v1206
    %v1208 = vpop.f32.mrf.mxu0
    %1209 = vdwg.mxu0
    %1210 = vmatpush.bf16.msra.mxu0 %v916
    %1211 = vmatpush.bf16.msra.mxu0 %v915
    %1212 = vmatpush.bf16.msra.mxu0 %v914
    %1213 = vmatpush.bf16.msra.mxu0 %v913
    %1214 = vmatpush.bf16.msra.mxu0 %v912
    %1215 = vmatpush.bf16.msra.mxu0 %v911
    %1216 = vmatpush.bf16.msra.mxu0 %v910
    %1217 = vmatpush.bf16.msra.mxu0 %v909
    %1218 = vmatmul.bf16.gmra.mxu0 %v302
    %v1219 = vpop.f32.mrf.mxu0
    %v1220 = vadd.f32 %v1207, %v1219
    %v1221 = vpop.f32.mrf.mxu0
    %1222 = vdwg.mxu0
    %1223 = vmatpush.bf16.msra.mxu0 %v924
    %1224 = vmatpush.bf16.msra.mxu0 %v923
    %1225 = vmatpush.bf16.msra.mxu0 %v922
    %1226 = vmatpush.bf16.msra.mxu0 %v921
    %1227 = vmatpush.bf16.msra.mxu0 %v920
    %1228 = vmatpush.bf16.msra.mxu0 %v919
    %1229 = vmatpush.bf16.msra.mxu0 %v918
    %1230 = vmatpush.bf16.msra.mxu0 %v917
    %1231 = vmatmul.bf16.gmra.mxu0 %v303
    %v1232 = vpop.f32.mrf.mxu0
    %v1233 = vadd.f32 %v1220, %v1232
    %v1234 = vpop.f32.mrf.mxu0
    %1235 = vdwg.mxu0
    %1236 = vmatpush.bf16.msra.mxu0 %v932
    %1237 = vmatpush.bf16.msra.mxu0 %v931
    %1238 = vmatpush.bf16.msra.mxu0 %v930
    %1239 = vmatpush.bf16.msra.mxu0 %v929
    %1240 = vmatpush.bf16.msra.mxu0 %v928
    %1241 = vmatpush.bf16.msra.mxu0 %v927
    %1242 = vmatpush.bf16.msra.mxu0 %v926
    %1243 = vmatpush.bf16.msra.mxu0 %v925
    %1244 = vmatmul.bf16.gmra.mxu0 %v304
    %v1245 = vpop.f32.mrf.mxu0
    %v1246 = vadd.f32 %v1233, %v1245
    %v1247 = vpop.f32.mrf.mxu0
    %1248 = vdwg.mxu0
    %1249 = vmatpush.bf16.msra.mxu0 %v940
    %1250 = vmatpush.bf16.msra.mxu0 %v939
    %1251 = vmatpush.bf16.msra.mxu0 %v938
    %1252 = vmatpush.bf16.msra.mxu0 %v937
    %1253 = vmatpush.bf16.msra.mxu0 %v936
    %1254 = vmatpush.bf16.msra.mxu0 %v935
    %1255 = vmatpush.bf16.msra.mxu0 %v934
    %1256 = vmatpush.bf16.msra.mxu0 %v933
    %1257 = vmatmul.bf16.gmra.mxu0 %v305
    %v1258 = vpop.f32.mrf.mxu0
    %v1259 = vadd.f32 %v1246, %v1258
    %v1260 = vpop.f32.mrf.mxu0
    %1261 = vdwg.mxu0
    %1262 = vmatpush.bf16.msra.mxu0 %v948
    %1263 = vmatpush.bf16.msra.mxu0 %v947
    %1264 = vmatpush.bf16.msra.mxu0 %v946
    %1265 = vmatpush.bf16.msra.mxu0 %v945
    %1266 = vmatpush.bf16.msra.mxu0 %v944
    %1267 = vmatpush.bf16.msra.mxu0 %v943
    %1268 = vmatpush.bf16.msra.mxu0 %v942
    %1269 = vmatpush.bf16.msra.mxu0 %v941
    %1270 = vmatmul.bf16.gmra.mxu0 %v306
    %v1271 = vpop.f32.mrf.mxu0
    %v1272 = vadd.f32 %v1259, %v1271
    %v1273 = vpop.f32.mrf.mxu0
    %1274 = vdwg.mxu0
    %1275 = vmatpush.bf16.msra.mxu0 %v956
    %1276 = vmatpush.bf16.msra.mxu0 %v955
    %1277 = vmatpush.bf16.msra.mxu0 %v954
    %1278 = vmatpush.bf16.msra.mxu0 %v953
    %1279 = vmatpush.bf16.msra.mxu0 %v952
    %1280 = vmatpush.bf16.msra.mxu0 %v951
    %1281 = vmatpush.bf16.msra.mxu0 %v950
    %1282 = vmatpush.bf16.msra.mxu0 %v949
    %1283 = vmatmul.bf16.gmra.mxu0 %v307
    %v1284 = vpop.f32.mrf.mxu0
    %v1285 = vadd.f32 %v1272, %v1284
    %v1286 = vpop.f32.mrf.mxu0
    %1287 = vdwg.mxu0
    %1288 = vmatpush.bf16.msra.mxu0 %v964
    %1289 = vmatpush.bf16.msra.mxu0 %v963
    %1290 = vmatpush.bf16.msra.mxu0 %v962
    %1291 = vmatpush.bf16.msra.mxu0 %v961
    %1292 = vmatpush.bf16.msra.mxu0 %v960
    %1293 = vmatpush.bf16.msra.mxu0 %v959
    %1294 = vmatpush.bf16.msra.mxu0 %v958
    %1295 = vmatpush.bf16.msra.mxu0 %v957
    %1296 = vmatmul.bf16.gmra.mxu0 %v308
    %v1297 = vpop.f32.mrf.mxu0
    %v1298 = vadd.f32 %v1285, %v1297
    %v1299 = vpop.f32.mrf.mxu0
    %1300 = vdwg.mxu0
    %v1301 = vmax.f32 %v1298, 0.0
    %v1302 = vpack.c.bf16 %v1301, %v1301
    %v1303 = vld [vmem:[%s3] sm:$0xf]
    %v1304 = vld [vmem:[%s3 + $0x4] sm:$0xf]
    %v1305 = vld [vmem:[%s3 + $0x8] sm:$0xf]
    %v1306 = vld [vmem:[%s3 + $0xc] sm:$0xf]
    %v1307 = vld [vmem:[%s3 + $0x10] sm:$0xf]
    %v1308 = vld [vmem:[%s3 + $0x14] sm:$0xf]
    %v1309 = vld [vmem:[%s3 + $0x18] sm:$0xf]
    %v1310 = vld [vmem:[%s3 + $0x1c] sm:$0xf]
    %v1311 = vld [vmem:[%s3 + $0x20] sm:$0xf]
    %v1312 = vld [vmem:[%s3 + $0x24] sm:$0xf]
    %v1313 = vld [vmem:[%s3 + $0x28] sm:$0xf]
    %v1314 = vld [vmem:[%s3 + $0x2c] sm:$0xf]
    %v1315 = vld [vmem:[%s3 + $0x30] sm:$0xf]
    %v1316 = vld [vmem:[%s3 + $0x34] sm:$0xf]
    %v1317 = vld [vmem:[%s3 + $0x38] sm:$0xf]
    %v1318 = vld [vmem:[%s3 + $0x3c] sm:$0xf]
    %v1319 = vld [vmem:[%s4] sm:$0x1]
    %v1321 = vperm.slane %v1319, 0
    %v1339 = vunpack.c.l.b16 %v1303
    %v1340 = vunpack.c.l.b16 %v1304
    %v1341 = vunpack.c.l.b16 %v1305
    %v1342 = vunpack.c.l.b16 %v1306
    %v1343 = vunpack.c.l.b16 %v1307
    %v1344 = vunpack.c.l.b16 %v1308
    %v1345 = vunpack.c.l.b16 %v1309
    %v1346 = vunpack.c.l.b16 %v1310
    %v1347 = vunpack.c.l.b16 %v1311
    %v1348 = vunpack.c.l.b16 %v1312
    %v1349 = vunpack.c.l.b16 %v1313
    %v1350 = vunpack.c.l.b16 %v1314
    %v1351 = vunpack.c.l.b16 %v1315
    %v1352 = vunpack.c.l.b16 %v1316
    %v1353 = vunpack.c.l.b16 %v1317
    %v1354 = vunpack.c.l.b16 %v1318
    %v1355 = vpack.c.b16 %v1340, %v1339
    %v1356 = vpack.c.b16 %v1342, %v1341
    %v1357 = vpack.c.b16 %v1344, %v1343
    %v1358 = vpack.c.b16 %v1346, %v1345
    %v1359 = vpack.c.b16 %v1348, %v1347
    %v1360 = vpack.c.b16 %v1350, %v1349
    %v1361 = vpack.c.b16 %v1352, %v1351
    %v1362 = vpack.c.b16 %v1354, %v1353
    %1371 = vmatpush.bf16.msra.mxu0 %v1362
    %1372 = vmatpush.bf16.msra.mxu0 %v1361
    %1373 = vmatpush.bf16.msra.mxu0 %v1360
    %1374 = vmatpush.bf16.msra.mxu0 %v1359
    %1375 = vmatpush.bf16.msra.mxu0 %v1358
    %1376 = vmatpush.bf16.msra.mxu0 %v1357
    %1377 = vmatpush.bf16.msra.mxu0 %v1356
    %1378 = vmatpush.bf16.msra.mxu0 %v1355
    %1379 = vmatmul.bf16.gmra.mxu0 %v1302
    %v1380 = vpop.f32.mrf.mxu0
    %v1381 = vadd.f32 %v1321, %v1380
    %v1382 = vpop.f32.mrf.mxu0
    %1383 = vdwg.mxu0
    %v1384 = vmax.f32 %v1381, 0.0
    %v1385 = vpack.c.bf16 %v1384, %v1384
    %v1386 = vld [vmem:[%s5] sm:$0xf]
    %v1387 = vld [vmem:[%s5 + $0x4] sm:$0xf]
    %v1388 = vld [vmem:[%s5 + $0x8] sm:$0xf]
    %v1389 = vld [vmem:[%s5 + $0xc] sm:$0xf]
    %v1390 = vld [vmem:[%s5 + $0x10] sm:$0xf]
    %v1391 = vld [vmem:[%s5 + $0x14] sm:$0xf]
    %v1392 = vld [vmem:[%s5 + $0x18] sm:$0xf]
    %v1393 = vld [vmem:[%s5 + $0x1c] sm:$0xf]
    %v1394 = vld [vmem:[%s5 + $0x20] sm:$0xf]
    %v1395 = vld [vmem:[%s5 + $0x24] sm:$0xf]
    %v1396 = vld [vmem:[%s5 + $0x28] sm:$0xf]
    %v1397 = vld [vmem:[%s5 + $0x2c] sm:$0xf]
    %v1398 = vld [vmem:[%s5 + $0x30] sm:$0xf]
    %v1399 = vld [vmem:[%s5 + $0x34] sm:$0xf]
    %v1400 = vld [vmem:[%s5 + $0x38] sm:$0xf]
    %v1401 = vld [vmem:[%s5 + $0x3c] sm:$0xf]
    %v1402 = vld [vmem:[%s6] sm:$0x1]
    %v1404 = vperm.slane %v1402, 0
    %v1422 = vunpack.c.l.b16 %v1386
    %v1423 = vunpack.c.l.b16 %v1387
    %v1424 = vunpack.c.l.b16 %v1388
    %v1425 = vunpack.c.l.b16 %v1389
    %v1426 = vunpack.c.l.b16 %v1390
    %v1427 = vunpack.c.l.b16 %v1391
    %v1428 = vunpack.c.l.b16 %v1392
    %v1429 = vunpack.c.l.b16 %v1393
    %v1430 = vunpack.c.l.b16 %v1394
    %v1431 = vunpack.c.l.b16 %v1395
    %v1432 = vunpack.c.l.b16 %v1396
    %v1433 = vunpack.c.l.b16 %v1397
    %v1434 = vunpack.c.l.b16 %v1398
    %v1435 = vunpack.c.l.b16 %v1399
    %v1436 = vunpack.c.l.b16 %v1400
    %v1437 = vunpack.c.l.b16 %v1401
    %v1438 = vpack.c.b16 %v1423, %v1422
    %v1439 = vpack.c.b16 %v1425, %v1424
    %v1440 = vpack.c.b16 %v1427, %v1426
    %v1441 = vpack.c.b16 %v1429, %v1428
    %v1442 = vpack.c.b16 %v1431, %v1430
    %v1443 = vpack.c.b16 %v1433, %v1432
    %v1444 = vpack.c.b16 %v1435, %v1434
    %v1445 = vpack.c.b16 %v1437, %v1436
    %1454 = vmatpush.bf16.msra.mxu0 %v1445
    %1455 = vmatpush.bf16.msra.mxu0 %v1444
    %1456 = vmatpush.bf16.msra.mxu0 %v1443
    %1457 = vmatpush.bf16.msra.mxu0 %v1442
    %1458 = vmatpush.bf16.msra.mxu0 %v1441
    %1459 = vmatpush.bf16.msra.mxu0 %v1440
    %1460 = vmatpush.bf16.msra.mxu0 %v1439
    %1461 = vmatpush.bf16.msra.mxu0 %v1438
    %1462 = vmatmul.bf16.gmra.mxu0 %v1385
    %v1463 = vpop.f32.mrf.mxu0
    %v1464 = vadd.f32 %v1404, %v1463
    %v1465 = vpop.f32.mrf.mxu0
    %1466 = vdwg.mxu0
    %vm1467 = vcmask 25600
    %1468 = vst.msk [vmem:[#allocation2] sm:$0x3] %vm1467, %v1464
    // Predicated region
    $region30: #{rnet_forward.9} parent=1 // pred_check
      _
    $region31: #{rnet_forward.9} parent=1 // pred_check_branch
      %1470 = sbr.rel (0) target = $region33
    $region32: #{rnet_forward.9} parent=1 // pred_region
      %1472 = vsyncadd [#allocation3], 0
      %s1474 = sshll.u32 [#allocation2], 4
      %s1475 = int_to_ptr.vmem [resolvable:$true] %s1474
      %s1476 = sshll.u32 %s7, 4
      %s1477 = int_to_ptr.hbm [resolvable:$true] %s1476
      %1479 = dma.vmem_to_hbm [thread:$0]  %s1475, 32, %s1477, [#allocation3]
    $region33: #{rnet_forward.9} parent=1 // pred_fallthru
      _
    // Predicated region
    $region34: #{rnet_forward.9} parent=1 // pred_check
      _
    $region35: #{rnet_forward.9} parent=1 // pred_check_branch
      %1481 = sbr.rel (0) target = $region37
    $region36: #{rnet_forward.9} parent=1 // pred_region
      %1483 = dma.done [#allocation3], 32
    $region37: #{rnet_forward.9} parent=1 // pred_fallthru
      _
    %1484 = vsyncpa [#allocation3], 1

</llo_original>
